<compile_context>
chip_gen: v7x
topology: tpu7x:2x2x1
jax: 0.10.0
libtpu: 0.0.40
codegen_flags: <defaults>
</compile_context>

<pallas_src>
import functools

import jax
import jax.numpy as jnp
from jax import lax
from jax.experimental import pallas as pl
from jax.experimental.pallas import tpu as pltpu

TAU = 1.5
V_TH = 1.0
V_RESET = 0.0
BN_EPS = 1e-5

_TARGET_BLOCK_BYTES = 2 * 1024 * 1024   # per-step x DMA target (~1-2 MiB sweet spot)
_MAX_HB = 4                             # cap on H rows per block (bounds unrolled code size)


def _round_up(n, m):
    return ((n + m - 1) // m) * m


def _largest_divisor_leq(n, cap):
    cap = max(1, min(n, int(cap)))
    for d in range(cap, 0, -1):
        if n % d == 0:
            return d
    return 1


# ------------- fused kernel: multi-step LIF + mean over T + 1x1 conv + BN ----
def _fused_lif_mean_conv_bn_kernel(x_ref, w_ref, sel_ref, shift_ref, o_ref, *,
                                   n_t, hb, inv_tau, v_th):
    """One grid step = (Nb batches) x (Hb strided H rows) x all T time steps.

    x_ref    : (T, Nb, C, Hb, W)   strided-H rows of x, full W
    w_ref    : (Cout_p, C)         conv weight with BN scale and 1/T folded in
    sel_ref  : (W, Wo) bf16        0/1 W-stride selection matrix
    shift_ref: (Cout_p, 1)         BN shift
    o_ref    : (Nb, Hb, Cout_p, Wo)
    """
    w = w_ref[...]            # hoisted out of the loops
    sel = sel_ref[...]
    shift = shift_ref[...]
    nb = x_ref.shape[1]

    def per_batch(n, carry):
        for h in range(hb):   # static -> all mid-dim ref indices are constants
            # t = 0, membrane starts at v_reset = 0:  v = x / tau
            x0 = x_ref[0, n, :, h, :].astype(jnp.float32) * inv_tau      # (C, W)
            spk = x0 >= v_th
            acc = jnp.where(spk, 1.0, 0.0)
            v = jnp.where(spk, 0.0, x0)

            def step(t, vc):
                v, acc = vc
                xt = x_ref[t, n, :, h, :].astype(jnp.float32)
                v = v + (xt - v) * inv_tau          # decay-input charge, v_reset = 0
                s = v >= v_th
                acc = acc + jnp.where(s, 1.0, 0.0)  # spike count
                v = jnp.where(s, 0.0, v)            # hard reset
                return v, acc

            _, acc = lax.fori_loop(1, n_t, step, (v, acc), unroll=True)

            # Epilogue: W-stride selection (exact in bf16: integer counts x 0/1
            # matrix), then 1x1 conv + BN as one f32 matmul (weight precision).
            msel = jnp.dot(acc.astype(jnp.bfloat16), sel,
                           preferred_element_type=jnp.float32)            # (C, Wo)
            y = jnp.dot(w, msel, preferred_element_type=jnp.float32)      # (Cout_p, Wo)
            o_ref[n, h] = y + shift
        return carry

    lax.fori_loop(0, nb, per_batch, 0)


# --------------------------------- module forward ----------------------------
def downsample_module_forward(x, conv_w, bn_gamma, bn_beta, bn_mean, bn_var,
                              stride):
    """x: [T, N, C, H, W]; conv_w: PyTorch layout [Cout, Cin, 1, 1].
    Returns [1, N, Cout, Ho, Wo] = Conv_BN(LIF(x).mean(0, keepdim=True))."""
    T, N, C, H, W = x.shape
    Cout, Cin = conv_w.shape[0], conv_w.shape[1]
    assert Cin == C and conv_w.shape[2:] == (1, 1)

    Ho = (H - 1) // stride + 1
    Wo = (W - 1) // stride + 1

    # H-stride without copying x: pad H only if stride does not divide it
    # (rare), then take a *free* view [T, N, C, Ho, stride, 1, W].  The
    # BlockSpec selects stride-index 0, so only needed rows are ever DMA'd.
    Hs = Ho * stride
    if Hs != H:
        x = jnp.pad(x, ((0, 0), (0, 0), (0, 0), (0, Hs - H), (0, 0)))
    xv = x.reshape(T, N, C, Ho, stride, 1, W)

    # Fold BN (inference form) and the 1/T temporal mean into the conv weight.
    scale = bn_gamma / jnp.sqrt(bn_var + BN_EPS)
    shift = bn_beta - bn_mean * scale
    cout_p = _round_up(Cout, 8)                       # sublane padding only
    wf = (conv_w.reshape(Cout, C) * scale[:, None] * (1.0 / T)).astype(jnp.float32)
    wf = jnp.pad(wf, ((0, cout_p - Cout), (0, 0)))
    shift_p = jnp.pad(shift.astype(jnp.float32), (0, cout_p - Cout)).reshape(cout_p, 1)

    # 0/1 W-stride selection matrix (exact in bf16).
    wo_idx = jnp.arange(Wo)
    sel = (jnp.zeros((W, Wo), jnp.float32)
           .at[wo_idx * stride, wo_idx].set(1.0)
           .astype(jnp.bfloat16))

    # Block sizes: ~1-2 MiB x tile per grid step, divisors so the grid is exact.
    itemsize = x.dtype.itemsize
    per_nh = T * C * W * itemsize
    nb = _largest_divisor_leq(N, _TARGET_BLOCK_BYTES // per_nh)
    hb = _largest_divisor_leq(
        Ho, min(_MAX_HB, max(1, _TARGET_BLOCK_BYTES // (per_nh * nb))))
    grid = (N // nb, Ho // hb)

    vmem_need = (2 * T * nb * C * hb * W * itemsize      # x (double buffered)
                 + 2 * nb * hb * cout_p * Wo * 4         # out (double buffered)
                 + cout_p * C * 4 + W * Wo * 2 + cout_p * 4)
    vmem_limit = int(min(60 * 2 ** 20, max(32 * 2 ** 20, 2 * vmem_need + (8 << 20))))

    kernel = functools.partial(_fused_lif_mean_conv_bn_kernel,
                               n_t=T, hb=hb, inv_tau=1.0 / TAU, v_th=V_TH)

    out = pl.pallas_call(
        kernel,
        out_shape=jax.ShapeDtypeStruct((N, Ho, cout_p, Wo), jnp.float32),
        grid_spec=pltpu.PrefetchScalarGridSpec(
            num_scalar_prefetch=0,
            grid=grid,
            in_specs=[
                # x view (T, N, C, Ho, stride, 1, W): take all T, nb batches,
                # all C, hb output rows, stride-index 0, full W.
                pl.BlockSpec((T, nb, C, hb, None, None, W),
                             lambda n, h: (0, n, 0, h, 0, 0, 0)),
                pl.BlockSpec((cout_p, C), lambda n, h: (0, 0)),   # folded weight
                pl.BlockSpec((W, Wo), lambda n, h: (0, 0)),       # W-stride select
                pl.BlockSpec((cout_p, 1), lambda n, h: (0, 0)),   # BN shift
            ],
            out_specs=pl.BlockSpec((nb, hb, cout_p, Wo),
                                   lambda n, h: (n, h, 0, 0)),
        ),
        compiler_params=pltpu.CompilerParams(
            dimension_semantics=("parallel", "parallel"),
            vmem_limit_bytes=vmem_limit),
    )(xv, wf, sel, shift_p)

    # Small-output layout plumbing only: drop channel padding, go to NCHW.
    y = out[:, :, :Cout, :].transpose(0, 2, 1, 3)     # (N, Cout, Ho, Wo)
    return y[None]                                    # keepdim T = 1


# --------------------------- pure-JAX reference check -------------------------
def reference_forward(x, conv_w, gamma, beta, mean, var, stride):
    T = x.shape[0]
    w2 = conv_w.reshape(conv_w.shape[0], conv_w.shape[1])
    v = jnp.zeros_like(x[0])
    acc = jnp.zeros_like(x[0])
    for t in range(T):
        # with v_reset = 0 this equals PyTorch's v + (x - (v - v_reset)) / tau
        v = v + (x[t] - v) * (1.0 / TAU)
        s = (v >= V_TH).astype(x.dtype)
        v = jnp.where(s > 0, V_RESET, v)
        acc = acc + s
    m = acc / T                                                   # [N, C, H, W]
    ms = m[:, :, ::stride, ::stride]
    y = jnp.einsum("nchw,oc->nohw", ms, w2)
    scale = (gamma / jnp.sqrt(var + BN_EPS))[None, :, None, None]
    shift = (beta - mean * gamma / jnp.sqrt(var + BN_EPS))[None, :, None, None]
    return (y * scale + shift)[None]


if __name__ == "__main__":
    T, N, C, H, W = 8, 2, 4, 16, 16
    inplanes, planes, block_expansion, stride = C, 4, 2, 2
    Cout = planes * block_expansion

    key = jax.random.PRNGKey(0)
    k1, k2, k3, k4, k5, k6 = jax.random.split(key, 6)
    x = jax.random.uniform(k1, (T, N, C, H, W), jnp.float32, 0.0, 2.0)
    # PyTorch conv1x1 weight layout: [Cout, Cin, 1, 1]
    conv_w = jax.random.normal(k2, (Cout, C, 1, 1), jnp.float32) * 0.5
    bn_gamma = jax.random.uniform(k3, (Cout,), jnp.float32, 0.5, 1.5)
    bn_beta = jax.random.normal(k4, (Cout,), jnp.float32) * 0.1
    bn_mean = jax.random.normal(k5, (Cout,), jnp.float32) * 0.1
    bn_var = jax.random.uniform(k6, (Cout,), jnp.float32, 0.5, 1.5)

    fwd = jax.jit(functools.partial(downsample_module_forward, stride=stride))
    out = jax.block_until_ready(fwd(x, conv_w, bn_gamma, bn_beta, bn_mean, bn_var))

    ref = reference_forward(x, conv_w, bn_gamma, bn_beta, bn_mean, bn_var, stride)
    assert out.shape == (1, N, Cout, H // stride, W // stride), out.shape
    err = float(jnp.max(jnp.abs(out - ref)))
    assert err < 1e-4, f"mismatch vs reference: max abs err = {err}"
    print("KERNEL_OK")
</pallas_src>

<mosaic_0001>
module attributes {stable_mosaic.version = 11 : i64} {
  func.func @_fused_lif_mean_conv_bn_kernel(%arg0: i32, %arg1: i32, %arg2: memref<8x2x4x4x1x1x16xf32, #tpu.memory_space<vmem>>, %arg3: memref<8x4xf32, #tpu.memory_space<vmem>>, %arg4: memref<16x8xbf16, #tpu.memory_space<vmem>>, %arg5: memref<8x1xf32, #tpu.memory_space<vmem>>, %arg6: memref<2x4x8x8xf32, #tpu.memory_space<vmem>>) attributes {dimension_semantics = [#tpu.dimension_semantics<parallel>, #tpu.dimension_semantics<parallel>], iteration_bounds = array<i64: 1, 2>, scalar_prefetch = 0 : i64, scratch_operands = 0 : i64, tpu.core_type = #tpu.core_type<tc>, window_params = [{transform_indices = @transform_0, window_bounds = array<i64: 8, 2, 4, 4, 1, 1, 16>}, {pipeline_mode = #tpu.pipeline_mode<synchronous>, transform_indices = @transform_1, window_bounds = array<i64: 8, 4>}, {pipeline_mode = #tpu.pipeline_mode<synchronous>, transform_indices = @transform_2, window_bounds = array<i64: 16, 8>}, {pipeline_mode = #tpu.pipeline_mode<synchronous>, transform_indices = @transform_3, window_bounds = array<i64: 8, 1>}, {transform_indices = @transform_4, window_bounds = array<i64: 2, 4, 8, 8>}]} {
    %c0 = arith.constant 0 : index
    %c0_0 = arith.constant 0 : index
    %0 = vector.load %arg3[%c0, %c0_0] : memref<8x4xf32, #tpu.memory_space<vmem>>, vector<8x4xf32>
    %c0_1 = arith.constant 0 : index
    %c0_2 = arith.constant 0 : index
    %1 = vector.load %arg4[%c0_1, %c0_2] : memref<16x8xbf16, #tpu.memory_space<vmem>>, vector<16x8xbf16>
    %c0_3 = arith.constant 0 : index
    %c0_4 = arith.constant 0 : index
    %2 = vector.load %arg5[%c0_3, %c0_4] : memref<8x1xf32, #tpu.memory_space<vmem>>, vector<8x1xf32>
    %c0_i32 = arith.constant 0 : i32
    %c2_i32 = arith.constant 2 : i32
    %3 = arith.addi %c0_i32, %c2_i32 : i32
    %c1_i32 = arith.constant 1 : i32
    scf.for %arg7 = %c0_i32 to %3 step %c1_i32  : i32 {
      %c0_6 = arith.constant 0 : index
      %4 = arith.index_cast %arg7 : i32 to index
      %c0_7 = arith.constant 0 : index
      %c0_8 = arith.constant 0 : index
      %c0_9 = arith.constant 0 : index
      %c0_10 = arith.constant 0 : index
      %c0_11 = arith.constant 0 : index
      %5 = vector.load %arg2[%c0_6, %4, %c0_7, %c0_8, %c0_9, %c0_10, %c0_11] : memref<8x2x4x4x1x1x16xf32, #tpu.memory_space<vmem>>, vector<1x1x4x1x1x1x16xf32>
      %6 = vector.shape_cast %5 : vector<1x1x4x1x1x1x16xf32> to vector<4x16xf32>
      %cst = arith.constant 0.666666686 : f32
      %7 = vector.broadcast %cst : f32 to vector<4x16xf32>
      %8 = arith.mulf %6, %7 : vector<4x16xf32>
      %cst_12 = arith.constant 1.000000e+00 : f32
      %9 = vector.broadcast %cst_12 : f32 to vector<4x16xf32>
      %10 = arith.cmpf oge, %8, %9 : vector<4x16xf32>
      %cst_13 = arith.constant 1.000000e+00 : f32
      %cst_14 = arith.constant 0.000000e+00 : f32
      %11 = vector.broadcast %cst_13 : f32 to vector<4x16xf32>
      %12 = vector.broadcast %cst_14 : f32 to vector<4x16xf32>
      %13 = arith.select %10, %11, %12 : vector<4x16xi1>, vector<4x16xf32>
      %cst_15 = arith.constant 0.000000e+00 : f32
      %14 = vector.broadcast %cst_15 : f32 to vector<4x16xf32>
      %15 = arith.select %10, %14, %8 : vector<4x16xi1>, vector<4x16xf32>
      %c1_i32_16 = arith.constant 1 : i32
      %16 = arith.index_cast %c1_i32_16 : i32 to index
      %17 = arith.index_cast %arg7 : i32 to index
      %c0_17 = arith.constant 0 : index
      %c0_18 = arith.constant 0 : index
      %c0_19 = arith.constant 0 : index
      %c0_20 = arith.constant 0 : index
      %c0_21 = arith.constant 0 : index
      %18 = vector.load %arg2[%16, %17, %c0_17, %c0_18, %c0_19, %c0_20, %c0_21] : memref<8x2x4x4x1x1x16xf32, #tpu.memory_space<vmem>>, vector<1x1x4x1x1x1x16xf32>
      %19 = vector.shape_cast %18 : vector<1x1x4x1x1x1x16xf32> to vector<4x16xf32>
      %20 = arith.subf %19, %15 : vector<4x16xf32>
      %cst_22 = arith.constant 0.666666686 : f32
      %21 = vector.broadcast %cst_22 : f32 to vector<4x16xf32>
      %22 = arith.mulf %20, %21 : vector<4x16xf32>
      %23 = arith.addf %15, %22 : vector<4x16xf32>
      %cst_23 = arith.constant 1.000000e+00 : f32
      %24 = vector.broadcast %cst_23 : f32 to vector<4x16xf32>
      %25 = arith.cmpf oge, %23, %24 : vector<4x16xf32>
      %cst_24 = arith.constant 1.000000e+00 : f32
      %cst_25 = arith.constant 0.000000e+00 : f32
      %26 = vector.broadcast %cst_24 : f32 to vector<4x16xf32>
      %27 = vector.broadcast %cst_25 : f32 to vector<4x16xf32>
      %28 = arith.select %25, %26, %27 : vector<4x16xi1>, vector<4x16xf32>
      %29 = arith.addf %13, %28 : vector<4x16xf32>
      %cst_26 = arith.constant 0.000000e+00 : f32
      %30 = vector.broadcast %cst_26 : f32 to vector<4x16xf32>
      %31 = arith.select %25, %30, %23 : vector<4x16xi1>, vector<4x16xf32>
      %c2_i32_27 = arith.constant 2 : i32
      %32 = arith.index_cast %c2_i32_27 : i32 to index
      %33 = arith.index_cast %arg7 : i32 to index
      %c0_28 = arith.constant 0 : index
      %c0_29 = arith.constant 0 : index
      %c0_30 = arith.constant 0 : index
      %c0_31 = arith.constant 0 : index
      %c0_32 = arith.constant 0 : index
      %34 = vector.load %arg2[%32, %33, %c0_28, %c0_29, %c0_30, %c0_31, %c0_32] : memref<8x2x4x4x1x1x16xf32, #tpu.memory_space<vmem>>, vector<1x1x4x1x1x1x16xf32>
      %35 = vector.shape_cast %34 : vector<1x1x4x1x1x1x16xf32> to vector<4x16xf32>
      %36 = arith.subf %35, %31 : vector<4x16xf32>
      %cst_33 = arith.constant 0.666666686 : f32
      %37 = vector.broadcast %cst_33 : f32 to vector<4x16xf32>
      %38 = arith.mulf %36, %37 : vector<4x16xf32>
      %39 = arith.addf %31, %38 : vector<4x16xf32>
      %cst_34 = arith.constant 1.000000e+00 : f32
      %40 = vector.broadcast %cst_34 : f32 to vector<4x16xf32>
      %41 = arith.cmpf oge, %39, %40 : vector<4x16xf32>
      %cst_35 = arith.constant 1.000000e+00 : f32
      %cst_36 = arith.constant 0.000000e+00 : f32
      %42 = vector.broadcast %cst_35 : f32 to vector<4x16xf32>
      %43 = vector.broadcast %cst_36 : f32 to vector<4x16xf32>
      %44 = arith.select %41, %42, %43 : vector<4x16xi1>, vector<4x16xf32>
      %45 = arith.addf %29, %44 : vector<4x16xf32>
      %cst_37 = arith.constant 0.000000e+00 : f32
      %46 = vector.broadcast %cst_37 : f32 to vector<4x16xf32>
      %47 = arith.select %41, %46, %39 : vector<4x16xi1>, vector<4x16xf32>
      %c3_i32 = arith.constant 3 : i32
      %48 = arith.index_cast %c3_i32 : i32 to index
      %49 = arith.index_cast %arg7 : i32 to index
      %c0_38 = arith.constant 0 : index
      %c0_39 = arith.constant 0 : index
      %c0_40 = arith.constant 0 : index
      %c0_41 = arith.constant 0 : index
      %c0_42 = arith.constant 0 : index
      %50 = vector.load %arg2[%48, %49, %c0_38, %c0_39, %c0_40, %c0_41, %c0_42] : memref<8x2x4x4x1x1x16xf32, #tpu.memory_space<vmem>>, vector<1x1x4x1x1x1x16xf32>
      %51 = vector.shape_cast %50 : vector<1x1x4x1x1x1x16xf32> to vector<4x16xf32>
      %52 = arith.subf %51, %47 : vector<4x16xf32>
      %cst_43 = arith.constant 0.666666686 : f32
      %53 = vector.broadcast %cst_43 : f32 to vector<4x16xf32>
      %54 = arith.mulf %52, %53 : vector<4x16xf32>
      %55 = arith.addf %47, %54 : vector<4x16xf32>
      %cst_44 = arith.constant 1.000000e+00 : f32
      %56 = vector.broadcast %cst_44 : f32 to vector<4x16xf32>
      %57 = arith.cmpf oge, %55, %56 : vector<4x16xf32>
      %cst_45 = arith.constant 1.000000e+00 : f32
      %cst_46 = arith.constant 0.000000e+00 : f32
      %58 = vector.broadcast %cst_45 : f32 to vector<4x16xf32>
      %59 = vector.broadcast %cst_46 : f32 to vector<4x16xf32>
      %60 = arith.select %57, %58, %59 : vector<4x16xi1>, vector<4x16xf32>
      %61 = arith.addf %45, %60 : vector<4x16xf32>
      %cst_47 = arith.constant 0.000000e+00 : f32
      %62 = vector.broadcast %cst_47 : f32 to vector<4x16xf32>
      %63 = arith.select %57, %62, %55 : vector<4x16xi1>, vector<4x16xf32>
      %c4_i32 = arith.constant 4 : i32
      %64 = arith.index_cast %c4_i32 : i32 to index
      %65 = arith.index_cast %arg7 : i32 to index
      %c0_48 = arith.constant 0 : index
      %c0_49 = arith.constant 0 : index
      %c0_50 = arith.constant 0 : index
      %c0_51 = arith.constant 0 : index
      %c0_52 = arith.constant 0 : index
      %66 = vector.load %arg2[%64, %65, %c0_48, %c0_49, %c0_50, %c0_51, %c0_52] : memref<8x2x4x4x1x1x16xf32, #tpu.memory_space<vmem>>, vector<1x1x4x1x1x1x16xf32>
      %67 = vector.shape_cast %66 : vector<1x1x4x1x1x1x16xf32> to vector<4x16xf32>
      %68 = arith.subf %67, %63 : vector<4x16xf32>
      %cst_53 = arith.constant 0.666666686 : f32
      %69 = vector.broadcast %cst_53 : f32 to vector<4x16xf32>
      %70 = arith.mulf %68, %69 : vector<4x16xf32>
      %71 = arith.addf %63, %70 : vector<4x16xf32>
      %cst_54 = arith.constant 1.000000e+00 : f32
      %72 = vector.broadcast %cst_54 : f32 to vector<4x16xf32>
      %73 = arith.cmpf oge, %71, %72 : vector<4x16xf32>
      %cst_55 = arith.constant 1.000000e+00 : f32
      %cst_56 = arith.constant 0.000000e+00 : f32
      %74 = vector.broadcast %cst_55 : f32 to vector<4x16xf32>
      %75 = vector.broadcast %cst_56 : f32 to vector<4x16xf32>
      %76 = arith.select %73, %74, %75 : vector<4x16xi1>, vector<4x16xf32>
      %77 = arith.addf %61, %76 : vector<4x16xf32>
      %cst_57 = arith.constant 0.000000e+00 : f32
      %78 = vector.broadcast %cst_57 : f32 to vector<4x16xf32>
      %79 = arith.select %73, %78, %71 : vector<4x16xi1>, vector<4x16xf32>
      %c5_i32 = arith.constant 5 : i32
      %80 = arith.index_cast %c5_i32 : i32 to index
      %81 = arith.index_cast %arg7 : i32 to index
      %c0_58 = arith.constant 0 : index
      %c0_59 = arith.constant 0 : index
      %c0_60 = arith.constant 0 : index
      %c0_61 = arith.constant 0 : index
      %c0_62 = arith.constant 0 : index
      %82 = vector.load %arg2[%80, %81, %c0_58, %c0_59, %c0_60, %c0_61, %c0_62] : memref<8x2x4x4x1x1x16xf32, #tpu.memory_space<vmem>>, vector<1x1x4x1x1x1x16xf32>
      %83 = vector.shape_cast %82 : vector<1x1x4x1x1x1x16xf32> to vector<4x16xf32>
      %84 = arith.subf %83, %79 : vector<4x16xf32>
      %cst_63 = arith.constant 0.666666686 : f32
      %85 = vector.broadcast %cst_63 : f32 to vector<4x16xf32>
      %86 = arith.mulf %84, %85 : vector<4x16xf32>
      %87 = arith.addf %79, %86 : vector<4x16xf32>
      %cst_64 = arith.constant 1.000000e+00 : f32
      %88 = vector.broadcast %cst_64 : f32 to vector<4x16xf32>
      %89 = arith.cmpf oge, %87, %88 : vector<4x16xf32>
      %cst_65 = arith.constant 1.000000e+00 : f32
      %cst_66 = arith.constant 0.000000e+00 : f32
      %90 = vector.broadcast %cst_65 : f32 to vector<4x16xf32>
      %91 = vector.broadcast %cst_66 : f32 to vector<4x16xf32>
      %92 = arith.select %89, %90, %91 : vector<4x16xi1>, vector<4x16xf32>
      %93 = arith.addf %77, %92 : vector<4x16xf32>
      %cst_67 = arith.constant 0.000000e+00 : f32
      %94 = vector.broadcast %cst_67 : f32 to vector<4x16xf32>
      %95 = arith.select %89, %94, %87 : vector<4x16xi1>, vector<4x16xf32>
      %c6_i32 = arith.constant 6 : i32
      %96 = arith.index_cast %c6_i32 : i32 to index
      %97 = arith.index_cast %arg7 : i32 to index
      %c0_68 = arith.constant 0 : index
      %c0_69 = arith.constant 0 : index
      %c0_70 = arith.constant 0 : index
      %c0_71 = arith.constant 0 : index
      %c0_72 = arith.constant 0 : index
      %98 = vector.load %arg2[%96, %97, %c0_68, %c0_69, %c0_70, %c0_71, %c0_72] : memref<8x2x4x4x1x1x16xf32, #tpu.memory_space<vmem>>, vector<1x1x4x1x1x1x16xf32>
      %99 = vector.shape_cast %98 : vector<1x1x4x1x1x1x16xf32> to vector<4x16xf32>
      %100 = arith.subf %99, %95 : vector<4x16xf32>
      %cst_73 = arith.constant 0.666666686 : f32
      %101 = vector.broadcast %cst_73 : f32 to vector<4x16xf32>
      %102 = arith.mulf %100, %101 : vector<4x16xf32>
      %103 = arith.addf %95, %102 : vector<4x16xf32>
      %cst_74 = arith.constant 1.000000e+00 : f32
      %104 = vector.broadcast %cst_74 : f32 to vector<4x16xf32>
      %105 = arith.cmpf oge, %103, %104 : vector<4x16xf32>
      %cst_75 = arith.constant 1.000000e+00 : f32
      %cst_76 = arith.constant 0.000000e+00 : f32
      %106 = vector.broadcast %cst_75 : f32 to vector<4x16xf32>
      %107 = vector.broadcast %cst_76 : f32 to vector<4x16xf32>
      %108 = arith.select %105, %106, %107 : vector<4x16xi1>, vector<4x16xf32>
      %109 = arith.addf %93, %108 : vector<4x16xf32>
      %cst_77 = arith.constant 0.000000e+00 : f32
      %110 = vector.broadcast %cst_77 : f32 to vector<4x16xf32>
      %111 = arith.select %105, %110, %103 : vector<4x16xi1>, vector<4x16xf32>
      %c7_i32 = arith.constant 7 : i32
      %112 = arith.index_cast %c7_i32 : i32 to index
      %113 = arith.index_cast %arg7 : i32 to index
      %c0_78 = arith.constant 0 : index
      %c0_79 = arith.constant 0 : index
      %c0_80 = arith.constant 0 : index
      %c0_81 = arith.constant 0 : index
      %c0_82 = arith.constant 0 : index
      %114 = vector.load %arg2[%112, %113, %c0_78, %c0_79, %c0_80, %c0_81, %c0_82] : memref<8x2x4x4x1x1x16xf32, #tpu.memory_space<vmem>>, vector<1x1x4x1x1x1x16xf32>
      %115 = vector.shape_cast %114 : vector<1x1x4x1x1x1x16xf32> to vector<4x16xf32>
      %116 = arith.subf %115, %111 : vector<4x16xf32>
      %cst_83 = arith.constant 0.666666686 : f32
      %117 = vector.broadcast %cst_83 : f32 to vector<4x16xf32>
      %118 = arith.mulf %116, %117 : vector<4x16xf32>
      %119 = arith.addf %111, %118 : vector<4x16xf32>
      %cst_84 = arith.constant 1.000000e+00 : f32
      %120 = vector.broadcast %cst_84 : f32 to vector<4x16xf32>
      %121 = arith.cmpf oge, %119, %120 : vector<4x16xf32>
      %cst_85 = arith.constant 1.000000e+00 : f32
      %cst_86 = arith.constant 0.000000e+00 : f32
      %122 = vector.broadcast %cst_85 : f32 to vector<4x16xf32>
      %123 = vector.broadcast %cst_86 : f32 to vector<4x16xf32>
      %124 = arith.select %121, %122, %123 : vector<4x16xi1>, vector<4x16xf32>
      %125 = arith.addf %109, %124 : vector<4x16xf32>
      %cst_87 = arith.constant 0.000000e+00 : f32
      %126 = vector.broadcast %cst_87 : f32 to vector<4x16xf32>
      %127 = arith.select %121, %126, %119 : vector<4x16xi1>, vector<4x16xf32>
      %c7_i32_88 = arith.constant 7 : i32
      %128 = arith.truncf %125 : vector<4x16xf32> to vector<4x16xbf16>
      %cst_89 = arith.constant dense<0.000000e+00> : vector<4x8xf32>
      %129 = tpu.matmul %128, %1, %cst_89 {dimension_numbers = #tpu.dot_dimension_numbers<[1], [0], [0], [1], [0, 0, 1, 1], [], []>} : vector<4x16xbf16>, vector<16x8xbf16>, vector<4x8xf32> -> vector<4x8xf32>
      %cst_90 = arith.constant dense<0.000000e+00> : vector<8x8xf32>
      %130 = tpu.matmul %0, %129, %cst_90 {dimension_numbers = #tpu.dot_dimension_numbers<[1], [0], [0], [1], [0, 0, 1, 1], [], []>} : vector<8x4xf32>, vector<4x8xf32>, vector<8x8xf32> -> vector<8x8xf32>
      %131 = vector.broadcast %2 : vector<8x1xf32> to vector<8x8xf32>
      %132 = arith.addf %130, %131 : vector<8x8xf32>
      %133 = arith.index_cast %arg7 : i32 to index
      %c0_91 = arith.constant 0 : index
      %c0_92 = arith.constant 0 : index
      %c0_93 = arith.constant 0 : index
      %134 = vector.load %arg6[%133, %c0_91, %c0_92, %c0_93] : memref<2x4x8x8xf32, #tpu.memory_space<vmem>>, vector<1x1x8x8xf32>
      %135 = vector.shape_cast %134 : vector<1x1x8x8xf32> to vector<8x8xf32>
      %136 = vector.shape_cast %132 : vector<8x8xf32> to vector<1x1x8x8xf32>
      tpu.vector_store %arg6[%133, %c0_91, %c0_92, %c0_93], %136 {strides = array<i32>} : memref<2x4x8x8xf32, #tpu.memory_space<vmem>>, vector<1x1x8x8xf32>,
      %c0_94 = arith.constant 0 : index
      %137 = arith.index_cast %arg7 : i32 to index
      %c0_95 = arith.constant 0 : index
      %c1 = arith.constant 1 : index
      %c0_96 = arith.constant 0 : index
      %c0_97 = arith.constant 0 : index
      %c0_98 = arith.constant 0 : index
      %138 = vector.load %arg2[%c0_94, %137, %c0_95, %c1, %c0_96, %c0_97, %c0_98] : memref<8x2x4x4x1x1x16xf32, #tpu.memory_space<vmem>>, vector<1x1x4x1x1x1x16xf32>
      %139 = vector.shape_cast %138 : vector<1x1x4x1x1x1x16xf32> to vector<4x16xf32>
      %cst_99 = arith.constant 0.666666686 : f32
      %140 = vector.broadcast %cst_99 : f32 to vector<4x16xf32>
      %141 = arith.mulf %139, %140 : vector<4x16xf32>
      %cst_100 = arith.constant 1.000000e+00 : f32
      %142 = vector.broadcast %cst_100 : f32 to vector<4x16xf32>
      %143 = arith.cmpf oge, %141, %142 : vector<4x16xf32>
      %cst_101 = arith.constant 1.000000e+00 : f32
      %cst_102 = arith.constant 0.000000e+00 : f32
      %144 = vector.broadcast %cst_101 : f32 to vector<4x16xf32>
      %145 = vector.broadcast %cst_102 : f32 to vector<4x16xf32>
      %146 = arith.select %143, %144, %145 : vector<4x16xi1>, vector<4x16xf32>
      %cst_103 = arith.constant 0.000000e+00 : f32
      %147 = vector.broadcast %cst_103 : f32 to vector<4x16xf32>
      %148 = arith.select %143, %147, %141 : vector<4x16xi1>, vector<4x16xf32>
      %c1_i32_104 = arith.constant 1 : i32
      %149 = arith.index_cast %c1_i32_104 : i32 to index
      %150 = arith.index_cast %arg7 : i32 to index
      %c0_105 = arith.constant 0 : index
      %c1_106 = arith.constant 1 : index
      %c0_107 = arith.constant 0 : index
      %c0_108 = arith.constant 0 : index
      %c0_109 = arith.constant 0 : index
      %151 = vector.load %arg2[%149, %150, %c0_105, %c1_106, %c0_107, %c0_108, %c0_109] : memref<8x2x4x4x1x1x16xf32, #tpu.memory_space<vmem>>, vector<1x1x4x1x1x1x16xf32>
      %152 = vector.shape_cast %151 : vector<1x1x4x1x1x1x16xf32> to vector<4x16xf32>
      %153 = arith.subf %152, %148 : vector<4x16xf32>
      %cst_110 = arith.constant 0.666666686 : f32
      %154 = vector.broadcast %cst_110 : f32 to vector<4x16xf32>
      %155 = arith.mulf %153, %154 : vector<4x16xf32>
      %156 = arith.addf %148, %155 : vector<4x16xf32>
      %cst_111 = arith.constant 1.000000e+00 : f32
      %157 = vector.broadcast %cst_111 : f32 to vector<4x16xf32>
      %158 = arith.cmpf oge, %156, %157 : vector<4x16xf32>
      %cst_112 = arith.constant 1.000000e+00 : f32
      %cst_113 = arith.constant 0.000000e+00 : f32
      %159 = vector.broadcast %cst_112 : f32 to vector<4x16xf32>
      %160 = vector.broadcast %cst_113 : f32 to vector<4x16xf32>
      %161 = arith.select %158, %159, %160 : vector<4x16xi1>, vector<4x16xf32>
      %162 = arith.addf %146, %161 : vector<4x16xf32>
      %cst_114 = arith.constant 0.000000e+00 : f32
      %163 = vector.broadcast %cst_114 : f32 to vector<4x16xf32>
      %164 = arith.select %158, %163, %156 : vector<4x16xi1>, vector<4x16xf32>
      %c2_i32_115 = arith.constant 2 : i32
      %165 = arith.index_cast %c2_i32_115 : i32 to index
      %166 = arith.index_cast %arg7 : i32 to index
      %c0_116 = arith.constant 0 : index
      %c1_117 = arith.constant 1 : index
      %c0_118 = arith.constant 0 : index
      %c0_119 = arith.constant 0 : index
      %c0_120 = arith.constant 0 : index
      %167 = vector.load %arg2[%165, %166, %c0_116, %c1_117, %c0_118, %c0_119, %c0_120] : memref<8x2x4x4x1x1x16xf32, #tpu.memory_space<vmem>>, vector<1x1x4x1x1x1x16xf32>
      %168 = vector.shape_cast %167 : vector<1x1x4x1x1x1x16xf32> to vector<4x16xf32>
      %169 = arith.subf %168, %164 : vector<4x16xf32>
      %cst_121 = arith.constant 0.666666686 : f32
      %170 = vector.broadcast %cst_121 : f32 to vector<4x16xf32>
      %171 = arith.mulf %169, %170 : vector<4x16xf32>
      %172 = arith.addf %164, %171 : vector<4x16xf32>
      %cst_122 = arith.constant 1.000000e+00 : f32
      %173 = vector.broadcast %cst_122 : f32 to vector<4x16xf32>
      %174 = arith.cmpf oge, %172, %173 : vector<4x16xf32>
      %cst_123 = arith.constant 1.000000e+00 : f32
      %cst_124 = arith.constant 0.000000e+00 : f32
      %175 = vector.broadcast %cst_123 : f32 to vector<4x16xf32>
      %176 = vector.broadcast %cst_124 : f32 to vector<4x16xf32>
      %177 = arith.select %174, %175, %176 : vector<4x16xi1>, vector<4x16xf32>
      %178 = arith.addf %162, %177 : vector<4x16xf32>
      %cst_125 = arith.constant 0.000000e+00 : f32
      %179 = vector.broadcast %cst_125 : f32 to vector<4x16xf32>
      %180 = arith.select %174, %179, %172 : vector<4x16xi1>, vector<4x16xf32>
      %c3_i32_126 = arith.constant 3 : i32
      %181 = arith.index_cast %c3_i32_126 : i32 to index
      %182 = arith.index_cast %arg7 : i32 to index
      %c0_127 = arith.constant 0 : index
      %c1_128 = arith.constant 1 : index
      %c0_129 = arith.constant 0 : index
      %c0_130 = arith.constant 0 : index
      %c0_131 = arith.constant 0 : index
      %183 = vector.load %arg2[%181, %182, %c0_127, %c1_128, %c0_129, %c0_130, %c0_131] : memref<8x2x4x4x1x1x16xf32, #tpu.memory_space<vmem>>, vector<1x1x4x1x1x1x16xf32>
      %184 = vector.shape_cast %183 : vector<1x1x4x1x1x1x16xf32> to vector<4x16xf32>
      %185 = arith.subf %184, %180 : vector<4x16xf32>
      %cst_132 = arith.constant 0.666666686 : f32
      %186 = vector.broadcast %cst_132 : f32 to vector<4x16xf32>
      %187 = arith.mulf %185, %186 : vector<4x16xf32>
      %188 = arith.addf %180, %187 : vector<4x16xf32>
      %cst_133 = arith.constant 1.000000e+00 : f32
      %189 = vector.broadcast %cst_133 : f32 to vector<4x16xf32>
      %190 = arith.cmpf oge, %188, %189 : vector<4x16xf32>
      %cst_134 = arith.constant 1.000000e+00 : f32
      %cst_135 = arith.constant 0.000000e+00 : f32
      %191 = vector.broadcast %cst_134 : f32 to vector<4x16xf32>
      %192 = vector.broadcast %cst_135 : f32 to vector<4x16xf32>
      %193 = arith.select %190, %191, %192 : vector<4x16xi1>, vector<4x16xf32>
      %194 = arith.addf %178, %193 : vector<4x16xf32>
      %cst_136 = arith.constant 0.000000e+00 : f32
      %195 = vector.broadcast %cst_136 : f32 to vector<4x16xf32>
      %196 = arith.select %190, %195, %188 : vector<4x16xi1>, vector<4x16xf32>
      %c4_i32_137 = arith.constant 4 : i32
      %197 = arith.index_cast %c4_i32_137 : i32 to index
      %198 = arith.index_cast %arg7 : i32 to index
      %c0_138 = arith.constant 0 : index
      %c1_139 = arith.constant 1 : index
      %c0_140 = arith.constant 0 : index
      %c0_141 = arith.constant 0 : index
      %c0_142 = arith.constant 0 : index
      %199 = vector.load %arg2[%197, %198, %c0_138, %c1_139, %c0_140, %c0_141, %c0_142] : memref<8x2x4x4x1x1x16xf32, #tpu.memory_space<vmem>>, vector<1x1x4x1x1x1x16xf32>
      %200 = vector.shape_cast %199 : vector<1x1x4x1x1x1x16xf32> to vector<4x16xf32>
      %201 = arith.subf %200, %196 : vector<4x16xf32>
      %cst_143 = arith.constant 0.666666686 : f32
      %202 = vector.broadcast %cst_143 : f32 to vector<4x16xf32>
      %203 = arith.mulf %201, %202 : vector<4x16xf32>
      %204 = arith.addf %196, %203 : vector<4x16xf32>
      %cst_144 = arith.constant 1.000000e+00 : f32
      %205 = vector.broadcast %cst_144 : f32 to vector<4x16xf32>
      %206 = arith.cmpf oge, %204, %205 : vector<4x16xf32>
      %cst_145 = arith.constant 1.000000e+00 : f32
      %cst_146 = arith.constant 0.000000e+00 : f32
      %207 = vector.broadcast %cst_145 : f32 to vector<4x16xf32>
      %208 = vector.broadcast %cst_146 : f32 to vector<4x16xf32>
      %209 = arith.select %206, %207, %208 : vector<4x16xi1>, vector<4x16xf32>
      %210 = arith.addf %194, %209 : vector<4x16xf32>
      %cst_147 = arith.constant 0.000000e+00 : f32
      %211 = vector.broadcast %cst_147 : f32 to vector<4x16xf32>
      %212 = arith.select %206, %211, %204 : vector<4x16xi1>, vector<4x16xf32>
      %c5_i32_148 = arith.constant 5 : i32
      %213 = arith.index_cast %c5_i32_148 : i32 to index
      %214 = arith.index_cast %arg7 : i32 to index
      %c0_149 = arith.constant 0 : index
      %c1_150 = arith.constant 1 : index
      %c0_151 = arith.constant 0 : index
      %c0_152 = arith.constant 0 : index
      %c0_153 = arith.constant 0 : index
      %215 = vector.load %arg2[%213, %214, %c0_149, %c1_150, %c0_151, %c0_152, %c0_153] : memref<8x2x4x4x1x1x16xf32, #tpu.memory_space<vmem>>, vector<1x1x4x1x1x1x16xf32>
      %216 = vector.shape_cast %215 : vector<1x1x4x1x1x1x16xf32> to vector<4x16xf32>
      %217 = arith.subf %216, %212 : vector<4x16xf32>
      %cst_154 = arith.constant 0.666666686 : f32
      %218 = vector.broadcast %cst_154 : f32 to vector<4x16xf32>
      %219 = arith.mulf %217, %218 : vector<4x16xf32>
      %220 = arith.addf %212, %219 : vector<4x16xf32>
      %cst_155 = arith.constant 1.000000e+00 : f32
      %221 = vector.broadcast %cst_155 : f32 to vector<4x16xf32>
      %222 = arith.cmpf oge, %220, %221 : vector<4x16xf32>
      %cst_156 = arith.constant 1.000000e+00 : f32
      %cst_157 = arith.constant 0.000000e+00 : f32
      %223 = vector.broadcast %cst_156 : f32 to vector<4x16xf32>
      %224 = vector.broadcast %cst_157 : f32 to vector<4x16xf32>
      %225 = arith.select %222, %223, %224 : vector<4x16xi1>, vector<4x16xf32>
      %226 = arith.addf %210, %225 : vector<4x16xf32>
      %cst_158 = arith.constant 0.000000e+00 : f32
      %227 = vector.broadcast %cst_158 : f32 to vector<4x16xf32>
      %228 = arith.select %222, %227, %220 : vector<4x16xi1>, vector<4x16xf32>
      %c6_i32_159 = arith.constant 6 : i32
      %229 = arith.index_cast %c6_i32_159 : i32 to index
      %230 = arith.index_cast %arg7 : i32 to index
      %c0_160 = arith.constant 0 : index
      %c1_161 = arith.constant 1 : index
      %c0_162 = arith.constant 0 : index
      %c0_163 = arith.constant 0 : index
      %c0_164 = arith.constant 0 : index
      %231 = vector.load %arg2[%229, %230, %c0_160, %c1_161, %c0_162, %c0_163, %c0_164] : memref<8x2x4x4x1x1x16xf32, #tpu.memory_space<vmem>>, vector<1x1x4x1x1x1x16xf32>
      %232 = vector.shape_cast %231 : vector<1x1x4x1x1x1x16xf32> to vector<4x16xf32>
      %233 = arith.subf %232, %228 : vector<4x16xf32>
      %cst_165 = arith.constant 0.666666686 : f32
      %234 = vector.broadcast %cst_165 : f32 to vector<4x16xf32>
      %235 = arith.mulf %233, %234 : vector<4x16xf32>
      %236 = arith.addf %228, %235 : vector<4x16xf32>
      %cst_166 = arith.constant 1.000000e+00 : f32
      %237 = vector.broadcast %cst_166 : f32 to vector<4x16xf32>
      %238 = arith.cmpf oge, %236, %237 : vector<4x16xf32>
      %cst_167 = arith.constant 1.000000e+00 : f32
      %cst_168 = arith.constant 0.000000e+00 : f32
      %239 = vector.broadcast %cst_167 : f32 to vector<4x16xf32>
      %240 = vector.broadcast %cst_168 : f32 to vector<4x16xf32>
      %241 = arith.select %238, %239, %240 : vector<4x16xi1>, vector<4x16xf32>
      %242 = arith.addf %226, %241 : vector<4x16xf32>
      %cst_169 = arith.constant 0.000000e+00 : f32
      %243 = vector.broadcast %cst_169 : f32 to vector<4x16xf32>
      %244 = arith.select %238, %243, %236 : vector<4x16xi1>, vector<4x16xf32>
      %c7_i32_170 = arith.constant 7 : i32
      %245 = arith.index_cast %c7_i32_170 : i32 to index
      %246 = arith.index_cast %arg7 : i32 to index
      %c0_171 = arith.constant 0 : index
      %c1_172 = arith.constant 1 : index
      %c0_173 = arith.constant 0 : index
      %c0_174 = arith.constant 0 : index
      %c0_175 = arith.constant 0 : index
      %247 = vector.load %arg2[%245, %246, %c0_171, %c1_172, %c0_173, %c0_174, %c0_175] : memref<8x2x4x4x1x1x16xf32, #tpu.memory_space<vmem>>, vector<1x1x4x1x1x1x16xf32>
      %248 = vector.shape_cast %247 : vector<1x1x4x1x1x1x16xf32> to vector<4x16xf32>
      %249 = arith.subf %248, %244 : vector<4x16xf32>
      %cst_176 = arith.constant 0.666666686 : f32
      %250 = vector.broadcast %cst_176 : f32 to vector<4x16xf32>
      %251 = arith.mulf %249, %250 : vector<4x16xf32>
      %252 = arith.addf %244, %251 : vector<4x16xf32>
      %cst_177 = arith.constant 1.000000e+00 : f32
      %253 = vector.broadcast %cst_177 : f32 to vector<4x16xf32>
      %254 = arith.cmpf oge, %252, %253 : vector<4x16xf32>
      %cst_178 = arith.constant 1.000000e+00 : f32
      %cst_179 = arith.constant 0.000000e+00 : f32
      %255 = vector.broadcast %cst_178 : f32 to vector<4x16xf32>
      %256 = vector.broadcast %cst_179 : f32 to vector<4x16xf32>
      %257 = arith.select %254, %255, %256 : vector<4x16xi1>, vector<4x16xf32>
      %258 = arith.addf %242, %257 : vector<4x16xf32>
      %cst_180 = arith.constant 0.000000e+00 : f32
      %259 = vector.broadcast %cst_180 : f32 to vector<4x16xf32>
      %260 = arith.select %254, %259, %252 : vector<4x16xi1>, vector<4x16xf32>
      %c7_i32_181 = arith.constant 7 : i32
      %261 = arith.truncf %258 : vector<4x16xf32> to vector<4x16xbf16>
      %cst_182 = arith.constant dense<0.000000e+00> : vector<4x8xf32>
      %262 = tpu.matmul %261, %1, %cst_182 {dimension_numbers = #tpu.dot_dimension_numbers<[1], [0], [0], [1], [0, 0, 1, 1], [], []>} : vector<4x16xbf16>, vector<16x8xbf16>, vector<4x8xf32> -> vector<4x8xf32>
      %cst_183 = arith.constant dense<0.000000e+00> : vector<8x8xf32>
      %263 = tpu.matmul %0, %262, %cst_183 {dimension_numbers = #tpu.dot_dimension_numbers<[1], [0], [0], [1], [0, 0, 1, 1], [], []>} : vector<8x4xf32>, vector<4x8xf32>, vector<8x8xf32> -> vector<8x8xf32>
      %264 = vector.broadcast %2 : vector<8x1xf32> to vector<8x8xf32>
      %265 = arith.addf %263, %264 : vector<8x8xf32>
      %266 = arith.index_cast %arg7 : i32 to index
      %c1_184 = arith.constant 1 : index
      %c0_185 = arith.constant 0 : index
      %c0_186 = arith.constant 0 : index
      %267 = vector.load %arg6[%266, %c1_184, %c0_185, %c0_186] : memref<2x4x8x8xf32, #tpu.memory_space<vmem>>, vector<1x1x8x8xf32>
      %268 = vector.shape_cast %267 : vector<1x1x8x8xf32> to vector<8x8xf32>
      %269 = vector.shape_cast %265 : vector<8x8xf32> to vector<1x1x8x8xf32>
      tpu.vector_store %arg6[%266, %c1_184, %c0_185, %c0_186], %269 {strides = array<i32>} : memref<2x4x8x8xf32, #tpu.memory_space<vmem>>, vector<1x1x8x8xf32>,
      %c0_187 = arith.constant 0 : index
      %270 = arith.index_cast %arg7 : i32 to index
      %c0_188 = arith.constant 0 : index
      %c2 = arith.constant 2 : index
      %c0_189 = arith.constant 0 : index
      %c0_190 = arith.constant 0 : index
      %c0_191 = arith.constant 0 : index
      %271 = vector.load %arg2[%c0_187, %270, %c0_188, %c2, %c0_189, %c0_190, %c0_191] : memref<8x2x4x4x1x1x16xf32, #tpu.memory_space<vmem>>, vector<1x1x4x1x1x1x16xf32>
      %272 = vector.shape_cast %271 : vector<1x1x4x1x1x1x16xf32> to vector<4x16xf32>
      %cst_192 = arith.constant 0.666666686 : f32
      %273 = vector.broadcast %cst_192 : f32 to vector<4x16xf32>
      %274 = arith.mulf %272, %273 : vector<4x16xf32>
      %cst_193 = arith.constant 1.000000e+00 : f32
      %275 = vector.broadcast %cst_193 : f32 to vector<4x16xf32>
      %276 = arith.cmpf oge, %274, %275 : vector<4x16xf32>
      %cst_194 = arith.constant 1.000000e+00 : f32
      %cst_195 = arith.constant 0.000000e+00 : f32
      %277 = vector.broadcast %cst_194 : f32 to vector<4x16xf32>
      %278 = vector.broadcast %cst_195 : f32 to vector<4x16xf32>
      %279 = arith.select %276, %277, %278 : vector<4x16xi1>, vector<4x16xf32>
      %cst_196 = arith.constant 0.000000e+00 : f32
      %280 = vector.broadcast %cst_196 : f32 to vector<4x16xf32>
      %281 = arith.select %276, %280, %274 : vector<4x16xi1>, vector<4x16xf32>
      %c1_i32_197 = arith.constant 1 : i32
      %282 = arith.index_cast %c1_i32_197 : i32 to index
      %283 = arith.index_cast %arg7 : i32 to index
      %c0_198 = arith.constant 0 : index
      %c2_199 = arith.constant 2 : index
      %c0_200 = arith.constant 0 : index
      %c0_201 = arith.constant 0 : index
      %c0_202 = arith.constant 0 : index
      %284 = vector.load %arg2[%282, %283, %c0_198, %c2_199, %c0_200, %c0_201, %c0_202] : memref<8x2x4x4x1x1x16xf32, #tpu.memory_space<vmem>>, vector<1x1x4x1x1x1x16xf32>
      %285 = vector.shape_cast %284 : vector<1x1x4x1x1x1x16xf32> to vector<4x16xf32>
      %286 = arith.subf %285, %281 : vector<4x16xf32>
      %cst_203 = arith.constant 0.666666686 : f32
      %287 = vector.broadcast %cst_203 : f32 to vector<4x16xf32>
      %288 = arith.mulf %286, %287 : vector<4x16xf32>
      %289 = arith.addf %281, %288 : vector<4x16xf32>
      %cst_204 = arith.constant 1.000000e+00 : f32
      %290 = vector.broadcast %cst_204 : f32 to vector<4x16xf32>
      %291 = arith.cmpf oge, %289, %290 : vector<4x16xf32>
      %cst_205 = arith.constant 1.000000e+00 : f32
      %cst_206 = arith.constant 0.000000e+00 : f32
      %292 = vector.broadcast %cst_205 : f32 to vector<4x16xf32>
      %293 = vector.broadcast %cst_206 : f32 to vector<4x16xf32>
      %294 = arith.select %291, %292, %293 : vector<4x16xi1>, vector<4x16xf32>
      %295 = arith.addf %279, %294 : vector<4x16xf32>
      %cst_207 = arith.constant 0.000000e+00 : f32
      %296 = vector.broadcast %cst_207 : f32 to vector<4x16xf32>
      %297 = arith.select %291, %296, %289 : vector<4x16xi1>, vector<4x16xf32>
      %c2_i32_208 = arith.constant 2 : i32
      %298 = arith.index_cast %c2_i32_208 : i32 to index
      %299 = arith.index_cast %arg7 : i32 to index
      %c0_209 = arith.constant 0 : index
      %c2_210 = arith.constant 2 : index
      %c0_211 = arith.constant 0 : index
      %c0_212 = arith.constant 0 : index
      %c0_213 = arith.constant 0 : index
      %300 = vector.load %arg2[%298, %299, %c0_209, %c2_210, %c0_211, %c0_212, %c0_213] : memref<8x2x4x4x1x1x16xf32, #tpu.memory_space<vmem>>, vector<1x1x4x1x1x1x16xf32>
      %301 = vector.shape_cast %300 : vector<1x1x4x1x1x1x16xf32> to vector<4x16xf32>
      %302 = arith.subf %301, %297 : vector<4x16xf32>
      %cst_214 = arith.constant 0.666666686 : f32
      %303 = vector.broadcast %cst_214 : f32 to vector<4x16xf32>
      %304 = arith.mulf %302, %303 : vector<4x16xf32>
      %305 = arith.addf %297, %304 : vector<4x16xf32>
      %cst_215 = arith.constant 1.000000e+00 : f32
      %306 = vector.broadcast %cst_215 : f32 to vector<4x16xf32>
      %307 = arith.cmpf oge, %305, %306 : vector<4x16xf32>
      %cst_216 = arith.constant 1.000000e+00 : f32
      %cst_217 = arith.constant 0.000000e+00 : f32
      %308 = vector.broadcast %cst_216 : f32 to vector<4x16xf32>
      %309 = vector.broadcast %cst_217 : f32 to vector<4x16xf32>
      %310 = arith.select %307, %308, %309 : vector<4x16xi1>, vector<4x16xf32>
      %311 = arith.addf %295, %310 : vector<4x16xf32>
      %cst_218 = arith.constant 0.000000e+00 : f32
      %312 = vector.broadcast %cst_218 : f32 to vector<4x16xf32>
      %313 = arith.select %307, %312, %305 : vector<4x16xi1>, vector<4x16xf32>
      %c3_i32_219 = arith.constant 3 : i32
      %314 = arith.index_cast %c3_i32_219 : i32 to index
      %315 = arith.index_cast %arg7 : i32 to index
      %c0_220 = arith.constant 0 : index
      %c2_221 = arith.constant 2 : index
      %c0_222 = arith.constant 0 : index
      %c0_223 = arith.constant 0 : index
      %c0_224 = arith.constant 0 : index
      %316 = vector.load %arg2[%314, %315, %c0_220, %c2_221, %c0_222, %c0_223, %c0_224] : memref<8x2x4x4x1x1x16xf32, #tpu.memory_space<vmem>>, vector<1x1x4x1x1x1x16xf32>
      %317 = vector.shape_cast %316 : vector<1x1x4x1x1x1x16xf32> to vector<4x16xf32>
      %318 = arith.subf %317, %313 : vector<4x16xf32>
      %cst_225 = arith.constant 0.666666686 : f32
      %319 = vector.broadcast %cst_225 : f32 to vector<4x16xf32>
      %320 = arith.mulf %318, %319 : vector<4x16xf32>
      %321 = arith.addf %313, %320 : vector<4x16xf32>
      %cst_226 = arith.constant 1.000000e+00 : f32
      %322 = vector.broadcast %cst_226 : f32 to vector<4x16xf32>
      %323 = arith.cmpf oge, %321, %322 : vector<4x16xf32>
      %cst_227 = arith.constant 1.000000e+00 : f32
      %cst_228 = arith.constant 0.000000e+00 : f32
      %324 = vector.broadcast %cst_227 : f32 to vector<4x16xf32>
      %325 = vector.broadcast %cst_228 : f32 to vector<4x16xf32>
      %326 = arith.select %323, %324, %325 : vector<4x16xi1>, vector<4x16xf32>
      %327 = arith.addf %311, %326 : vector<4x16xf32>
      %cst_229 = arith.constant 0.000000e+00 : f32
      %328 = vector.broadcast %cst_229 : f32 to vector<4x16xf32>
      %329 = arith.select %323, %328, %321 : vector<4x16xi1>, vector<4x16xf32>
      %c4_i32_230 = arith.constant 4 : i32
      %330 = arith.index_cast %c4_i32_230 : i32 to index
      %331 = arith.index_cast %arg7 : i32 to index
      %c0_231 = arith.constant 0 : index
      %c2_232 = arith.constant 2 : index
      %c0_233 = arith.constant 0 : index
      %c0_234 = arith.constant 0 : index
      %c0_235 = arith.constant 0 : index
      %332 = vector.load %arg2[%330, %331, %c0_231, %c2_232, %c0_233, %c0_234, %c0_235] : memref<8x2x4x4x1x1x16xf32, #tpu.memory_space<vmem>>, vector<1x1x4x1x1x1x16xf32>
      %333 = vector.shape_cast %332 : vector<1x1x4x1x1x1x16xf32> to vector<4x16xf32>
      %334 = arith.subf %333, %329 : vector<4x16xf32>
      %cst_236 = arith.constant 0.666666686 : f32
      %335 = vector.broadcast %cst_236 : f32 to vector<4x16xf32>
      %336 = arith.mulf %334, %335 : vector<4x16xf32>
      %337 = arith.addf %329, %336 : vector<4x16xf32>
      %cst_237 = arith.constant 1.000000e+00 : f32
      %338 = vector.broadcast %cst_237 : f32 to vector<4x16xf32>
      %339 = arith.cmpf oge, %337, %338 : vector<4x16xf32>
      %cst_238 = arith.constant 1.000000e+00 : f32
      %cst_239 = arith.constant 0.000000e+00 : f32
      %340 = vector.broadcast %cst_238 : f32 to vector<4x16xf32>
      %341 = vector.broadcast %cst_239 : f32 to vector<4x16xf32>
      %342 = arith.select %339, %340, %341 : vector<4x16xi1>, vector<4x16xf32>
      %343 = arith.addf %327, %342 : vector<4x16xf32>
      %cst_240 = arith.constant 0.000000e+00 : f32
      %344 = vector.broadcast %cst_240 : f32 to vector<4x16xf32>
      %345 = arith.select %339, %344, %337 : vector<4x16xi1>, vector<4x16xf32>
      %c5_i32_241 = arith.constant 5 : i32
      %346 = arith.index_cast %c5_i32_241 : i32 to index
      %347 = arith.index_cast %arg7 : i32 to index
      %c0_242 = arith.constant 0 : index
      %c2_243 = arith.constant 2 : index
      %c0_244 = arith.constant 0 : index
      %c0_245 = arith.constant 0 : index
      %c0_246 = arith.constant 0 : index
      %348 = vector.load %arg2[%346, %347, %c0_242, %c2_243, %c0_244, %c0_245, %c0_246] : memref<8x2x4x4x1x1x16xf32, #tpu.memory_space<vmem>>, vector<1x1x4x1x1x1x16xf32>
      %349 = vector.shape_cast %348 : vector<1x1x4x1x1x1x16xf32> to vector<4x16xf32>
      %350 = arith.subf %349, %345 : vector<4x16xf32>
      %cst_247 = arith.constant 0.666666686 : f32
      %351 = vector.broadcast %cst_247 : f32 to vector<4x16xf32>
      %352 = arith.mulf %350, %351 : vector<4x16xf32>
      %353 = arith.addf %345, %352 : vector<4x16xf32>
      %cst_248 = arith.constant 1.000000e+00 : f32
      %354 = vector.broadcast %cst_248 : f32 to vector<4x16xf32>
      %355 = arith.cmpf oge, %353, %354 : vector<4x16xf32>
      %cst_249 = arith.constant 1.000000e+00 : f32
      %cst_250 = arith.constant 0.000000e+00 : f32
      %356 = vector.broadcast %cst_249 : f32 to vector<4x16xf32>
      %357 = vector.broadcast %cst_250 : f32 to vector<4x16xf32>
      %358 = arith.select %355, %356, %357 : vector<4x16xi1>, vector<4x16xf32>
      %359 = arith.addf %343, %358 : vector<4x16xf32>
      %cst_251 = arith.constant 0.000000e+00 : f32
      %360 = vector.broadcast %cst_251 : f32 to vector<4x16xf32>
      %361 = arith.select %355, %360, %353 : vector<4x16xi1>, vector<4x16xf32>
      %c6_i32_252 = arith.constant 6 : i32
      %362 = arith.index_cast %c6_i32_252 : i32 to index
      %363 = arith.index_cast %arg7 : i32 to index
      %c0_253 = arith.constant 0 : index
      %c2_254 = arith.constant 2 : index
      %c0_255 = arith.constant 0 : index
      %c0_256 = arith.constant 0 : index
      %c0_257 = arith.constant 0 : index
      %364 = vector.load %arg2[%362, %363, %c0_253, %c2_254, %c0_255, %c0_256, %c0_257] : memref<8x2x4x4x1x1x16xf32, #tpu.memory_space<vmem>>, vector<1x1x4x1x1x1x16xf32>
      %365 = vector.shape_cast %364 : vector<1x1x4x1x1x1x16xf32> to vector<4x16xf32>
      %366 = arith.subf %365, %361 : vector<4x16xf32>
      %cst_258 = arith.constant 0.666666686 : f32
      %367 = vector.broadcast %cst_258 : f32 to vector<4x16xf32>
      %368 = arith.mulf %366, %367 : vector<4x16xf32>
      %369 = arith.addf %361, %368 : vector<4x16xf32>
      %cst_259 = arith.constant 1.000000e+00 : f32
      %370 = vector.broadcast %cst_259 : f32 to vector<4x16xf32>
      %371 = arith.cmpf oge, %369, %370 : vector<4x16xf32>
      %cst_260 = arith.constant 1.000000e+00 : f32
      %cst_261 = arith.constant 0.000000e+00 : f32
      %372 = vector.broadcast %cst_260 : f32 to vector<4x16xf32>
      %373 = vector.broadcast %cst_261 : f32 to vector<4x16xf32>
      %374 = arith.select %371, %372, %373 : vector<4x16xi1>, vector<4x16xf32>
      %375 = arith.addf %359, %374 : vector<4x16xf32>
      %cst_262 = arith.constant 0.000000e+00 : f32
      %376 = vector.broadcast %cst_262 : f32 to vector<4x16xf32>
      %377 = arith.select %371, %376, %369 : vector<4x16xi1>, vector<4x16xf32>
      %c7_i32_263 = arith.constant 7 : i32
      %378 = arith.index_cast %c7_i32_263 : i32 to index
      %379 = arith.index_cast %arg7 : i32 to index
      %c0_264 = arith.constant 0 : index
      %c2_265 = arith.constant 2 : index
      %c0_266 = arith.constant 0 : index
      %c0_267 = arith.constant 0 : index
      %c0_268 = arith.constant 0 : index
      %380 = vector.load %arg2[%378, %379, %c0_264, %c2_265, %c0_266, %c0_267, %c0_268] : memref<8x2x4x4x1x1x16xf32, #tpu.memory_space<vmem>>, vector<1x1x4x1x1x1x16xf32>
      %381 = vector.shape_cast %380 : vector<1x1x4x1x1x1x16xf32> to vector<4x16xf32>
      %382 = arith.subf %381, %377 : vector<4x16xf32>
      %cst_269 = arith.constant 0.666666686 : f32
      %383 = vector.broadcast %cst_269 : f32 to vector<4x16xf32>
      %384 = arith.mulf %382, %383 : vector<4x16xf32>
      %385 = arith.addf %377, %384 : vector<4x16xf32>
      %cst_270 = arith.constant 1.000000e+00 : f32
      %386 = vector.broadcast %cst_270 : f32 to vector<4x16xf32>
      %387 = arith.cmpf oge, %385, %386 : vector<4x16xf32>
      %cst_271 = arith.constant 1.000000e+00 : f32
      %cst_272 = arith.constant 0.000000e+00 : f32
      %388 = vector.broadcast %cst_271 : f32 to vector<4x16xf32>
      %389 = vector.broadcast %cst_272 : f32 to vector<4x16xf32>
      %390 = arith.select %387, %388, %389 : vector<4x16xi1>, vector<4x16xf32>
      %391 = arith.addf %375, %390 : vector<4x16xf32>
      %cst_273 = arith.constant 0.000000e+00 : f32
      %392 = vector.broadcast %cst_273 : f32 to vector<4x16xf32>
      %393 = arith.select %387, %392, %385 : vector<4x16xi1>, vector<4x16xf32>
      %c7_i32_274 = arith.constant 7 : i32
      %394 = arith.truncf %391 : vector<4x16xf32> to vector<4x16xbf16>
      %cst_275 = arith.constant dense<0.000000e+00> : vector<4x8xf32>
      %395 = tpu.matmul %394, %1, %cst_275 {dimension_numbers = #tpu.dot_dimension_numbers<[1], [0], [0], [1], [0, 0, 1, 1], [], []>} : vector<4x16xbf16>, vector<16x8xbf16>, vector<4x8xf32> -> vector<4x8xf32>
      %cst_276 = arith.constant dense<0.000000e+00> : vector<8x8xf32>
      %396 = tpu.matmul %0, %395, %cst_276 {dimension_numbers = #tpu.dot_dimension_numbers<[1], [0], [0], [1], [0, 0, 1, 1], [], []>} : vector<8x4xf32>, vector<4x8xf32>, vector<8x8xf32> -> vector<8x8xf32>
      %397 = vector.broadcast %2 : vector<8x1xf32> to vector<8x8xf32>
      %398 = arith.addf %396, %397 : vector<8x8xf32>
      %399 = arith.index_cast %arg7 : i32 to index
      %c2_277 = arith.constant 2 : index
      %c0_278 = arith.constant 0 : index
      %c0_279 = arith.constant 0 : index
      %400 = vector.load %arg6[%399, %c2_277, %c0_278, %c0_279] : memref<2x4x8x8xf32, #tpu.memory_space<vmem>>, vector<1x1x8x8xf32>
      %401 = vector.shape_cast %400 : vector<1x1x8x8xf32> to vector<8x8xf32>
      %402 = vector.shape_cast %398 : vector<8x8xf32> to vector<1x1x8x8xf32>
      tpu.vector_store %arg6[%399, %c2_277, %c0_278, %c0_279], %402 {strides = array<i32>} : memref<2x4x8x8xf32, #tpu.memory_space<vmem>>, vector<1x1x8x8xf32>,
      %c0_280 = arith.constant 0 : index
      %403 = arith.index_cast %arg7 : i32 to index
      %c0_281 = arith.constant 0 : index
      %c3 = arith.constant 3 : index
      %c0_282 = arith.constant 0 : index
      %c0_283 = arith.constant 0 : index
      %c0_284 = arith.constant 0 : index
      %404 = vector.load %arg2[%c0_280, %403, %c0_281, %c3, %c0_282, %c0_283, %c0_284] : memref<8x2x4x4x1x1x16xf32, #tpu.memory_space<vmem>>, vector<1x1x4x1x1x1x16xf32>
      %405 = vector.shape_cast %404 : vector<1x1x4x1x1x1x16xf32> to vector<4x16xf32>
      %cst_285 = arith.constant 0.666666686 : f32
      %406 = vector.broadcast %cst_285 : f32 to vector<4x16xf32>
      %407 = arith.mulf %405, %406 : vector<4x16xf32>
      %cst_286 = arith.constant 1.000000e+00 : f32
      %408 = vector.broadcast %cst_286 : f32 to vector<4x16xf32>
      %409 = arith.cmpf oge, %407, %408 : vector<4x16xf32>
      %cst_287 = arith.constant 1.000000e+00 : f32
      %cst_288 = arith.constant 0.000000e+00 : f32
      %410 = vector.broadcast %cst_287 : f32 to vector<4x16xf32>
      %411 = vector.broadcast %cst_288 : f32 to vector<4x16xf32>
      %412 = arith.select %409, %410, %411 : vector<4x16xi1>, vector<4x16xf32>
      %cst_289 = arith.constant 0.000000e+00 : f32
      %413 = vector.broadcast %cst_289 : f32 to vector<4x16xf32>
      %414 = arith.select %409, %413, %407 : vector<4x16xi1>, vector<4x16xf32>
      %c1_i32_290 = arith.constant 1 : i32
      %415 = arith.index_cast %c1_i32_290 : i32 to index
      %416 = arith.index_cast %arg7 : i32 to index
      %c0_291 = arith.constant 0 : index
      %c3_292 = arith.constant 3 : index
      %c0_293 = arith.constant 0 : index
      %c0_294 = arith.constant 0 : index
      %c0_295 = arith.constant 0 : index
      %417 = vector.load %arg2[%415, %416, %c0_291, %c3_292, %c0_293, %c0_294, %c0_295] : memref<8x2x4x4x1x1x16xf32, #tpu.memory_space<vmem>>, vector<1x1x4x1x1x1x16xf32>
      %418 = vector.shape_cast %417 : vector<1x1x4x1x1x1x16xf32> to vector<4x16xf32>
      %419 = arith.subf %418, %414 : vector<4x16xf32>
      %cst_296 = arith.constant 0.666666686 : f32
      %420 = vector.broadcast %cst_296 : f32 to vector<4x16xf32>
      %421 = arith.mulf %419, %420 : vector<4x16xf32>
      %422 = arith.addf %414, %421 : vector<4x16xf32>
      %cst_297 = arith.constant 1.000000e+00 : f32
      %423 = vector.broadcast %cst_297 : f32 to vector<4x16xf32>
      %424 = arith.cmpf oge, %422, %423 : vector<4x16xf32>
      %cst_298 = arith.constant 1.000000e+00 : f32
      %cst_299 = arith.constant 0.000000e+00 : f32
      %425 = vector.broadcast %cst_298 : f32 to vector<4x16xf32>
      %426 = vector.broadcast %cst_299 : f32 to vector<4x16xf32>
      %427 = arith.select %424, %425, %426 : vector<4x16xi1>, vector<4x16xf32>
      %428 = arith.addf %412, %427 : vector<4x16xf32>
      %cst_300 = arith.constant 0.000000e+00 : f32
      %429 = vector.broadcast %cst_300 : f32 to vector<4x16xf32>
      %430 = arith.select %424, %429, %422 : vector<4x16xi1>, vector<4x16xf32>
      %c2_i32_301 = arith.constant 2 : i32
      %431 = arith.index_cast %c2_i32_301 : i32 to index
      %432 = arith.index_cast %arg7 : i32 to index
      %c0_302 = arith.constant 0 : index
      %c3_303 = arith.constant 3 : index
      %c0_304 = arith.constant 0 : index
      %c0_305 = arith.constant 0 : index
      %c0_306 = arith.constant 0 : index
      %433 = vector.load %arg2[%431, %432, %c0_302, %c3_303, %c0_304, %c0_305, %c0_306] : memref<8x2x4x4x1x1x16xf32, #tpu.memory_space<vmem>>, vector<1x1x4x1x1x1x16xf32>
      %434 = vector.shape_cast %433 : vector<1x1x4x1x1x1x16xf32> to vector<4x16xf32>
      %435 = arith.subf %434, %430 : vector<4x16xf32>
      %cst_307 = arith.constant 0.666666686 : f32
      %436 = vector.broadcast %cst_307 : f32 to vector<4x16xf32>
      %437 = arith.mulf %435, %436 : vector<4x16xf32>
      %438 = arith.addf %430, %437 : vector<4x16xf32>
      %cst_308 = arith.constant 1.000000e+00 : f32
      %439 = vector.broadcast %cst_308 : f32 to vector<4x16xf32>
      %440 = arith.cmpf oge, %438, %439 : vector<4x16xf32>
      %cst_309 = arith.constant 1.000000e+00 : f32
      %cst_310 = arith.constant 0.000000e+00 : f32
      %441 = vector.broadcast %cst_309 : f32 to vector<4x16xf32>
      %442 = vector.broadcast %cst_310 : f32 to vector<4x16xf32>
      %443 = arith.select %440, %441, %442 : vector<4x16xi1>, vector<4x16xf32>
      %444 = arith.addf %428, %443 : vector<4x16xf32>
      %cst_311 = arith.constant 0.000000e+00 : f32
      %445 = vector.broadcast %cst_311 : f32 to vector<4x16xf32>
      %446 = arith.select %440, %445, %438 : vector<4x16xi1>, vector<4x16xf32>
      %c3_i32_312 = arith.constant 3 : i32
      %447 = arith.index_cast %c3_i32_312 : i32 to index
      %448 = arith.index_cast %arg7 : i32 to index
      %c0_313 = arith.constant 0 : index
      %c3_314 = arith.constant 3 : index
      %c0_315 = arith.constant 0 : index
      %c0_316 = arith.constant 0 : index
      %c0_317 = arith.constant 0 : index
      %449 = vector.load %arg2[%447, %448, %c0_313, %c3_314, %c0_315, %c0_316, %c0_317] : memref<8x2x4x4x1x1x16xf32, #tpu.memory_space<vmem>>, vector<1x1x4x1x1x1x16xf32>
      %450 = vector.shape_cast %449 : vector<1x1x4x1x1x1x16xf32> to vector<4x16xf32>
      %451 = arith.subf %450, %446 : vector<4x16xf32>
      %cst_318 = arith.constant 0.666666686 : f32
      %452 = vector.broadcast %cst_318 : f32 to vector<4x16xf32>
      %453 = arith.mulf %451, %452 : vector<4x16xf32>
      %454 = arith.addf %446, %453 : vector<4x16xf32>
      %cst_319 = arith.constant 1.000000e+00 : f32
      %455 = vector.broadcast %cst_319 : f32 to vector<4x16xf32>
      %456 = arith.cmpf oge, %454, %455 : vector<4x16xf32>
      %cst_320 = arith.constant 1.000000e+00 : f32
      %cst_321 = arith.constant 0.000000e+00 : f32
      %457 = vector.broadcast %cst_320 : f32 to vector<4x16xf32>
      %458 = vector.broadcast %cst_321 : f32 to vector<4x16xf32>
      %459 = arith.select %456, %457, %458 : vector<4x16xi1>, vector<4x16xf32>
      %460 = arith.addf %444, %459 : vector<4x16xf32>
      %cst_322 = arith.constant 0.000000e+00 : f32
      %461 = vector.broadcast %cst_322 : f32 to vector<4x16xf32>
      %462 = arith.select %456, %461, %454 : vector<4x16xi1>, vector<4x16xf32>
      %c4_i32_323 = arith.constant 4 : i32
      %463 = arith.index_cast %c4_i32_323 : i32 to index
      %464 = arith.index_cast %arg7 : i32 to index
      %c0_324 = arith.constant 0 : index
      %c3_325 = arith.constant 3 : index
      %c0_326 = arith.constant 0 : index
      %c0_327 = arith.constant 0 : index
      %c0_328 = arith.constant 0 : index
      %465 = vector.load %arg2[%463, %464, %c0_324, %c3_325, %c0_326, %c0_327, %c0_328] : memref<8x2x4x4x1x1x16xf32, #tpu.memory_space<vmem>>, vector<1x1x4x1x1x1x16xf32>
      %466 = vector.shape_cast %465 : vector<1x1x4x1x1x1x16xf32> to vector<4x16xf32>
      %467 = arith.subf %466, %462 : vector<4x16xf32>
      %cst_329 = arith.constant 0.666666686 : f32
      %468 = vector.broadcast %cst_329 : f32 to vector<4x16xf32>
      %469 = arith.mulf %467, %468 : vector<4x16xf32>
      %470 = arith.addf %462, %469 : vector<4x16xf32>
      %cst_330 = arith.constant 1.000000e+00 : f32
      %471 = vector.broadcast %cst_330 : f32 to vector<4x16xf32>
      %472 = arith.cmpf oge, %470, %471 : vector<4x16xf32>
      %cst_331 = arith.constant 1.000000e+00 : f32
      %cst_332 = arith.constant 0.000000e+00 : f32
      %473 = vector.broadcast %cst_331 : f32 to vector<4x16xf32>
      %474 = vector.broadcast %cst_332 : f32 to vector<4x16xf32>
      %475 = arith.select %472, %473, %474 : vector<4x16xi1>, vector<4x16xf32>
      %476 = arith.addf %460, %475 : vector<4x16xf32>
      %cst_333 = arith.constant 0.000000e+00 : f32
      %477 = vector.broadcast %cst_333 : f32 to vector<4x16xf32>
      %478 = arith.select %472, %477, %470 : vector<4x16xi1>, vector<4x16xf32>
      %c5_i32_334 = arith.constant 5 : i32
      %479 = arith.index_cast %c5_i32_334 : i32 to index
      %480 = arith.index_cast %arg7 : i32 to index
      %c0_335 = arith.constant 0 : index
      %c3_336 = arith.constant 3 : index
      %c0_337 = arith.constant 0 : index
      %c0_338 = arith.constant 0 : index
      %c0_339 = arith.constant 0 : index
      %481 = vector.load %arg2[%479, %480, %c0_335, %c3_336, %c0_337, %c0_338, %c0_339] : memref<8x2x4x4x1x1x16xf32, #tpu.memory_space<vmem>>, vector<1x1x4x1x1x1x16xf32>
      %482 = vector.shape_cast %481 : vector<1x1x4x1x1x1x16xf32> to vector<4x16xf32>
      %483 = arith.subf %482, %478 : vector<4x16xf32>
      %cst_340 = arith.constant 0.666666686 : f32
      %484 = vector.broadcast %cst_340 : f32 to vector<4x16xf32>
      %485 = arith.mulf %483, %484 : vector<4x16xf32>
      %486 = arith.addf %478, %485 : vector<4x16xf32>
      %cst_341 = arith.constant 1.000000e+00 : f32
      %487 = vector.broadcast %cst_341 : f32 to vector<4x16xf32>
      %488 = arith.cmpf oge, %486, %487 : vector<4x16xf32>
      %cst_342 = arith.constant 1.000000e+00 : f32
      %cst_343 = arith.constant 0.000000e+00 : f32
      %489 = vector.broadcast %cst_342 : f32 to vector<4x16xf32>
      %490 = vector.broadcast %cst_343 : f32 to vector<4x16xf32>
      %491 = arith.select %488, %489, %490 : vector<4x16xi1>, vector<4x16xf32>
      %492 = arith.addf %476, %491 : vector<4x16xf32>
      %cst_344 = arith.constant 0.000000e+00 : f32
      %493 = vector.broadcast %cst_344 : f32 to vector<4x16xf32>
      %494 = arith.select %488, %493, %486 : vector<4x16xi1>, vector<4x16xf32>
      %c6_i32_345 = arith.constant 6 : i32
      %495 = arith.index_cast %c6_i32_345 : i32 to index
      %496 = arith.index_cast %arg7 : i32 to index
      %c0_346 = arith.constant 0 : index
      %c3_347 = arith.constant 3 : index
      %c0_348 = arith.constant 0 : index
      %c0_349 = arith.constant 0 : index
      %c0_350 = arith.constant 0 : index
      %497 = vector.load %arg2[%495, %496, %c0_346, %c3_347, %c0_348, %c0_349, %c0_350] : memref<8x2x4x4x1x1x16xf32, #tpu.memory_space<vmem>>, vector<1x1x4x1x1x1x16xf32>
      %498 = vector.shape_cast %497 : vector<1x1x4x1x1x1x16xf32> to vector<4x16xf32>
      %499 = arith.subf %498, %494 : vector<4x16xf32>
      %cst_351 = arith.constant 0.666666686 : f32
      %500 = vector.broadcast %cst_351 : f32 to vector<4x16xf32>
      %501 = arith.mulf %499, %500 : vector<4x16xf32>
      %502 = arith.addf %494, %501 : vector<4x16xf32>
      %cst_352 = arith.constant 1.000000e+00 : f32
      %503 = vector.broadcast %cst_352 : f32 to vector<4x16xf32>
      %504 = arith.cmpf oge, %502, %503 : vector<4x16xf32>
      %cst_353 = arith.constant 1.000000e+00 : f32
      %cst_354 = arith.constant 0.000000e+00 : f32
      %505 = vector.broadcast %cst_353 : f32 to vector<4x16xf32>
      %506 = vector.broadcast %cst_354 : f32 to vector<4x16xf32>
      %507 = arith.select %504, %505, %506 : vector<4x16xi1>, vector<4x16xf32>
      %508 = arith.addf %492, %507 : vector<4x16xf32>
      %cst_355 = arith.constant 0.000000e+00 : f32
      %509 = vector.broadcast %cst_355 : f32 to vector<4x16xf32>
      %510 = arith.select %504, %509, %502 : vector<4x16xi1>, vector<4x16xf32>
      %c7_i32_356 = arith.constant 7 : i32
      %511 = arith.index_cast %c7_i32_356 : i32 to index
      %512 = arith.index_cast %arg7 : i32 to index
      %c0_357 = arith.constant 0 : index
      %c3_358 = arith.constant 3 : index
      %c0_359 = arith.constant 0 : index
      %c0_360 = arith.constant 0 : index
      %c0_361 = arith.constant 0 : index
      %513 = vector.load %arg2[%511, %512, %c0_357, %c3_358, %c0_359, %c0_360, %c0_361] : memref<8x2x4x4x1x1x16xf32, #tpu.memory_space<vmem>>, vector<1x1x4x1x1x1x16xf32>
      %514 = vector.shape_cast %513 : vector<1x1x4x1x1x1x16xf32> to vector<4x16xf32>
      %515 = arith.subf %514, %510 : vector<4x16xf32>
      %cst_362 = arith.constant 0.666666686 : f32
      %516 = vector.broadcast %cst_362 : f32 to vector<4x16xf32>
      %517 = arith.mulf %515, %516 : vector<4x16xf32>
      %518 = arith.addf %510, %517 : vector<4x16xf32>
      %cst_363 = arith.constant 1.000000e+00 : f32
      %519 = vector.broadcast %cst_363 : f32 to vector<4x16xf32>
      %520 = arith.cmpf oge, %518, %519 : vector<4x16xf32>
      %cst_364 = arith.constant 1.000000e+00 : f32
      %cst_365 = arith.constant 0.000000e+00 : f32
      %521 = vector.broadcast %cst_364 : f32 to vector<4x16xf32>
      %522 = vector.broadcast %cst_365 : f32 to vector<4x16xf32>
      %523 = arith.select %520, %521, %522 : vector<4x16xi1>, vector<4x16xf32>
      %524 = arith.addf %508, %523 : vector<4x16xf32>
      %cst_366 = arith.constant 0.000000e+00 : f32
      %525 = vector.broadcast %cst_366 : f32 to vector<4x16xf32>
      %526 = arith.select %520, %525, %518 : vector<4x16xi1>, vector<4x16xf32>
      %c7_i32_367 = arith.constant 7 : i32
      %527 = arith.truncf %524 : vector<4x16xf32> to vector<4x16xbf16>
      %cst_368 = arith.constant dense<0.000000e+00> : vector<4x8xf32>
      %528 = tpu.matmul %527, %1, %cst_368 {dimension_numbers = #tpu.dot_dimension_numbers<[1], [0], [0], [1], [0, 0, 1, 1], [], []>} : vector<4x16xbf16>, vector<16x8xbf16>, vector<4x8xf32> -> vector<4x8xf32>
      %cst_369 = arith.constant dense<0.000000e+00> : vector<8x8xf32>
      %529 = tpu.matmul %0, %528, %cst_369 {dimension_numbers = #tpu.dot_dimension_numbers<[1], [0], [0], [1], [0, 0, 1, 1], [], []>} : vector<8x4xf32>, vector<4x8xf32>, vector<8x8xf32> -> vector<8x8xf32>
      %530 = vector.broadcast %2 : vector<8x1xf32> to vector<8x8xf32>
      %531 = arith.addf %529, %530 : vector<8x8xf32>
      %532 = arith.index_cast %arg7 : i32 to index
      %c3_370 = arith.constant 3 : index
      %c0_371 = arith.constant 0 : index
      %c0_372 = arith.constant 0 : index
      %533 = vector.load %arg6[%532, %c3_370, %c0_371, %c0_372] : memref<2x4x8x8xf32, #tpu.memory_space<vmem>>, vector<1x1x8x8xf32>
      %534 = vector.shape_cast %533 : vector<1x1x8x8xf32> to vector<8x8xf32>
      %535 = vector.shape_cast %531 : vector<8x8xf32> to vector<1x1x8x8xf32>
      tpu.vector_store %arg6[%532, %c3_370, %c0_371, %c0_372], %535 {strides = array<i32>} : memref<2x4x8x8xf32, #tpu.memory_space<vmem>>, vector<1x1x8x8xf32>,
    }
    %c2_i32_5 = arith.constant 2 : i32
    return
  }
  func.func @transform_0(%arg0: i32, %arg1: i32) -> (i32, i32, i32, i32, i32, i32, i32) {
    %c0_i32 = arith.constant 0 : i32
    %c0_i32_0 = arith.constant 0 : i32
    %c0_i32_1 = arith.constant 0 : i32
    %c0_i32_2 = arith.constant 0 : i32
    %c0_i32_3 = arith.constant 0 : i32
    %c0_i32_4 = arith.constant 0 : i32
    return %c0_i32, %arg0, %c0_i32_0, %arg1, %c0_i32_1, %c0_i32_2, %c0_i32_3 : i32, i32, i32, i32, i32, i32, i32
  }
  func.func @transform_1(%arg0: i32, %arg1: i32) -> (i32, i32) {
    %c0_i32 = arith.constant 0 : i32
    %c0_i32_0 = arith.constant 0 : i32
    %c0_i32_1 = arith.constant 0 : i32
    return %c0_i32, %c0_i32_0 : i32, i32
  }
  func.func @transform_2(%arg0: i32, %arg1: i32) -> (i32, i32) {
    %c0_i32 = arith.constant 0 : i32
    %c0_i32_0 = arith.constant 0 : i32
    %c0_i32_1 = arith.constant 0 : i32
    return %c0_i32, %c0_i32_0 : i32, i32
  }
  func.func @transform_3(%arg0: i32, %arg1: i32) -> (i32, i32) {
    %c0_i32 = arith.constant 0 : i32
    %c0_i32_0 = arith.constant 0 : i32
    %c0_i32_1 = arith.constant 0 : i32
    return %c0_i32, %c0_i32_0 : i32, i32
  }
  func.func @transform_4(%arg0: i32, %arg1: i32) -> (i32, i32, i32, i32) {
    %c0_i32 = arith.constant 0 : i32
    %c0_i32_0 = arith.constant 0 : i32
    %c0_i32_1 = arith.constant 0 : i32
    return %arg0, %arg1, %c0_i32, %c0_i32_0 : i32, i32, i32, i32
  }
}

</mosaic_0001>

<llo_original>
// kernel: downsample_module_forward.1
$region0: #{downsample_module_forward.1}
  #allocation0 [shape = 'u32[]', space=smem, size = 0x4, offset = 0x4, fixed_abs, tag = 'smem constant byte address 0x4 - core index']
  #allocation1 [shape = 'u32[144,128]{1,0:T(1,128)}', space=vmem, size = 0x12000, scoped, tag = 'internal scratch']
  %s0 = inlined_call_operand.vmem [shape: f32[8,2,4,8,2,1,16], index: 0, kind: input, shape index: {}]
  %s1 = inlined_call_operand.vmem [shape: f32[8,4], index: 1, kind: input, shape index: {}]
  %s2 = inlined_call_operand.vmem [shape: bf16[16,8], index: 2, kind: input, shape index: {}]
  %s3 = inlined_call_operand.vmem [shape: f32[8,1], index: 3, kind: input, shape index: {}]
  %s4 = inlined_call_operand.vmem [shape: f32[2,8,8,8], index: 4, kind: output, shape index: {}]
  %s5 = sld [smem:[#allocation0]]
  $region131: #{downsample_module_forward.1} parent=0
    _
  %s7 = ssub.s32 1, %s5
  %s8 = scalar_select 0, %s7, %s5
  $region1: #{downsample_module_forward.1} parent=0
    #allocation2 [shape = 'u8[262144]{0}', space=vmem, size = 0x40000, scoped, tag = 'input window, operand 0']
    #allocation3 [shape = 'u8[65536]{0}', space=vmem, size = 0x10000, scoped, tag = 'output window, operand 0']
    loop: start=0, step=1, limit=4
    $region2: #{downsample_module_forward.1} parent=1 // loop_pre_header
      _
    $region3: #{downsample_module_forward.1} parent=1 // loop_header
      %s10 = sphi 0, %s14
      %p11 = scmp.ge.s32.totalorder %s10, 4
      %s17 = sphi 0, %s29
      %s18 = sphi 0, %s25
      %s19 = sphi 0, %s17
      %s20 = sphi 0, %s18
      %s21 = sphi 0, %s19
      %s22 = sphi 0, %s20
      %s34 = sphi 0, %s36
      %s37 = sphi 0, %s34
      %s38 = sphi 0, %s37
      %s54 = sphi 0, %s38
      %s58 = sphi 0, %s58
      %s60 = sphi 0, %s58
      %s61 = sphi 0, %s60
      %s75 = sphi 0, %s61
      %s79 = sphi 0, %s79
      %s81 = sphi 0, %s79
      %s82 = sphi 0, %s81
      %s96 = sphi 0, %s82
      %s100 = sphi 0, %s100
      %s102 = sphi 0, %s100
      %s103 = sphi 0, %s102
      %s117 = sphi 0, %s103
      %s125 = sphi 0, %s127
      %s128 = sphi 0, %s125
      %s129 = sphi 0, %s128
      %s145 = sphi 0, %s129
    $region4: #{downsample_module_forward.1} parent=1 // loop_header_branch
      %13 = sbr.rel (%p11) target = $region8
    $region5: #{downsample_module_forward.1} parent=1 // loop_body
      %s15 = ssub.s32 %s10, 1
      %s16 = ssub.s32 %s10, 2
      %s23 = sadd.s32 1, %s18
      %p24 = scmp.ge.s32.totalorder %s23, 2
      %s25 = scalar_select %p24, 0, %s23
      %s26 = sadd.s32 1, %s17
      %s27 = scalar_select %p24, %s26, %s17
      %p28 = scmp.ge.s32.totalorder %s27, 1
      %s29 = scalar_select %p28, 0, %s27
      %s30 = ssub.s32 %s17, %s29
      %s31 = ssub.s32 %s18, %s25
      %s32 = sor.u32 %s30, %s31
      %p33 = scmp.eq.s32.totalorder %s32, 0
      %s35 = sadd.s32 %s34, 1
      %s36 = scalar_select %p33, %s34, %s35
      %p39 = pneg %p33
      %p40 = scmp.eq.s32.totalorder %s10, 1
      %p41 = por %p39, %p40
      %p42 = scmp.ne.s32.totalorder %s34, %s37
      %p43 = scmp.eq.s32.totalorder %s10, 0
      %p44 = por %p42, %p43
      %p45 = scmp.ne.s32.totalorder %s34, %s37
      %p46 = scmp.eq.s32.totalorder %s15, 1
      %p47 = por %p45, %p46
      %p48 = scmp.ne.s32.totalorder %s37, %s38
      %p49 = scmp.eq.s32.totalorder %s15, 0
      %p50 = por %p48, %p49
      %p51 = scmp.ne.s32.totalorder %s37, %s38
      %p52 = scmp.eq.s32.totalorder %s16, 1
      %p53 = por %p51, %p52
      %p55 = scmp.ne.s32.totalorder %s38, %s54
      %p56 = scmp.eq.s32.totalorder %s16, 0
      %p57 = por %p55, %p56
      %s59 = sadd.s32 %s58, 1
      %p62 = scmp.eq.s32.totalorder %s10, 1
      %p63 = scmp.ne.s32.totalorder %s58, %s60
      %p64 = scmp.eq.s32.totalorder %s10, 0
      %p65 = por %p63, %p64
      %p66 = scmp.ne.s32.totalorder %s58, %s60
      %p67 = scmp.eq.s32.totalorder %s15, 1
      %p68 = por %p66, %p67
      %p69 = scmp.ne.s32.totalorder %s60, %s61
      %p70 = scmp.eq.s32.totalorder %s15, 0
      %p71 = por %p69, %p70
      %p72 = scmp.ne.s32.totalorder %s60, %s61
      %p73 = scmp.eq.s32.totalorder %s16, 1
      %p74 = por %p72, %p73
      %p76 = scmp.ne.s32.totalorder %s61, %s75
      %p77 = scmp.eq.s32.totalorder %s16, 0
      %p78 = por %p76, %p77
      %s80 = sadd.s32 %s79, 1
      %p83 = scmp.eq.s32.totalorder %s10, 1
      %p84 = scmp.ne.s32.totalorder %s79, %s81
      %p85 = scmp.eq.s32.totalorder %s10, 0
      %p86 = por %p84, %p85
      %p87 = scmp.ne.s32.totalorder %s79, %s81
      %p88 = scmp.eq.s32.totalorder %s15, 1
      %p89 = por %p87, %p88
      %p90 = scmp.ne.s32.totalorder %s81, %s82
      %p91 = scmp.eq.s32.totalorder %s15, 0
      %p92 = por %p90, %p91
      %p93 = scmp.ne.s32.totalorder %s81, %s82
      %p94 = scmp.eq.s32.totalorder %s16, 1
      %p95 = por %p93, %p94
      %p97 = scmp.ne.s32.totalorder %s82, %s96
      %p98 = scmp.eq.s32.totalorder %s16, 0
      %p99 = por %p97, %p98
      %s101 = sadd.s32 %s100, 1
      %p104 = scmp.eq.s32.totalorder %s10, 1
      %p105 = scmp.ne.s32.totalorder %s100, %s102
      %p106 = scmp.eq.s32.totalorder %s10, 0
      %p107 = por %p105, %p106
      %p108 = scmp.ne.s32.totalorder %s100, %s102
      %p109 = scmp.eq.s32.totalorder %s15, 1
      %p110 = por %p108, %p109
      %p111 = scmp.ne.s32.totalorder %s102, %s103
      %p112 = scmp.eq.s32.totalorder %s15, 0
      %p113 = por %p111, %p112
      %p114 = scmp.ne.s32.totalorder %s102, %s103
      %p115 = scmp.eq.s32.totalorder %s16, 1
      %p116 = por %p114, %p115
      %p118 = scmp.ne.s32.totalorder %s103, %s117
      %p119 = scmp.eq.s32.totalorder %s16, 0
      %p120 = por %p118, %p119
      %s121 = ssub.s32 %s17, %s29
      %s122 = ssub.s32 %s18, %s25
      %s123 = sor.u32 %s121, %s122
      %p124 = scmp.eq.s32.totalorder %s123, 0
      %s126 = sadd.s32 %s125, 1
      %s127 = scalar_select %p124, %s125, %s126
      %p130 = pneg %p124
      %p131 = scmp.eq.s32.totalorder %s10, 1
      %p132 = por %p130, %p131
      %p133 = scmp.ne.s32.totalorder %s125, %s128
      %p134 = scmp.eq.s32.totalorder %s10, 0
      %p135 = por %p133, %p134
      %p136 = scmp.ne.s32.totalorder %s125, %s128
      %p137 = scmp.eq.s32.totalorder %s15, 1
      %p138 = por %p136, %p137
      %p139 = scmp.ne.s32.totalorder %s128, %s129
      %p140 = scmp.eq.s32.totalorder %s15, 0
      %p141 = por %p139, %p140
      %p142 = scmp.ne.s32.totalorder %s128, %s129
      %p143 = scmp.eq.s32.totalorder %s16, 1
      %p144 = por %p142, %p143
      %p146 = scmp.ne.s32.totalorder %s129, %s145
      %p147 = scmp.eq.s32.totalorder %s16, 0
      %p148 = por %p146, %p147
      %p149 = scmp.le.s32.totalorder 1, %s10
      %p150 = scmp.lt.s32.totalorder %s10, 3
      %p151 = pnand %p149, %p150
      %p152 = pneg %p151
      // Predicated region
      $region9: #{downsample_module_forward.1} parent=5 // pred_check
        _
      $region10: #{downsample_module_forward.1} parent=5 // pred_check_branch
        %154 = sbr.rel (%p151) target = $region12
      $region11: #{downsample_module_forward.1} parent=5 // pred_region
        %s155 = ssub.s32 %s10, 1
        // Predicated region
        $region13: #{downsample_module_forward.1} parent=11 // pred_check
          %p156 = pneg %p71
        $region14: #{downsample_module_forward.1} parent=11 // pred_check_branch
          %158 = sbr.rel (%p156) target = $region16
        $region15: #{downsample_module_forward.1} parent=11 // pred_region
          _
        $region16: #{downsample_module_forward.1} parent=11 // pred_fallthru
          _
        // Predicated region
        $region17: #{downsample_module_forward.1} parent=11 // pred_check
          %p159 = pneg %p92
        $region18: #{downsample_module_forward.1} parent=11 // pred_check_branch
          %161 = sbr.rel (%p159) target = $region20
        $region19: #{downsample_module_forward.1} parent=11 // pred_region
          _
        $region20: #{downsample_module_forward.1} parent=11 // pred_fallthru
          _
        // Predicated region
        $region21: #{downsample_module_forward.1} parent=11 // pred_check
          %p162 = pneg %p113
        $region22: #{downsample_module_forward.1} parent=11 // pred_check_branch
          %164 = sbr.rel (%p162) target = $region24
        $region23: #{downsample_module_forward.1} parent=11 // pred_region
          _
        $region24: #{downsample_module_forward.1} parent=11 // pred_fallthru
          _
      $region12: #{downsample_module_forward.1} parent=5 // pred_fallthru
        _
      %p165 = scmp.lt.s32.totalorder %s10, 2
      // Predicated region
      $region25: #{downsample_module_forward.1} parent=5 // pred_check
        %p166 = pneg %p165
      $region26: #{downsample_module_forward.1} parent=5 // pred_check_branch
        %168 = sbr.rel (%p166) target = $region28
      $region27: #{downsample_module_forward.1} parent=5 // pred_region
        // Predicated region
        $region29: #{downsample_module_forward.1} parent=27 // pred_check
          %p169 = pneg %p44
        $region30: #{downsample_module_forward.1} parent=27 // pred_check_branch
          %171 = sbr.rel (%p169) target = $region32
        $region31: #{downsample_module_forward.1} parent=27 // pred_region
          %s172 = sand.u32 %s34, 1
          %s173 = sand.u32 %s34, 1
          %s174 = smul.addr %s173, 256
          %s175 = scalar_lea.vmem [#allocation2], %s174
          %s176 = smul.u32 2, %s17
          %s177 = smul.u32 4, %s18
          %s178 = smul.addr %s177, 2
          %s179 = smul.addr %s176, 64
          %s180 = sadd.s32 %s178, %s179
          %s181 = scalar_lea.vmem %s0, %s180
          // Predicated region
          $region33: #{downsample_module_forward.1} parent=31 // pred_check
            _
          $region34: #{downsample_module_forward.1} parent=31 // pred_check_branch
            %183 = sbr.rel (0) target = $region36
          $region35: #{downsample_module_forward.1} parent=31 // pred_region
            // Predicated region
            $region37: #{downsample_module_forward.1} parent=35 // pred_check
              _
            $region38: #{downsample_module_forward.1} parent=35 // pred_check_branch
              %185 = sbr.rel target = $region40
            $region39: #{downsample_module_forward.1} parent=35 // pred_region
              // Predicated region
              $region52: #{downsample_module_forward.1} parent=39 // pred_check
                _
              $region53: #{downsample_module_forward.1} parent=39 // pred_check_branch
                %710 = sbr.rel (0) target = $region55
              $region54: #{downsample_module_forward.1} parent=39 // pred_region
                loop: start=0, step=1, limit=1
                $region56: #{downsample_module_forward.1} parent=54 // loop_pre_header
                  _
                $region57: #{downsample_module_forward.1} parent=54 // loop_header
                  %s712 = sphi 0, %s716
                  %p713 = scmp.ge.s32.totalorder %s712, 1
                  %s717 = sphi %s181, %s181
                  %s718 = sphi %s175, %s175
                $region58: #{downsample_module_forward.1} parent=54 // loop_header_branch
                  %715 = sbr.rel (%p713) target = $region62
                $region59: #{downsample_module_forward.1} parent=54 // loop_body
                  _
                $region60: #{downsample_module_forward.1} parent=54 // loop_footer
                  %s716 = sadd.s32 1, %s712
                $region61: #{downsample_module_forward.1} parent=54 // loop_footer_branch
                  %711 = sbr.rel target = $region57
                $region62: #{downsample_module_forward.1} parent=54 // loop_exit
                  _
                loop: start=0, step=1, limit=1
                $region63: #{downsample_module_forward.1} parent=54 // loop_pre_header
                  _
                $region64: #{downsample_module_forward.1} parent=54 // loop_header
                  %s721 = sphi 0, %s725
                  %p722 = scmp.ge.s32.totalorder %s721, 1
                  %s726 = sphi %s181, %s181
                  %s727 = sphi %s175, %s175
                $region65: #{downsample_module_forward.1} parent=54 // loop_header_branch
                  %724 = sbr.rel (%p722) target = $region69
                $region66: #{downsample_module_forward.1} parent=54 // loop_body
                  %v728 = vld [vmem:[%s726] sm:$0x1]
                  %729 = vst [vmem:[%s727] sm:$0x1] %v728
                  %v730 = vld [vmem:[%s726 + $0x2] sm:$0x1]
                  %731 = vst [vmem:[%s727 + $0x1] sm:$0x1] %v730
                  %v732 = vld [vmem:[%s726 + $0x4] sm:$0x1]
                  %733 = vst [vmem:[%s727 + $0x2] sm:$0x1] %v732
                  %v734 = vld [vmem:[%s726 + $0x6] sm:$0x1]
                  %735 = vst [vmem:[%s727 + $0x3] sm:$0x1] %v734
                  %v736 = vld [vmem:[%s726 + $0x10] sm:$0x1]
                  %737 = vst [vmem:[%s727 + $0x4] sm:$0x1] %v736
                  %v738 = vld [vmem:[%s726 + $0x12] sm:$0x1]
                  %739 = vst [vmem:[%s727 + $0x5] sm:$0x1] %v738
                  %v740 = vld [vmem:[%s726 + $0x14] sm:$0x1]
                  %741 = vst [vmem:[%s727 + $0x6] sm:$0x1] %v740
                  %v742 = vld [vmem:[%s726 + $0x16] sm:$0x1]
                  %743 = vst [vmem:[%s727 + $0x7] sm:$0x1] %v742
                  %v744 = vld [vmem:[%s726 + $0x20] sm:$0x1]
                  %745 = vst [vmem:[%s727 + $0x8] sm:$0x1] %v744
                  %v746 = vld [vmem:[%s726 + $0x22] sm:$0x1]
                  %747 = vst [vmem:[%s727 + $0x9] sm:$0x1] %v746
                  %v748 = vld [vmem:[%s726 + $0x24] sm:$0x1]
                  %749 = vst [vmem:[%s727 + $0xa] sm:$0x1] %v748
                  %v750 = vld [vmem:[%s726 + $0x26] sm:$0x1]
                  %751 = vst [vmem:[%s727 + $0xb] sm:$0x1] %v750
                  %v752 = vld [vmem:[%s726 + $0x30] sm:$0x1]
                  %753 = vst [vmem:[%s727 + $0xc] sm:$0x1] %v752
                  %v754 = vld [vmem:[%s726 + $0x32] sm:$0x1]
                  %755 = vst [vmem:[%s727 + $0xd] sm:$0x1] %v754
                  %v756 = vld [vmem:[%s726 + $0x34] sm:$0x1]
                  %757 = vst [vmem:[%s727 + $0xe] sm:$0x1] %v756
                  %v758 = vld [vmem:[%s726 + $0x36] sm:$0x1]
                  %759 = vst [vmem:[%s727 + $0xf] sm:$0x1] %v758
                  %v760 = vld [vmem:[%s726 + $0x40] sm:$0x1]
                  %761 = vst [vmem:[%s727 + $0x10] sm:$0x1] %v760
                  %v762 = vld [vmem:[%s726 + $0x42] sm:$0x1]
                  %763 = vst [vmem:[%s727 + $0x11] sm:$0x1] %v762
                  %v764 = vld [vmem:[%s726 + $0x44] sm:$0x1]
                  %765 = vst [vmem:[%s727 + $0x12] sm:$0x1] %v764
                  %v766 = vld [vmem:[%s726 + $0x46] sm:$0x1]
                  %767 = vst [vmem:[%s727 + $0x13] sm:$0x1] %v766
                  %v768 = vld [vmem:[%s726 + $0x50] sm:$0x1]
                  %769 = vst [vmem:[%s727 + $0x14] sm:$0x1] %v768
                  %v770 = vld [vmem:[%s726 + $0x52] sm:$0x1]
                  %771 = vst [vmem:[%s727 + $0x15] sm:$0x1] %v770
                  %v772 = vld [vmem:[%s726 + $0x54] sm:$0x1]
                  %773 = vst [vmem:[%s727 + $0x16] sm:$0x1] %v772
                  %v774 = vld [vmem:[%s726 + $0x56] sm:$0x1]
                  %775 = vst [vmem:[%s727 + $0x17] sm:$0x1] %v774
                  %v776 = vld [vmem:[%s726 + $0x60] sm:$0x1]
                  %777 = vst [vmem:[%s727 + $0x18] sm:$0x1] %v776
                  %v778 = vld [vmem:[%s726 + $0x62] sm:$0x1]
                  %779 = vst [vmem:[%s727 + $0x19] sm:$0x1] %v778
                  %v780 = vld [vmem:[%s726 + $0x64] sm:$0x1]
                  %781 = vst [vmem:[%s727 + $0x1a] sm:$0x1] %v780
                  %v782 = vld [vmem:[%s726 + $0x66] sm:$0x1]
                  %783 = vst [vmem:[%s727 + $0x1b] sm:$0x1] %v782
                  %v784 = vld [vmem:[%s726 + $0x70] sm:$0x1]
                  %785 = vst [vmem:[%s727 + $0x1c] sm:$0x1] %v784
                  %v786 = vld [vmem:[%s726 + $0x72] sm:$0x1]
                  %787 = vst [vmem:[%s727 + $0x1d] sm:$0x1] %v786
                  %v788 = vld [vmem:[%s726 + $0x74] sm:$0x1]
                  %789 = vst [vmem:[%s727 + $0x1e] sm:$0x1] %v788
                  %v790 = vld [vmem:[%s726 + $0x76] sm:$0x1]
                  %791 = vst [vmem:[%s727 + $0x1f] sm:$0x1] %v790
                  %v792 = vld [vmem:[%s726 + $0x80] sm:$0x1]
                  %793 = vst [vmem:[%s727 + $0x20] sm:$0x1] %v792
                  %v794 = vld [vmem:[%s726 + $0x82] sm:$0x1]
                  %795 = vst [vmem:[%s727 + $0x21] sm:$0x1] %v794
                  %v796 = vld [vmem:[%s726 + $0x84] sm:$0x1]
                  %797 = vst [vmem:[%s727 + $0x22] sm:$0x1] %v796
                  %v798 = vld [vmem:[%s726 + $0x86] sm:$0x1]
                  %799 = vst [vmem:[%s727 + $0x23] sm:$0x1] %v798
                  %v800 = vld [vmem:[%s726 + $0x90] sm:$0x1]
                  %801 = vst [vmem:[%s727 + $0x24] sm:$0x1] %v800
                  %v802 = vld [vmem:[%s726 + $0x92] sm:$0x1]
                  %803 = vst [vmem:[%s727 + $0x25] sm:$0x1] %v802
                  %v804 = vld [vmem:[%s726 + $0x94] sm:$0x1]
                  %805 = vst [vmem:[%s727 + $0x26] sm:$0x1] %v804
                  %v806 = vld [vmem:[%s726 + $0x96] sm:$0x1]
                  %807 = vst [vmem:[%s727 + $0x27] sm:$0x1] %v806
                  %v808 = vld [vmem:[%s726 + $0xa0] sm:$0x1]
                  %809 = vst [vmem:[%s727 + $0x28] sm:$0x1] %v808
                  %v810 = vld [vmem:[%s726 + $0xa2] sm:$0x1]
                  %811 = vst [vmem:[%s727 + $0x29] sm:$0x1] %v810
                  %v812 = vld [vmem:[%s726 + $0xa4] sm:$0x1]
                  %813 = vst [vmem:[%s727 + $0x2a] sm:$0x1] %v812
                  %v814 = vld [vmem:[%s726 + $0xa6] sm:$0x1]
                  %815 = vst [vmem:[%s727 + $0x2b] sm:$0x1] %v814
                  %v816 = vld [vmem:[%s726 + $0xb0] sm:$0x1]
                  %817 = vst [vmem:[%s727 + $0x2c] sm:$0x1] %v816
                  %v818 = vld [vmem:[%s726 + $0xb2] sm:$0x1]
                  %819 = vst [vmem:[%s727 + $0x2d] sm:$0x1] %v818
                  %v820 = vld [vmem:[%s726 + $0xb4] sm:$0x1]
                  %821 = vst [vmem:[%s727 + $0x2e] sm:$0x1] %v820
                  %v822 = vld [vmem:[%s726 + $0xb6] sm:$0x1]
                  %823 = vst [vmem:[%s727 + $0x2f] sm:$0x1] %v822
                  %v824 = vld [vmem:[%s726 + $0xc0] sm:$0x1]
                  %825 = vst [vmem:[%s727 + $0x30] sm:$0x1] %v824
                  %v826 = vld [vmem:[%s726 + $0xc2] sm:$0x1]
                  %827 = vst [vmem:[%s727 + $0x31] sm:$0x1] %v826
                  %v828 = vld [vmem:[%s726 + $0xc4] sm:$0x1]
                  %829 = vst [vmem:[%s727 + $0x32] sm:$0x1] %v828
                  %v830 = vld [vmem:[%s726 + $0xc6] sm:$0x1]
                  %831 = vst [vmem:[%s727 + $0x33] sm:$0x1] %v830
                  %v832 = vld [vmem:[%s726 + $0xd0] sm:$0x1]
                  %833 = vst [vmem:[%s727 + $0x34] sm:$0x1] %v832
                  %v834 = vld [vmem:[%s726 + $0xd2] sm:$0x1]
                  %835 = vst [vmem:[%s727 + $0x35] sm:$0x1] %v834
                  %v836 = vld [vmem:[%s726 + $0xd4] sm:$0x1]
                  %837 = vst [vmem:[%s727 + $0x36] sm:$0x1] %v836
                  %v838 = vld [vmem:[%s726 + $0xd6] sm:$0x1]
                  %839 = vst [vmem:[%s727 + $0x37] sm:$0x1] %v838
                  %v840 = vld [vmem:[%s726 + $0xe0] sm:$0x1]
                  %841 = vst [vmem:[%s727 + $0x38] sm:$0x1] %v840
                  %v842 = vld [vmem:[%s726 + $0xe2] sm:$0x1]
                  %843 = vst [vmem:[%s727 + $0x39] sm:$0x1] %v842
                  %v844 = vld [vmem:[%s726 + $0xe4] sm:$0x1]
                  %845 = vst [vmem:[%s727 + $0x3a] sm:$0x1] %v844
                  %v846 = vld [vmem:[%s726 + $0xe6] sm:$0x1]
                  %847 = vst [vmem:[%s727 + $0x3b] sm:$0x1] %v846
                  %v848 = vld [vmem:[%s726 + $0xf0] sm:$0x1]
                  %849 = vst [vmem:[%s727 + $0x3c] sm:$0x1] %v848
                  %v850 = vld [vmem:[%s726 + $0xf2] sm:$0x1]
                  %851 = vst [vmem:[%s727 + $0x3d] sm:$0x1] %v850
                  %v852 = vld [vmem:[%s726 + $0xf4] sm:$0x1]
                  %853 = vst [vmem:[%s727 + $0x3e] sm:$0x1] %v852
                  %v854 = vld [vmem:[%s726 + $0xf6] sm:$0x1]
                  %855 = vst [vmem:[%s727 + $0x3f] sm:$0x1] %v854
                  %v856 = vld [vmem:[%s726 + $0x100] sm:$0x1]
                  %857 = vst [vmem:[%s727 + $0x40] sm:$0x1] %v856
                  %v858 = vld [vmem:[%s726 + $0x102] sm:$0x1]
                  %859 = vst [vmem:[%s727 + $0x41] sm:$0x1] %v858
                  %v860 = vld [vmem:[%s726 + $0x104] sm:$0x1]
                  %861 = vst [vmem:[%s727 + $0x42] sm:$0x1] %v860
                  %v862 = vld [vmem:[%s726 + $0x106] sm:$0x1]
                  %863 = vst [vmem:[%s727 + $0x43] sm:$0x1] %v862
                  %v864 = vld [vmem:[%s726 + $0x110] sm:$0x1]
                  %865 = vst [vmem:[%s727 + $0x44] sm:$0x1] %v864
                  %v866 = vld [vmem:[%s726 + $0x112] sm:$0x1]
                  %867 = vst [vmem:[%s727 + $0x45] sm:$0x1] %v866
                  %v868 = vld [vmem:[%s726 + $0x114] sm:$0x1]
                  %869 = vst [vmem:[%s727 + $0x46] sm:$0x1] %v868
                  %v870 = vld [vmem:[%s726 + $0x116] sm:$0x1]
                  %871 = vst [vmem:[%s727 + $0x47] sm:$0x1] %v870
                  %v872 = vld [vmem:[%s726 + $0x120] sm:$0x1]
                  %873 = vst [vmem:[%s727 + $0x48] sm:$0x1] %v872
                  %v874 = vld [vmem:[%s726 + $0x122] sm:$0x1]
                  %875 = vst [vmem:[%s727 + $0x49] sm:$0x1] %v874
                  %v876 = vld [vmem:[%s726 + $0x124] sm:$0x1]
                  %877 = vst [vmem:[%s727 + $0x4a] sm:$0x1] %v876
                  %v878 = vld [vmem:[%s726 + $0x126] sm:$0x1]
                  %879 = vst [vmem:[%s727 + $0x4b] sm:$0x1] %v878
                  %v880 = vld [vmem:[%s726 + $0x130] sm:$0x1]
                  %881 = vst [vmem:[%s727 + $0x4c] sm:$0x1] %v880
                  %v882 = vld [vmem:[%s726 + $0x132] sm:$0x1]
                  %883 = vst [vmem:[%s727 + $0x4d] sm:$0x1] %v882
                  %v884 = vld [vmem:[%s726 + $0x134] sm:$0x1]
                  %885 = vst [vmem:[%s727 + $0x4e] sm:$0x1] %v884
                  %v886 = vld [vmem:[%s726 + $0x136] sm:$0x1]
                  %887 = vst [vmem:[%s727 + $0x4f] sm:$0x1] %v886
                  %v888 = vld [vmem:[%s726 + $0x140] sm:$0x1]
                  %889 = vst [vmem:[%s727 + $0x50] sm:$0x1] %v888
                  %v890 = vld [vmem:[%s726 + $0x142] sm:$0x1]
                  %891 = vst [vmem:[%s727 + $0x51] sm:$0x1] %v890
                  %v892 = vld [vmem:[%s726 + $0x144] sm:$0x1]
                  %893 = vst [vmem:[%s727 + $0x52] sm:$0x1] %v892
                  %v894 = vld [vmem:[%s726 + $0x146] sm:$0x1]
                  %895 = vst [vmem:[%s727 + $0x53] sm:$0x1] %v894
                  %v896 = vld [vmem:[%s726 + $0x150] sm:$0x1]
                  %897 = vst [vmem:[%s727 + $0x54] sm:$0x1] %v896
                  %v898 = vld [vmem:[%s726 + $0x152] sm:$0x1]
                  %899 = vst [vmem:[%s727 + $0x55] sm:$0x1] %v898
                  %v900 = vld [vmem:[%s726 + $0x154] sm:$0x1]
                  %901 = vst [vmem:[%s727 + $0x56] sm:$0x1] %v900
                  %v902 = vld [vmem:[%s726 + $0x156] sm:$0x1]
                  %903 = vst [vmem:[%s727 + $0x57] sm:$0x1] %v902
                  %v904 = vld [vmem:[%s726 + $0x160] sm:$0x1]
                  %905 = vst [vmem:[%s727 + $0x58] sm:$0x1] %v904
                  %v906 = vld [vmem:[%s726 + $0x162] sm:$0x1]
                  %907 = vst [vmem:[%s727 + $0x59] sm:$0x1] %v906
                  %v908 = vld [vmem:[%s726 + $0x164] sm:$0x1]
                  %909 = vst [vmem:[%s727 + $0x5a] sm:$0x1] %v908
                  %v910 = vld [vmem:[%s726 + $0x166] sm:$0x1]
                  %911 = vst [vmem:[%s727 + $0x5b] sm:$0x1] %v910
                  %v912 = vld [vmem:[%s726 + $0x170] sm:$0x1]
                  %913 = vst [vmem:[%s727 + $0x5c] sm:$0x1] %v912
                  %v914 = vld [vmem:[%s726 + $0x172] sm:$0x1]
                  %915 = vst [vmem:[%s727 + $0x5d] sm:$0x1] %v914
                  %v916 = vld [vmem:[%s726 + $0x174] sm:$0x1]
                  %917 = vst [vmem:[%s727 + $0x5e] sm:$0x1] %v916
                  %v918 = vld [vmem:[%s726 + $0x176] sm:$0x1]
                  %919 = vst [vmem:[%s727 + $0x5f] sm:$0x1] %v918
                  %v920 = vld [vmem:[%s726 + $0x180] sm:$0x1]
                  %921 = vst [vmem:[%s727 + $0x60] sm:$0x1] %v920
                  %v922 = vld [vmem:[%s726 + $0x182] sm:$0x1]
                  %923 = vst [vmem:[%s727 + $0x61] sm:$0x1] %v922
                  %v924 = vld [vmem:[%s726 + $0x184] sm:$0x1]
                  %925 = vst [vmem:[%s727 + $0x62] sm:$0x1] %v924
                  %v926 = vld [vmem:[%s726 + $0x186] sm:$0x1]
                  %927 = vst [vmem:[%s727 + $0x63] sm:$0x1] %v926
                  %v928 = vld [vmem:[%s726 + $0x190] sm:$0x1]
                  %929 = vst [vmem:[%s727 + $0x64] sm:$0x1] %v928
                  %v930 = vld [vmem:[%s726 + $0x192] sm:$0x1]
                  %931 = vst [vmem:[%s727 + $0x65] sm:$0x1] %v930
                  %v932 = vld [vmem:[%s726 + $0x194] sm:$0x1]
                  %933 = vst [vmem:[%s727 + $0x66] sm:$0x1] %v932
                  %v934 = vld [vmem:[%s726 + $0x196] sm:$0x1]
                  %935 = vst [vmem:[%s727 + $0x67] sm:$0x1] %v934
                  %v936 = vld [vmem:[%s726 + $0x1a0] sm:$0x1]
                  %937 = vst [vmem:[%s727 + $0x68] sm:$0x1] %v936
                  %v938 = vld [vmem:[%s726 + $0x1a2] sm:$0x1]
                  %939 = vst [vmem:[%s727 + $0x69] sm:$0x1] %v938
                  %v940 = vld [vmem:[%s726 + $0x1a4] sm:$0x1]
                  %941 = vst [vmem:[%s727 + $0x6a] sm:$0x1] %v940
                  %v942 = vld [vmem:[%s726 + $0x1a6] sm:$0x1]
                  %943 = vst [vmem:[%s727 + $0x6b] sm:$0x1] %v942
                  %v944 = vld [vmem:[%s726 + $0x1b0] sm:$0x1]
                  %945 = vst [vmem:[%s727 + $0x6c] sm:$0x1] %v944
                  %v946 = vld [vmem:[%s726 + $0x1b2] sm:$0x1]
                  %947 = vst [vmem:[%s727 + $0x6d] sm:$0x1] %v946
                  %v948 = vld [vmem:[%s726 + $0x1b4] sm:$0x1]
                  %949 = vst [vmem:[%s727 + $0x6e] sm:$0x1] %v948
                  %v950 = vld [vmem:[%s726 + $0x1b6] sm:$0x1]
                  %951 = vst [vmem:[%s727 + $0x6f] sm:$0x1] %v950
                  %v952 = vld [vmem:[%s726 + $0x1c0] sm:$0x1]
                  %953 = vst [vmem:[%s727 + $0x70] sm:$0x1] %v952
                  %v954 = vld [vmem:[%s726 + $0x1c2] sm:$0x1]
                  %955 = vst [vmem:[%s727 + $0x71] sm:$0x1] %v954
                  %v956 = vld [vmem:[%s726 + $0x1c4] sm:$0x1]
                  %957 = vst [vmem:[%s727 + $0x72] sm:$0x1] %v956
                  %v958 = vld [vmem:[%s726 + $0x1c6] sm:$0x1]
                  %959 = vst [vmem:[%s727 + $0x73] sm:$0x1] %v958
                  %v960 = vld [vmem:[%s726 + $0x1d0] sm:$0x1]
                  %961 = vst [vmem:[%s727 + $0x74] sm:$0x1] %v960
                  %v962 = vld [vmem:[%s726 + $0x1d2] sm:$0x1]
                  %963 = vst [vmem:[%s727 + $0x75] sm:$0x1] %v962
                  %v964 = vld [vmem:[%s726 + $0x1d4] sm:$0x1]
                  %965 = vst [vmem:[%s727 + $0x76] sm:$0x1] %v964
                  %v966 = vld [vmem:[%s726 + $0x1d6] sm:$0x1]
                  %967 = vst [vmem:[%s727 + $0x77] sm:$0x1] %v966
                  %v968 = vld [vmem:[%s726 + $0x1e0] sm:$0x1]
                  %969 = vst [vmem:[%s727 + $0x78] sm:$0x1] %v968
                  %v970 = vld [vmem:[%s726 + $0x1e2] sm:$0x1]
                  %971 = vst [vmem:[%s727 + $0x79] sm:$0x1] %v970
                  %v972 = vld [vmem:[%s726 + $0x1e4] sm:$0x1]
                  %973 = vst [vmem:[%s727 + $0x7a] sm:$0x1] %v972
                  %v974 = vld [vmem:[%s726 + $0x1e6] sm:$0x1]
                  %975 = vst [vmem:[%s727 + $0x7b] sm:$0x1] %v974
                  %v976 = vld [vmem:[%s726 + $0x1f0] sm:$0x1]
                  %977 = vst [vmem:[%s727 + $0x7c] sm:$0x1] %v976
                  %v978 = vld [vmem:[%s726 + $0x1f2] sm:$0x1]
                  %979 = vst [vmem:[%s727 + $0x7d] sm:$0x1] %v978
                  %v980 = vld [vmem:[%s726 + $0x1f4] sm:$0x1]
                  %981 = vst [vmem:[%s727 + $0x7e] sm:$0x1] %v980
                  %v982 = vld [vmem:[%s726 + $0x1f6] sm:$0x1]
                  %983 = vst [vmem:[%s727 + $0x7f] sm:$0x1] %v982
                  %v984 = vld [vmem:[%s726 + $0x200] sm:$0x1]
                  %985 = vst [vmem:[%s727 + $0x80] sm:$0x1] %v984
                  %v986 = vld [vmem:[%s726 + $0x202] sm:$0x1]
                  %987 = vst [vmem:[%s727 + $0x81] sm:$0x1] %v986
                  %v988 = vld [vmem:[%s726 + $0x204] sm:$0x1]
                  %989 = vst [vmem:[%s727 + $0x82] sm:$0x1] %v988
                  %v990 = vld [vmem:[%s726 + $0x206] sm:$0x1]
                  %991 = vst [vmem:[%s727 + $0x83] sm:$0x1] %v990
                  %v992 = vld [vmem:[%s726 + $0x210] sm:$0x1]
                  %993 = vst [vmem:[%s727 + $0x84] sm:$0x1] %v992
                  %v994 = vld [vmem:[%s726 + $0x212] sm:$0x1]
                  %995 = vst [vmem:[%s727 + $0x85] sm:$0x1] %v994
                  %v996 = vld [vmem:[%s726 + $0x214] sm:$0x1]
                  %997 = vst [vmem:[%s727 + $0x86] sm:$0x1] %v996
                  %v998 = vld [vmem:[%s726 + $0x216] sm:$0x1]
                  %999 = vst [vmem:[%s727 + $0x87] sm:$0x1] %v998
                  %v1000 = vld [vmem:[%s726 + $0x220] sm:$0x1]
                  %1001 = vst [vmem:[%s727 + $0x88] sm:$0x1] %v1000
                  %v1002 = vld [vmem:[%s726 + $0x222] sm:$0x1]
                  %1003 = vst [vmem:[%s727 + $0x89] sm:$0x1] %v1002
                  %v1004 = vld [vmem:[%s726 + $0x224] sm:$0x1]
                  %1005 = vst [vmem:[%s727 + $0x8a] sm:$0x1] %v1004
                  %v1006 = vld [vmem:[%s726 + $0x226] sm:$0x1]
                  %1007 = vst [vmem:[%s727 + $0x8b] sm:$0x1] %v1006
                  %v1008 = vld [vmem:[%s726 + $0x230] sm:$0x1]
                  %1009 = vst [vmem:[%s727 + $0x8c] sm:$0x1] %v1008
                  %v1010 = vld [vmem:[%s726 + $0x232] sm:$0x1]
                  %1011 = vst [vmem:[%s727 + $0x8d] sm:$0x1] %v1010
                  %v1012 = vld [vmem:[%s726 + $0x234] sm:$0x1]
                  %1013 = vst [vmem:[%s727 + $0x8e] sm:$0x1] %v1012
                  %v1014 = vld [vmem:[%s726 + $0x236] sm:$0x1]
                  %1015 = vst [vmem:[%s727 + $0x8f] sm:$0x1] %v1014
                  %v1016 = vld [vmem:[%s726 + $0x240] sm:$0x1]
                  %1017 = vst [vmem:[%s727 + $0x90] sm:$0x1] %v1016
                  %v1018 = vld [vmem:[%s726 + $0x242] sm:$0x1]
                  %1019 = vst [vmem:[%s727 + $0x91] sm:$0x1] %v1018
                  %v1020 = vld [vmem:[%s726 + $0x244] sm:$0x1]
                  %1021 = vst [vmem:[%s727 + $0x92] sm:$0x1] %v1020
                  %v1022 = vld [vmem:[%s726 + $0x246] sm:$0x1]
                  %1023 = vst [vmem:[%s727 + $0x93] sm:$0x1] %v1022
                  %v1024 = vld [vmem:[%s726 + $0x250] sm:$0x1]
                  %1025 = vst [vmem:[%s727 + $0x94] sm:$0x1] %v1024
                  %v1026 = vld [vmem:[%s726 + $0x252] sm:$0x1]
                  %1027 = vst [vmem:[%s727 + $0x95] sm:$0x1] %v1026
                  %v1028 = vld [vmem:[%s726 + $0x254] sm:$0x1]
                  %1029 = vst [vmem:[%s727 + $0x96] sm:$0x1] %v1028
                  %v1030 = vld [vmem:[%s726 + $0x256] sm:$0x1]
                  %1031 = vst [vmem:[%s727 + $0x97] sm:$0x1] %v1030
                  %v1032 = vld [vmem:[%s726 + $0x260] sm:$0x1]
                  %1033 = vst [vmem:[%s727 + $0x98] sm:$0x1] %v1032
                  %v1034 = vld [vmem:[%s726 + $0x262] sm:$0x1]
                  %1035 = vst [vmem:[%s727 + $0x99] sm:$0x1] %v1034
                  %v1036 = vld [vmem:[%s726 + $0x264] sm:$0x1]
                  %1037 = vst [vmem:[%s727 + $0x9a] sm:$0x1] %v1036
                  %v1038 = vld [vmem:[%s726 + $0x266] sm:$0x1]
                  %1039 = vst [vmem:[%s727 + $0x9b] sm:$0x1] %v1038
                  %v1040 = vld [vmem:[%s726 + $0x270] sm:$0x1]
                  %1041 = vst [vmem:[%s727 + $0x9c] sm:$0x1] %v1040
                  %v1042 = vld [vmem:[%s726 + $0x272] sm:$0x1]
                  %1043 = vst [vmem:[%s727 + $0x9d] sm:$0x1] %v1042
                  %v1044 = vld [vmem:[%s726 + $0x274] sm:$0x1]
                  %1045 = vst [vmem:[%s727 + $0x9e] sm:$0x1] %v1044
                  %v1046 = vld [vmem:[%s726 + $0x276] sm:$0x1]
                  %1047 = vst [vmem:[%s727 + $0x9f] sm:$0x1] %v1046
                  %v1048 = vld [vmem:[%s726 + $0x280] sm:$0x1]
                  %1049 = vst [vmem:[%s727 + $0xa0] sm:$0x1] %v1048
                  %v1050 = vld [vmem:[%s726 + $0x282] sm:$0x1]
                  %1051 = vst [vmem:[%s727 + $0xa1] sm:$0x1] %v1050
                  %v1052 = vld [vmem:[%s726 + $0x284] sm:$0x1]
                  %1053 = vst [vmem:[%s727 + $0xa2] sm:$0x1] %v1052
                  %v1054 = vld [vmem:[%s726 + $0x286] sm:$0x1]
                  %1055 = vst [vmem:[%s727 + $0xa3] sm:$0x1] %v1054
                  %v1056 = vld [vmem:[%s726 + $0x290] sm:$0x1]
                  %1057 = vst [vmem:[%s727 + $0xa4] sm:$0x1] %v1056
                  %v1058 = vld [vmem:[%s726 + $0x292] sm:$0x1]
                  %1059 = vst [vmem:[%s727 + $0xa5] sm:$0x1] %v1058
                  %v1060 = vld [vmem:[%s726 + $0x294] sm:$0x1]
                  %1061 = vst [vmem:[%s727 + $0xa6] sm:$0x1] %v1060
                  %v1062 = vld [vmem:[%s726 + $0x296] sm:$0x1]
                  %1063 = vst [vmem:[%s727 + $0xa7] sm:$0x1] %v1062
                  %v1064 = vld [vmem:[%s726 + $0x2a0] sm:$0x1]
                  %1065 = vst [vmem:[%s727 + $0xa8] sm:$0x1] %v1064
                  %v1066 = vld [vmem:[%s726 + $0x2a2] sm:$0x1]
                  %1067 = vst [vmem:[%s727 + $0xa9] sm:$0x1] %v1066
                  %v1068 = vld [vmem:[%s726 + $0x2a4] sm:$0x1]
                  %1069 = vst [vmem:[%s727 + $0xaa] sm:$0x1] %v1068
                  %v1070 = vld [vmem:[%s726 + $0x2a6] sm:$0x1]
                  %1071 = vst [vmem:[%s727 + $0xab] sm:$0x1] %v1070
                  %v1072 = vld [vmem:[%s726 + $0x2b0] sm:$0x1]
                  %1073 = vst [vmem:[%s727 + $0xac] sm:$0x1] %v1072
                  %v1074 = vld [vmem:[%s726 + $0x2b2] sm:$0x1]
                  %1075 = vst [vmem:[%s727 + $0xad] sm:$0x1] %v1074
                  %v1076 = vld [vmem:[%s726 + $0x2b4] sm:$0x1]
                  %1077 = vst [vmem:[%s727 + $0xae] sm:$0x1] %v1076
                  %v1078 = vld [vmem:[%s726 + $0x2b6] sm:$0x1]
                  %1079 = vst [vmem:[%s727 + $0xaf] sm:$0x1] %v1078
                  %v1080 = vld [vmem:[%s726 + $0x2c0] sm:$0x1]
                  %1081 = vst [vmem:[%s727 + $0xb0] sm:$0x1] %v1080
                  %v1082 = vld [vmem:[%s726 + $0x2c2] sm:$0x1]
                  %1083 = vst [vmem:[%s727 + $0xb1] sm:$0x1] %v1082
                  %v1084 = vld [vmem:[%s726 + $0x2c4] sm:$0x1]
                  %1085 = vst [vmem:[%s727 + $0xb2] sm:$0x1] %v1084
                  %v1086 = vld [vmem:[%s726 + $0x2c6] sm:$0x1]
                  %1087 = vst [vmem:[%s727 + $0xb3] sm:$0x1] %v1086
                  %v1088 = vld [vmem:[%s726 + $0x2d0] sm:$0x1]
                  %1089 = vst [vmem:[%s727 + $0xb4] sm:$0x1] %v1088
                  %v1090 = vld [vmem:[%s726 + $0x2d2] sm:$0x1]
                  %1091 = vst [vmem:[%s727 + $0xb5] sm:$0x1] %v1090
                  %v1092 = vld [vmem:[%s726 + $0x2d4] sm:$0x1]
                  %1093 = vst [vmem:[%s727 + $0xb6] sm:$0x1] %v1092
                  %v1094 = vld [vmem:[%s726 + $0x2d6] sm:$0x1]
                  %1095 = vst [vmem:[%s727 + $0xb7] sm:$0x1] %v1094
                  %v1096 = vld [vmem:[%s726 + $0x2e0] sm:$0x1]
                  %1097 = vst [vmem:[%s727 + $0xb8] sm:$0x1] %v1096
                  %v1098 = vld [vmem:[%s726 + $0x2e2] sm:$0x1]
                  %1099 = vst [vmem:[%s727 + $0xb9] sm:$0x1] %v1098
                  %v1100 = vld [vmem:[%s726 + $0x2e4] sm:$0x1]
                  %1101 = vst [vmem:[%s727 + $0xba] sm:$0x1] %v1100
                  %v1102 = vld [vmem:[%s726 + $0x2e6] sm:$0x1]
                  %1103 = vst [vmem:[%s727 + $0xbb] sm:$0x1] %v1102
                  %v1104 = vld [vmem:[%s726 + $0x2f0] sm:$0x1]
                  %1105 = vst [vmem:[%s727 + $0xbc] sm:$0x1] %v1104
                  %v1106 = vld [vmem:[%s726 + $0x2f2] sm:$0x1]
                  %1107 = vst [vmem:[%s727 + $0xbd] sm:$0x1] %v1106
                  %v1108 = vld [vmem:[%s726 + $0x2f4] sm:$0x1]
                  %1109 = vst [vmem:[%s727 + $0xbe] sm:$0x1] %v1108
                  %v1110 = vld [vmem:[%s726 + $0x2f6] sm:$0x1]
                  %1111 = vst [vmem:[%s727 + $0xbf] sm:$0x1] %v1110
                  %v1112 = vld [vmem:[%s726 + $0x300] sm:$0x1]
                  %1113 = vst [vmem:[%s727 + $0xc0] sm:$0x1] %v1112
                  %v1114 = vld [vmem:[%s726 + $0x302] sm:$0x1]
                  %1115 = vst [vmem:[%s727 + $0xc1] sm:$0x1] %v1114
                  %v1116 = vld [vmem:[%s726 + $0x304] sm:$0x1]
                  %1117 = vst [vmem:[%s727 + $0xc2] sm:$0x1] %v1116
                  %v1118 = vld [vmem:[%s726 + $0x306] sm:$0x1]
                  %1119 = vst [vmem:[%s727 + $0xc3] sm:$0x1] %v1118
                  %v1120 = vld [vmem:[%s726 + $0x310] sm:$0x1]
                  %1121 = vst [vmem:[%s727 + $0xc4] sm:$0x1] %v1120
                  %v1122 = vld [vmem:[%s726 + $0x312] sm:$0x1]
                  %1123 = vst [vmem:[%s727 + $0xc5] sm:$0x1] %v1122
                  %v1124 = vld [vmem:[%s726 + $0x314] sm:$0x1]
                  %1125 = vst [vmem:[%s727 + $0xc6] sm:$0x1] %v1124
                  %v1126 = vld [vmem:[%s726 + $0x316] sm:$0x1]
                  %1127 = vst [vmem:[%s727 + $0xc7] sm:$0x1] %v1126
                  %v1128 = vld [vmem:[%s726 + $0x320] sm:$0x1]
                  %1129 = vst [vmem:[%s727 + $0xc8] sm:$0x1] %v1128
                  %v1130 = vld [vmem:[%s726 + $0x322] sm:$0x1]
                  %1131 = vst [vmem:[%s727 + $0xc9] sm:$0x1] %v1130
                  %v1132 = vld [vmem:[%s726 + $0x324] sm:$0x1]
                  %1133 = vst [vmem:[%s727 + $0xca] sm:$0x1] %v1132
                  %v1134 = vld [vmem:[%s726 + $0x326] sm:$0x1]
                  %1135 = vst [vmem:[%s727 + $0xcb] sm:$0x1] %v1134
                  %v1136 = vld [vmem:[%s726 + $0x330] sm:$0x1]
                  %1137 = vst [vmem:[%s727 + $0xcc] sm:$0x1] %v1136
                  %v1138 = vld [vmem:[%s726 + $0x332] sm:$0x1]
                  %1139 = vst [vmem:[%s727 + $0xcd] sm:$0x1] %v1138
                  %v1140 = vld [vmem:[%s726 + $0x334] sm:$0x1]
                  %1141 = vst [vmem:[%s727 + $0xce] sm:$0x1] %v1140
                  %v1142 = vld [vmem:[%s726 + $0x336] sm:$0x1]
                  %1143 = vst [vmem:[%s727 + $0xcf] sm:$0x1] %v1142
                  %v1144 = vld [vmem:[%s726 + $0x340] sm:$0x1]
                  %1145 = vst [vmem:[%s727 + $0xd0] sm:$0x1] %v1144
                  %v1146 = vld [vmem:[%s726 + $0x342] sm:$0x1]
                  %1147 = vst [vmem:[%s727 + $0xd1] sm:$0x1] %v1146
                  %v1148 = vld [vmem:[%s726 + $0x344] sm:$0x1]
                  %1149 = vst [vmem:[%s727 + $0xd2] sm:$0x1] %v1148
                  %v1150 = vld [vmem:[%s726 + $0x346] sm:$0x1]
                  %1151 = vst [vmem:[%s727 + $0xd3] sm:$0x1] %v1150
                  %v1152 = vld [vmem:[%s726 + $0x350] sm:$0x1]
                  %1153 = vst [vmem:[%s727 + $0xd4] sm:$0x1] %v1152
                  %v1154 = vld [vmem:[%s726 + $0x352] sm:$0x1]
                  %1155 = vst [vmem:[%s727 + $0xd5] sm:$0x1] %v1154
                  %v1156 = vld [vmem:[%s726 + $0x354] sm:$0x1]
                  %1157 = vst [vmem:[%s727 + $0xd6] sm:$0x1] %v1156
                  %v1158 = vld [vmem:[%s726 + $0x356] sm:$0x1]
                  %1159 = vst [vmem:[%s727 + $0xd7] sm:$0x1] %v1158
                  %v1160 = vld [vmem:[%s726 + $0x360] sm:$0x1]
                  %1161 = vst [vmem:[%s727 + $0xd8] sm:$0x1] %v1160
                  %v1162 = vld [vmem:[%s726 + $0x362] sm:$0x1]
                  %1163 = vst [vmem:[%s727 + $0xd9] sm:$0x1] %v1162
                  %v1164 = vld [vmem:[%s726 + $0x364] sm:$0x1]
                  %1165 = vst [vmem:[%s727 + $0xda] sm:$0x1] %v1164
                  %v1166 = vld [vmem:[%s726 + $0x366] sm:$0x1]
                  %1167 = vst [vmem:[%s727 + $0xdb] sm:$0x1] %v1166
                  %v1168 = vld [vmem:[%s726 + $0x370] sm:$0x1]
                  %1169 = vst [vmem:[%s727 + $0xdc] sm:$0x1] %v1168
                  %v1170 = vld [vmem:[%s726 + $0x372] sm:$0x1]
                  %1171 = vst [vmem:[%s727 + $0xdd] sm:$0x1] %v1170
                  %v1172 = vld [vmem:[%s726 + $0x374] sm:$0x1]
                  %1173 = vst [vmem:[%s727 + $0xde] sm:$0x1] %v1172
                  %v1174 = vld [vmem:[%s726 + $0x376] sm:$0x1]
                  %1175 = vst [vmem:[%s727 + $0xdf] sm:$0x1] %v1174
                  %v1176 = vld [vmem:[%s726 + $0x380] sm:$0x1]
                  %1177 = vst [vmem:[%s727 + $0xe0] sm:$0x1] %v1176
                  %v1178 = vld [vmem:[%s726 + $0x382] sm:$0x1]
                  %1179 = vst [vmem:[%s727 + $0xe1] sm:$0x1] %v1178
                  %v1180 = vld [vmem:[%s726 + $0x384] sm:$0x1]
                  %1181 = vst [vmem:[%s727 + $0xe2] sm:$0x1] %v1180
                  %v1182 = vld [vmem:[%s726 + $0x386] sm:$0x1]
                  %1183 = vst [vmem:[%s727 + $0xe3] sm:$0x1] %v1182
                  %v1184 = vld [vmem:[%s726 + $0x390] sm:$0x1]
                  %1185 = vst [vmem:[%s727 + $0xe4] sm:$0x1] %v1184
                  %v1186 = vld [vmem:[%s726 + $0x392] sm:$0x1]
                  %1187 = vst [vmem:[%s727 + $0xe5] sm:$0x1] %v1186
                  %v1188 = vld [vmem:[%s726 + $0x394] sm:$0x1]
                  %1189 = vst [vmem:[%s727 + $0xe6] sm:$0x1] %v1188
                  %v1190 = vld [vmem:[%s726 + $0x396] sm:$0x1]
                  %1191 = vst [vmem:[%s727 + $0xe7] sm:$0x1] %v1190
                  %v1192 = vld [vmem:[%s726 + $0x3a0] sm:$0x1]
                  %1193 = vst [vmem:[%s727 + $0xe8] sm:$0x1] %v1192
                  %v1194 = vld [vmem:[%s726 + $0x3a2] sm:$0x1]
                  %1195 = vst [vmem:[%s727 + $0xe9] sm:$0x1] %v1194
                  %v1196 = vld [vmem:[%s726 + $0x3a4] sm:$0x1]
                  %1197 = vst [vmem:[%s727 + $0xea] sm:$0x1] %v1196
                  %v1198 = vld [vmem:[%s726 + $0x3a6] sm:$0x1]
                  %1199 = vst [vmem:[%s727 + $0xeb] sm:$0x1] %v1198
                  %v1200 = vld [vmem:[%s726 + $0x3b0] sm:$0x1]
                  %1201 = vst [vmem:[%s727 + $0xec] sm:$0x1] %v1200
                  %v1202 = vld [vmem:[%s726 + $0x3b2] sm:$0x1]
                  %1203 = vst [vmem:[%s727 + $0xed] sm:$0x1] %v1202
                  %v1204 = vld [vmem:[%s726 + $0x3b4] sm:$0x1]
                  %1205 = vst [vmem:[%s727 + $0xee] sm:$0x1] %v1204
                  %v1206 = vld [vmem:[%s726 + $0x3b6] sm:$0x1]
                  %1207 = vst [vmem:[%s727 + $0xef] sm:$0x1] %v1206
                  %v1208 = vld [vmem:[%s726 + $0x3c0] sm:$0x1]
                  %1209 = vst [vmem:[%s727 + $0xf0] sm:$0x1] %v1208
                  %v1210 = vld [vmem:[%s726 + $0x3c2] sm:$0x1]
                  %1211 = vst [vmem:[%s727 + $0xf1] sm:$0x1] %v1210
                  %v1212 = vld [vmem:[%s726 + $0x3c4] sm:$0x1]
                  %1213 = vst [vmem:[%s727 + $0xf2] sm:$0x1] %v1212
                  %v1214 = vld [vmem:[%s726 + $0x3c6] sm:$0x1]
                  %1215 = vst [vmem:[%s727 + $0xf3] sm:$0x1] %v1214
                  %v1216 = vld [vmem:[%s726 + $0x3d0] sm:$0x1]
                  %1217 = vst [vmem:[%s727 + $0xf4] sm:$0x1] %v1216
                  %v1218 = vld [vmem:[%s726 + $0x3d2] sm:$0x1]
                  %1219 = vst [vmem:[%s727 + $0xf5] sm:$0x1] %v1218
                  %v1220 = vld [vmem:[%s726 + $0x3d4] sm:$0x1]
                  %1221 = vst [vmem:[%s727 + $0xf6] sm:$0x1] %v1220
                  %v1222 = vld [vmem:[%s726 + $0x3d6] sm:$0x1]
                  %1223 = vst [vmem:[%s727 + $0xf7] sm:$0x1] %v1222
                  %v1224 = vld [vmem:[%s726 + $0x3e0] sm:$0x1]
                  %1225 = vst [vmem:[%s727 + $0xf8] sm:$0x1] %v1224
                  %v1226 = vld [vmem:[%s726 + $0x3e2] sm:$0x1]
                  %1227 = vst [vmem:[%s727 + $0xf9] sm:$0x1] %v1226
                  %v1228 = vld [vmem:[%s726 + $0x3e4] sm:$0x1]
                  %1229 = vst [vmem:[%s727 + $0xfa] sm:$0x1] %v1228
                  %v1230 = vld [vmem:[%s726 + $0x3e6] sm:$0x1]
                  %1231 = vst [vmem:[%s727 + $0xfb] sm:$0x1] %v1230
                  %v1232 = vld [vmem:[%s726 + $0x3f0] sm:$0x1]
                  %1233 = vst [vmem:[%s727 + $0xfc] sm:$0x1] %v1232
                  %v1234 = vld [vmem:[%s726 + $0x3f2] sm:$0x1]
                  %1235 = vst [vmem:[%s727 + $0xfd] sm:$0x1] %v1234
                  %v1236 = vld [vmem:[%s726 + $0x3f4] sm:$0x1]
                  %1237 = vst [vmem:[%s727 + $0xfe] sm:$0x1] %v1236
                  %v1238 = vld [vmem:[%s726 + $0x3f6] sm:$0x1]
                  %1239 = vst [vmem:[%s727 + $0xff] sm:$0x1] %v1238
                $region67: #{downsample_module_forward.1} parent=54 // loop_footer
                  %s725 = sadd.s32 1, %s721
                $region68: #{downsample_module_forward.1} parent=54 // loop_footer_branch
                  %720 = sbr.rel target = $region64
                $region69: #{downsample_module_forward.1} parent=54 // loop_exit
                  _
              $region55: #{downsample_module_forward.1} parent=39 // pred_fallthru
                _
            $region40: #{downsample_module_forward.1} parent=35 // pred_fallthru
              _
            // Predicated region
            $region41: #{downsample_module_forward.1} parent=35 // pred_check
              _
            $region42: #{downsample_module_forward.1} parent=35 // pred_check_branch
              %187 = sbr.rel (0) target = $region44
            $region43: #{downsample_module_forward.1} parent=35 // pred_region
              loop: start=0, step=1, limit=1
              $region45: #{downsample_module_forward.1} parent=43 // loop_pre_header
                _
              $region46: #{downsample_module_forward.1} parent=43 // loop_header
                %s190 = sphi 0, %s194
                %p191 = scmp.ge.s32.totalorder %s190, 1
                %s195 = sphi %s181, %s181
                %s196 = sphi %s175, %s175
              $region47: #{downsample_module_forward.1} parent=43 // loop_header_branch
                %193 = sbr.rel (%p191) target = $region51
              $region48: #{downsample_module_forward.1} parent=43 // loop_body
                %v197 = vld [vmem:[%s195] sm:$0x1]
                %198 = vst [vmem:[%s196] sm:$0x1] %v197
                %v199 = vld [vmem:[%s195 + $0x2] sm:$0x1]
                %200 = vst [vmem:[%s196 + $0x1] sm:$0x1] %v199
                %v201 = vld [vmem:[%s195 + $0x4] sm:$0x1]
                %202 = vst [vmem:[%s196 + $0x2] sm:$0x1] %v201
                %v203 = vld [vmem:[%s195 + $0x6] sm:$0x1]
                %204 = vst [vmem:[%s196 + $0x3] sm:$0x1] %v203
                %v205 = vld [vmem:[%s195 + $0x10] sm:$0x1]
                %206 = vst [vmem:[%s196 + $0x4] sm:$0x1] %v205
                %v207 = vld [vmem:[%s195 + $0x12] sm:$0x1]
                %208 = vst [vmem:[%s196 + $0x5] sm:$0x1] %v207
                %v209 = vld [vmem:[%s195 + $0x14] sm:$0x1]
                %210 = vst [vmem:[%s196 + $0x6] sm:$0x1] %v209
                %v211 = vld [vmem:[%s195 + $0x16] sm:$0x1]
                %212 = vst [vmem:[%s196 + $0x7] sm:$0x1] %v211
                %v213 = vld [vmem:[%s195 + $0x20] sm:$0x1]
                %214 = vst [vmem:[%s196 + $0x8] sm:$0x1] %v213
                %v215 = vld [vmem:[%s195 + $0x22] sm:$0x1]
                %216 = vst [vmem:[%s196 + $0x9] sm:$0x1] %v215
                %v217 = vld [vmem:[%s195 + $0x24] sm:$0x1]
                %218 = vst [vmem:[%s196 + $0xa] sm:$0x1] %v217
                %v219 = vld [vmem:[%s195 + $0x26] sm:$0x1]
                %220 = vst [vmem:[%s196 + $0xb] sm:$0x1] %v219
                %v221 = vld [vmem:[%s195 + $0x30] sm:$0x1]
                %222 = vst [vmem:[%s196 + $0xc] sm:$0x1] %v221
                %v223 = vld [vmem:[%s195 + $0x32] sm:$0x1]
                %224 = vst [vmem:[%s196 + $0xd] sm:$0x1] %v223
                %v225 = vld [vmem:[%s195 + $0x34] sm:$0x1]
                %226 = vst [vmem:[%s196 + $0xe] sm:$0x1] %v225
                %v227 = vld [vmem:[%s195 + $0x36] sm:$0x1]
                %228 = vst [vmem:[%s196 + $0xf] sm:$0x1] %v227
                %v229 = vld [vmem:[%s195 + $0x40] sm:$0x1]
                %230 = vst [vmem:[%s196 + $0x10] sm:$0x1] %v229
                %v231 = vld [vmem:[%s195 + $0x42] sm:$0x1]
                %232 = vst [vmem:[%s196 + $0x11] sm:$0x1] %v231
                %v233 = vld [vmem:[%s195 + $0x44] sm:$0x1]
                %234 = vst [vmem:[%s196 + $0x12] sm:$0x1] %v233
                %v235 = vld [vmem:[%s195 + $0x46] sm:$0x1]
                %236 = vst [vmem:[%s196 + $0x13] sm:$0x1] %v235
                %v237 = vld [vmem:[%s195 + $0x50] sm:$0x1]
                %238 = vst [vmem:[%s196 + $0x14] sm:$0x1] %v237
                %v239 = vld [vmem:[%s195 + $0x52] sm:$0x1]
                %240 = vst [vmem:[%s196 + $0x15] sm:$0x1] %v239
                %v241 = vld [vmem:[%s195 + $0x54] sm:$0x1]
                %242 = vst [vmem:[%s196 + $0x16] sm:$0x1] %v241
                %v243 = vld [vmem:[%s195 + $0x56] sm:$0x1]
                %244 = vst [vmem:[%s196 + $0x17] sm:$0x1] %v243
                %v245 = vld [vmem:[%s195 + $0x60] sm:$0x1]
                %246 = vst [vmem:[%s196 + $0x18] sm:$0x1] %v245
                %v247 = vld [vmem:[%s195 + $0x62] sm:$0x1]
                %248 = vst [vmem:[%s196 + $0x19] sm:$0x1] %v247
                %v249 = vld [vmem:[%s195 + $0x64] sm:$0x1]
                %250 = vst [vmem:[%s196 + $0x1a] sm:$0x1] %v249
                %v251 = vld [vmem:[%s195 + $0x66] sm:$0x1]
                %252 = vst [vmem:[%s196 + $0x1b] sm:$0x1] %v251
                %v253 = vld [vmem:[%s195 + $0x70] sm:$0x1]
                %254 = vst [vmem:[%s196 + $0x1c] sm:$0x1] %v253
                %v255 = vld [vmem:[%s195 + $0x72] sm:$0x1]
                %256 = vst [vmem:[%s196 + $0x1d] sm:$0x1] %v255
                %v257 = vld [vmem:[%s195 + $0x74] sm:$0x1]
                %258 = vst [vmem:[%s196 + $0x1e] sm:$0x1] %v257
                %v259 = vld [vmem:[%s195 + $0x76] sm:$0x1]
                %260 = vst [vmem:[%s196 + $0x1f] sm:$0x1] %v259
                %v261 = vld [vmem:[%s195 + $0x80] sm:$0x1]
                %262 = vst [vmem:[%s196 + $0x20] sm:$0x1] %v261
                %v263 = vld [vmem:[%s195 + $0x82] sm:$0x1]
                %264 = vst [vmem:[%s196 + $0x21] sm:$0x1] %v263
                %v265 = vld [vmem:[%s195 + $0x84] sm:$0x1]
                %266 = vst [vmem:[%s196 + $0x22] sm:$0x1] %v265
                %v267 = vld [vmem:[%s195 + $0x86] sm:$0x1]
                %268 = vst [vmem:[%s196 + $0x23] sm:$0x1] %v267
                %v269 = vld [vmem:[%s195 + $0x90] sm:$0x1]
                %270 = vst [vmem:[%s196 + $0x24] sm:$0x1] %v269
                %v271 = vld [vmem:[%s195 + $0x92] sm:$0x1]
                %272 = vst [vmem:[%s196 + $0x25] sm:$0x1] %v271
                %v273 = vld [vmem:[%s195 + $0x94] sm:$0x1]
                %274 = vst [vmem:[%s196 + $0x26] sm:$0x1] %v273
                %v275 = vld [vmem:[%s195 + $0x96] sm:$0x1]
                %276 = vst [vmem:[%s196 + $0x27] sm:$0x1] %v275
                %v277 = vld [vmem:[%s195 + $0xa0] sm:$0x1]
                %278 = vst [vmem:[%s196 + $0x28] sm:$0x1] %v277
                %v279 = vld [vmem:[%s195 + $0xa2] sm:$0x1]
                %280 = vst [vmem:[%s196 + $0x29] sm:$0x1] %v279
                %v281 = vld [vmem:[%s195 + $0xa4] sm:$0x1]
                %282 = vst [vmem:[%s196 + $0x2a] sm:$0x1] %v281
                %v283 = vld [vmem:[%s195 + $0xa6] sm:$0x1]
                %284 = vst [vmem:[%s196 + $0x2b] sm:$0x1] %v283
                %v285 = vld [vmem:[%s195 + $0xb0] sm:$0x1]
                %286 = vst [vmem:[%s196 + $0x2c] sm:$0x1] %v285
                %v287 = vld [vmem:[%s195 + $0xb2] sm:$0x1]
                %288 = vst [vmem:[%s196 + $0x2d] sm:$0x1] %v287
                %v289 = vld [vmem:[%s195 + $0xb4] sm:$0x1]
                %290 = vst [vmem:[%s196 + $0x2e] sm:$0x1] %v289
                %v291 = vld [vmem:[%s195 + $0xb6] sm:$0x1]
                %292 = vst [vmem:[%s196 + $0x2f] sm:$0x1] %v291
                %v293 = vld [vmem:[%s195 + $0xc0] sm:$0x1]
                %294 = vst [vmem:[%s196 + $0x30] sm:$0x1] %v293
                %v295 = vld [vmem:[%s195 + $0xc2] sm:$0x1]
                %296 = vst [vmem:[%s196 + $0x31] sm:$0x1] %v295
                %v297 = vld [vmem:[%s195 + $0xc4] sm:$0x1]
                %298 = vst [vmem:[%s196 + $0x32] sm:$0x1] %v297
                %v299 = vld [vmem:[%s195 + $0xc6] sm:$0x1]
                %300 = vst [vmem:[%s196 + $0x33] sm:$0x1] %v299
                %v301 = vld [vmem:[%s195 + $0xd0] sm:$0x1]
                %302 = vst [vmem:[%s196 + $0x34] sm:$0x1] %v301
                %v303 = vld [vmem:[%s195 + $0xd2] sm:$0x1]
                %304 = vst [vmem:[%s196 + $0x35] sm:$0x1] %v303
                %v305 = vld [vmem:[%s195 + $0xd4] sm:$0x1]
                %306 = vst [vmem:[%s196 + $0x36] sm:$0x1] %v305
                %v307 = vld [vmem:[%s195 + $0xd6] sm:$0x1]
                %308 = vst [vmem:[%s196 + $0x37] sm:$0x1] %v307
                %v309 = vld [vmem:[%s195 + $0xe0] sm:$0x1]
                %310 = vst [vmem:[%s196 + $0x38] sm:$0x1] %v309
                %v311 = vld [vmem:[%s195 + $0xe2] sm:$0x1]
                %312 = vst [vmem:[%s196 + $0x39] sm:$0x1] %v311
                %v313 = vld [vmem:[%s195 + $0xe4] sm:$0x1]
                %314 = vst [vmem:[%s196 + $0x3a] sm:$0x1] %v313
                %v315 = vld [vmem:[%s195 + $0xe6] sm:$0x1]
                %316 = vst [vmem:[%s196 + $0x3b] sm:$0x1] %v315
                %v317 = vld [vmem:[%s195 + $0xf0] sm:$0x1]
                %318 = vst [vmem:[%s196 + $0x3c] sm:$0x1] %v317
                %v319 = vld [vmem:[%s195 + $0xf2] sm:$0x1]
                %320 = vst [vmem:[%s196 + $0x3d] sm:$0x1] %v319
                %v321 = vld [vmem:[%s195 + $0xf4] sm:$0x1]
                %322 = vst [vmem:[%s196 + $0x3e] sm:$0x1] %v321
                %v323 = vld [vmem:[%s195 + $0xf6] sm:$0x1]
                %324 = vst [vmem:[%s196 + $0x3f] sm:$0x1] %v323
                %v325 = vld [vmem:[%s195 + $0x100] sm:$0x1]
                %326 = vst [vmem:[%s196 + $0x40] sm:$0x1] %v325
                %v327 = vld [vmem:[%s195 + $0x102] sm:$0x1]
                %328 = vst [vmem:[%s196 + $0x41] sm:$0x1] %v327
                %v329 = vld [vmem:[%s195 + $0x104] sm:$0x1]
                %330 = vst [vmem:[%s196 + $0x42] sm:$0x1] %v329
                %v331 = vld [vmem:[%s195 + $0x106] sm:$0x1]
                %332 = vst [vmem:[%s196 + $0x43] sm:$0x1] %v331
                %v333 = vld [vmem:[%s195 + $0x110] sm:$0x1]
                %334 = vst [vmem:[%s196 + $0x44] sm:$0x1] %v333
                %v335 = vld [vmem:[%s195 + $0x112] sm:$0x1]
                %336 = vst [vmem:[%s196 + $0x45] sm:$0x1] %v335
                %v337 = vld [vmem:[%s195 + $0x114] sm:$0x1]
                %338 = vst [vmem:[%s196 + $0x46] sm:$0x1] %v337
                %v339 = vld [vmem:[%s195 + $0x116] sm:$0x1]
                %340 = vst [vmem:[%s196 + $0x47] sm:$0x1] %v339
                %v341 = vld [vmem:[%s195 + $0x120] sm:$0x1]
                %342 = vst [vmem:[%s196 + $0x48] sm:$0x1] %v341
                %v343 = vld [vmem:[%s195 + $0x122] sm:$0x1]
                %344 = vst [vmem:[%s196 + $0x49] sm:$0x1] %v343
                %v345 = vld [vmem:[%s195 + $0x124] sm:$0x1]
                %346 = vst [vmem:[%s196 + $0x4a] sm:$0x1] %v345
                %v347 = vld [vmem:[%s195 + $0x126] sm:$0x1]
                %348 = vst [vmem:[%s196 + $0x4b] sm:$0x1] %v347
                %v349 = vld [vmem:[%s195 + $0x130] sm:$0x1]
                %350 = vst [vmem:[%s196 + $0x4c] sm:$0x1] %v349
                %v351 = vld [vmem:[%s195 + $0x132] sm:$0x1]
                %352 = vst [vmem:[%s196 + $0x4d] sm:$0x1] %v351
                %v353 = vld [vmem:[%s195 + $0x134] sm:$0x1]
                %354 = vst [vmem:[%s196 + $0x4e] sm:$0x1] %v353
                %v355 = vld [vmem:[%s195 + $0x136] sm:$0x1]
                %356 = vst [vmem:[%s196 + $0x4f] sm:$0x1] %v355
                %v357 = vld [vmem:[%s195 + $0x140] sm:$0x1]
                %358 = vst [vmem:[%s196 + $0x50] sm:$0x1] %v357
                %v359 = vld [vmem:[%s195 + $0x142] sm:$0x1]
                %360 = vst [vmem:[%s196 + $0x51] sm:$0x1] %v359
                %v361 = vld [vmem:[%s195 + $0x144] sm:$0x1]
                %362 = vst [vmem:[%s196 + $0x52] sm:$0x1] %v361
                %v363 = vld [vmem:[%s195 + $0x146] sm:$0x1]
                %364 = vst [vmem:[%s196 + $0x53] sm:$0x1] %v363
                %v365 = vld [vmem:[%s195 + $0x150] sm:$0x1]
                %366 = vst [vmem:[%s196 + $0x54] sm:$0x1] %v365
                %v367 = vld [vmem:[%s195 + $0x152] sm:$0x1]
                %368 = vst [vmem:[%s196 + $0x55] sm:$0x1] %v367
                %v369 = vld [vmem:[%s195 + $0x154] sm:$0x1]
                %370 = vst [vmem:[%s196 + $0x56] sm:$0x1] %v369
                %v371 = vld [vmem:[%s195 + $0x156] sm:$0x1]
                %372 = vst [vmem:[%s196 + $0x57] sm:$0x1] %v371
                %v373 = vld [vmem:[%s195 + $0x160] sm:$0x1]
                %374 = vst [vmem:[%s196 + $0x58] sm:$0x1] %v373
                %v375 = vld [vmem:[%s195 + $0x162] sm:$0x1]
                %376 = vst [vmem:[%s196 + $0x59] sm:$0x1] %v375
                %v377 = vld [vmem:[%s195 + $0x164] sm:$0x1]
                %378 = vst [vmem:[%s196 + $0x5a] sm:$0x1] %v377
                %v379 = vld [vmem:[%s195 + $0x166] sm:$0x1]
                %380 = vst [vmem:[%s196 + $0x5b] sm:$0x1] %v379
                %v381 = vld [vmem:[%s195 + $0x170] sm:$0x1]
                %382 = vst [vmem:[%s196 + $0x5c] sm:$0x1] %v381
                %v383 = vld [vmem:[%s195 + $0x172] sm:$0x1]
                %384 = vst [vmem:[%s196 + $0x5d] sm:$0x1] %v383
                %v385 = vld [vmem:[%s195 + $0x174] sm:$0x1]
                %386 = vst [vmem:[%s196 + $0x5e] sm:$0x1] %v385
                %v387 = vld [vmem:[%s195 + $0x176] sm:$0x1]
                %388 = vst [vmem:[%s196 + $0x5f] sm:$0x1] %v387
                %v389 = vld [vmem:[%s195 + $0x180] sm:$0x1]
                %390 = vst [vmem:[%s196 + $0x60] sm:$0x1] %v389
                %v391 = vld [vmem:[%s195 + $0x182] sm:$0x1]
                %392 = vst [vmem:[%s196 + $0x61] sm:$0x1] %v391
                %v393 = vld [vmem:[%s195 + $0x184] sm:$0x1]
                %394 = vst [vmem:[%s196 + $0x62] sm:$0x1] %v393
                %v395 = vld [vmem:[%s195 + $0x186] sm:$0x1]
                %396 = vst [vmem:[%s196 + $0x63] sm:$0x1] %v395
                %v397 = vld [vmem:[%s195 + $0x190] sm:$0x1]
                %398 = vst [vmem:[%s196 + $0x64] sm:$0x1] %v397
                %v399 = vld [vmem:[%s195 + $0x192] sm:$0x1]
                %400 = vst [vmem:[%s196 + $0x65] sm:$0x1] %v399
                %v401 = vld [vmem:[%s195 + $0x194] sm:$0x1]
                %402 = vst [vmem:[%s196 + $0x66] sm:$0x1] %v401
                %v403 = vld [vmem:[%s195 + $0x196] sm:$0x1]
                %404 = vst [vmem:[%s196 + $0x67] sm:$0x1] %v403
                %v405 = vld [vmem:[%s195 + $0x1a0] sm:$0x1]
                %406 = vst [vmem:[%s196 + $0x68] sm:$0x1] %v405
                %v407 = vld [vmem:[%s195 + $0x1a2] sm:$0x1]
                %408 = vst [vmem:[%s196 + $0x69] sm:$0x1] %v407
                %v409 = vld [vmem:[%s195 + $0x1a4] sm:$0x1]
                %410 = vst [vmem:[%s196 + $0x6a] sm:$0x1] %v409
                %v411 = vld [vmem:[%s195 + $0x1a6] sm:$0x1]
                %412 = vst [vmem:[%s196 + $0x6b] sm:$0x1] %v411
                %v413 = vld [vmem:[%s195 + $0x1b0] sm:$0x1]
                %414 = vst [vmem:[%s196 + $0x6c] sm:$0x1] %v413
                %v415 = vld [vmem:[%s195 + $0x1b2] sm:$0x1]
                %416 = vst [vmem:[%s196 + $0x6d] sm:$0x1] %v415
                %v417 = vld [vmem:[%s195 + $0x1b4] sm:$0x1]
                %418 = vst [vmem:[%s196 + $0x6e] sm:$0x1] %v417
                %v419 = vld [vmem:[%s195 + $0x1b6] sm:$0x1]
                %420 = vst [vmem:[%s196 + $0x6f] sm:$0x1] %v419
                %v421 = vld [vmem:[%s195 + $0x1c0] sm:$0x1]
                %422 = vst [vmem:[%s196 + $0x70] sm:$0x1] %v421
                %v423 = vld [vmem:[%s195 + $0x1c2] sm:$0x1]
                %424 = vst [vmem:[%s196 + $0x71] sm:$0x1] %v423
                %v425 = vld [vmem:[%s195 + $0x1c4] sm:$0x1]
                %426 = vst [vmem:[%s196 + $0x72] sm:$0x1] %v425
                %v427 = vld [vmem:[%s195 + $0x1c6] sm:$0x1]
                %428 = vst [vmem:[%s196 + $0x73] sm:$0x1] %v427
                %v429 = vld [vmem:[%s195 + $0x1d0] sm:$0x1]
                %430 = vst [vmem:[%s196 + $0x74] sm:$0x1] %v429
                %v431 = vld [vmem:[%s195 + $0x1d2] sm:$0x1]
                %432 = vst [vmem:[%s196 + $0x75] sm:$0x1] %v431
                %v433 = vld [vmem:[%s195 + $0x1d4] sm:$0x1]
                %434 = vst [vmem:[%s196 + $0x76] sm:$0x1] %v433
                %v435 = vld [vmem:[%s195 + $0x1d6] sm:$0x1]
                %436 = vst [vmem:[%s196 + $0x77] sm:$0x1] %v435
                %v437 = vld [vmem:[%s195 + $0x1e0] sm:$0x1]
                %438 = vst [vmem:[%s196 + $0x78] sm:$0x1] %v437
                %v439 = vld [vmem:[%s195 + $0x1e2] sm:$0x1]
                %440 = vst [vmem:[%s196 + $0x79] sm:$0x1] %v439
                %v441 = vld [vmem:[%s195 + $0x1e4] sm:$0x1]
                %442 = vst [vmem:[%s196 + $0x7a] sm:$0x1] %v441
                %v443 = vld [vmem:[%s195 + $0x1e6] sm:$0x1]
                %444 = vst [vmem:[%s196 + $0x7b] sm:$0x1] %v443
                %v445 = vld [vmem:[%s195 + $0x1f0] sm:$0x1]
                %446 = vst [vmem:[%s196 + $0x7c] sm:$0x1] %v445
                %v447 = vld [vmem:[%s195 + $0x1f2] sm:$0x1]
                %448 = vst [vmem:[%s196 + $0x7d] sm:$0x1] %v447
                %v449 = vld [vmem:[%s195 + $0x1f4] sm:$0x1]
                %450 = vst [vmem:[%s196 + $0x7e] sm:$0x1] %v449
                %v451 = vld [vmem:[%s195 + $0x1f6] sm:$0x1]
                %452 = vst [vmem:[%s196 + $0x7f] sm:$0x1] %v451
                %v453 = vld [vmem:[%s195 + $0x200] sm:$0x1]
                %454 = vst [vmem:[%s196 + $0x80] sm:$0x1] %v453
                %v455 = vld [vmem:[%s195 + $0x202] sm:$0x1]
                %456 = vst [vmem:[%s196 + $0x81] sm:$0x1] %v455
                %v457 = vld [vmem:[%s195 + $0x204] sm:$0x1]
                %458 = vst [vmem:[%s196 + $0x82] sm:$0x1] %v457
                %v459 = vld [vmem:[%s195 + $0x206] sm:$0x1]
                %460 = vst [vmem:[%s196 + $0x83] sm:$0x1] %v459
                %v461 = vld [vmem:[%s195 + $0x210] sm:$0x1]
                %462 = vst [vmem:[%s196 + $0x84] sm:$0x1] %v461
                %v463 = vld [vmem:[%s195 + $0x212] sm:$0x1]
                %464 = vst [vmem:[%s196 + $0x85] sm:$0x1] %v463
                %v465 = vld [vmem:[%s195 + $0x214] sm:$0x1]
                %466 = vst [vmem:[%s196 + $0x86] sm:$0x1] %v465
                %v467 = vld [vmem:[%s195 + $0x216] sm:$0x1]
                %468 = vst [vmem:[%s196 + $0x87] sm:$0x1] %v467
                %v469 = vld [vmem:[%s195 + $0x220] sm:$0x1]
                %470 = vst [vmem:[%s196 + $0x88] sm:$0x1] %v469
                %v471 = vld [vmem:[%s195 + $0x222] sm:$0x1]
                %472 = vst [vmem:[%s196 + $0x89] sm:$0x1] %v471
                %v473 = vld [vmem:[%s195 + $0x224] sm:$0x1]
                %474 = vst [vmem:[%s196 + $0x8a] sm:$0x1] %v473
                %v475 = vld [vmem:[%s195 + $0x226] sm:$0x1]
                %476 = vst [vmem:[%s196 + $0x8b] sm:$0x1] %v475
                %v477 = vld [vmem:[%s195 + $0x230] sm:$0x1]
                %478 = vst [vmem:[%s196 + $0x8c] sm:$0x1] %v477
                %v479 = vld [vmem:[%s195 + $0x232] sm:$0x1]
                %480 = vst [vmem:[%s196 + $0x8d] sm:$0x1] %v479
                %v481 = vld [vmem:[%s195 + $0x234] sm:$0x1]
                %482 = vst [vmem:[%s196 + $0x8e] sm:$0x1] %v481
                %v483 = vld [vmem:[%s195 + $0x236] sm:$0x1]
                %484 = vst [vmem:[%s196 + $0x8f] sm:$0x1] %v483
                %v485 = vld [vmem:[%s195 + $0x240] sm:$0x1]
                %486 = vst [vmem:[%s196 + $0x90] sm:$0x1] %v485
                %v487 = vld [vmem:[%s195 + $0x242] sm:$0x1]
                %488 = vst [vmem:[%s196 + $0x91] sm:$0x1] %v487
                %v489 = vld [vmem:[%s195 + $0x244] sm:$0x1]
                %490 = vst [vmem:[%s196 + $0x92] sm:$0x1] %v489
                %v491 = vld [vmem:[%s195 + $0x246] sm:$0x1]
                %492 = vst [vmem:[%s196 + $0x93] sm:$0x1] %v491
                %v493 = vld [vmem:[%s195 + $0x250] sm:$0x1]
                %494 = vst [vmem:[%s196 + $0x94] sm:$0x1] %v493
                %v495 = vld [vmem:[%s195 + $0x252] sm:$0x1]
                %496 = vst [vmem:[%s196 + $0x95] sm:$0x1] %v495
                %v497 = vld [vmem:[%s195 + $0x254] sm:$0x1]
                %498 = vst [vmem:[%s196 + $0x96] sm:$0x1] %v497
                %v499 = vld [vmem:[%s195 + $0x256] sm:$0x1]
                %500 = vst [vmem:[%s196 + $0x97] sm:$0x1] %v499
                %v501 = vld [vmem:[%s195 + $0x260] sm:$0x1]
                %502 = vst [vmem:[%s196 + $0x98] sm:$0x1] %v501
                %v503 = vld [vmem:[%s195 + $0x262] sm:$0x1]
                %504 = vst [vmem:[%s196 + $0x99] sm:$0x1] %v503
                %v505 = vld [vmem:[%s195 + $0x264] sm:$0x1]
                %506 = vst [vmem:[%s196 + $0x9a] sm:$0x1] %v505
                %v507 = vld [vmem:[%s195 + $0x266] sm:$0x1]
                %508 = vst [vmem:[%s196 + $0x9b] sm:$0x1] %v507
                %v509 = vld [vmem:[%s195 + $0x270] sm:$0x1]
                %510 = vst [vmem:[%s196 + $0x9c] sm:$0x1] %v509
                %v511 = vld [vmem:[%s195 + $0x272] sm:$0x1]
                %512 = vst [vmem:[%s196 + $0x9d] sm:$0x1] %v511
                %v513 = vld [vmem:[%s195 + $0x274] sm:$0x1]
                %514 = vst [vmem:[%s196 + $0x9e] sm:$0x1] %v513
                %v515 = vld [vmem:[%s195 + $0x276] sm:$0x1]
                %516 = vst [vmem:[%s196 + $0x9f] sm:$0x1] %v515
                %v517 = vld [vmem:[%s195 + $0x280] sm:$0x1]
                %518 = vst [vmem:[%s196 + $0xa0] sm:$0x1] %v517
                %v519 = vld [vmem:[%s195 + $0x282] sm:$0x1]
                %520 = vst [vmem:[%s196 + $0xa1] sm:$0x1] %v519
                %v521 = vld [vmem:[%s195 + $0x284] sm:$0x1]
                %522 = vst [vmem:[%s196 + $0xa2] sm:$0x1] %v521
                %v523 = vld [vmem:[%s195 + $0x286] sm:$0x1]
                %524 = vst [vmem:[%s196 + $0xa3] sm:$0x1] %v523
                %v525 = vld [vmem:[%s195 + $0x290] sm:$0x1]
                %526 = vst [vmem:[%s196 + $0xa4] sm:$0x1] %v525
                %v527 = vld [vmem:[%s195 + $0x292] sm:$0x1]
                %528 = vst [vmem:[%s196 + $0xa5] sm:$0x1] %v527
                %v529 = vld [vmem:[%s195 + $0x294] sm:$0x1]
                %530 = vst [vmem:[%s196 + $0xa6] sm:$0x1] %v529
                %v531 = vld [vmem:[%s195 + $0x296] sm:$0x1]
                %532 = vst [vmem:[%s196 + $0xa7] sm:$0x1] %v531
                %v533 = vld [vmem:[%s195 + $0x2a0] sm:$0x1]
                %534 = vst [vmem:[%s196 + $0xa8] sm:$0x1] %v533
                %v535 = vld [vmem:[%s195 + $0x2a2] sm:$0x1]
                %536 = vst [vmem:[%s196 + $0xa9] sm:$0x1] %v535
                %v537 = vld [vmem:[%s195 + $0x2a4] sm:$0x1]
                %538 = vst [vmem:[%s196 + $0xaa] sm:$0x1] %v537
                %v539 = vld [vmem:[%s195 + $0x2a6] sm:$0x1]
                %540 = vst [vmem:[%s196 + $0xab] sm:$0x1] %v539
                %v541 = vld [vmem:[%s195 + $0x2b0] sm:$0x1]
                %542 = vst [vmem:[%s196 + $0xac] sm:$0x1] %v541
                %v543 = vld [vmem:[%s195 + $0x2b2] sm:$0x1]
                %544 = vst [vmem:[%s196 + $0xad] sm:$0x1] %v543
                %v545 = vld [vmem:[%s195 + $0x2b4] sm:$0x1]
                %546 = vst [vmem:[%s196 + $0xae] sm:$0x1] %v545
                %v547 = vld [vmem:[%s195 + $0x2b6] sm:$0x1]
                %548 = vst [vmem:[%s196 + $0xaf] sm:$0x1] %v547
                %v549 = vld [vmem:[%s195 + $0x2c0] sm:$0x1]
                %550 = vst [vmem:[%s196 + $0xb0] sm:$0x1] %v549
                %v551 = vld [vmem:[%s195 + $0x2c2] sm:$0x1]
                %552 = vst [vmem:[%s196 + $0xb1] sm:$0x1] %v551
                %v553 = vld [vmem:[%s195 + $0x2c4] sm:$0x1]
                %554 = vst [vmem:[%s196 + $0xb2] sm:$0x1] %v553
                %v555 = vld [vmem:[%s195 + $0x2c6] sm:$0x1]
                %556 = vst [vmem:[%s196 + $0xb3] sm:$0x1] %v555
                %v557 = vld [vmem:[%s195 + $0x2d0] sm:$0x1]
                %558 = vst [vmem:[%s196 + $0xb4] sm:$0x1] %v557
                %v559 = vld [vmem:[%s195 + $0x2d2] sm:$0x1]
                %560 = vst [vmem:[%s196 + $0xb5] sm:$0x1] %v559
                %v561 = vld [vmem:[%s195 + $0x2d4] sm:$0x1]
                %562 = vst [vmem:[%s196 + $0xb6] sm:$0x1] %v561
                %v563 = vld [vmem:[%s195 + $0x2d6] sm:$0x1]
                %564 = vst [vmem:[%s196 + $0xb7] sm:$0x1] %v563
                %v565 = vld [vmem:[%s195 + $0x2e0] sm:$0x1]
                %566 = vst [vmem:[%s196 + $0xb8] sm:$0x1] %v565
                %v567 = vld [vmem:[%s195 + $0x2e2] sm:$0x1]
                %568 = vst [vmem:[%s196 + $0xb9] sm:$0x1] %v567
                %v569 = vld [vmem:[%s195 + $0x2e4] sm:$0x1]
                %570 = vst [vmem:[%s196 + $0xba] sm:$0x1] %v569
                %v571 = vld [vmem:[%s195 + $0x2e6] sm:$0x1]
                %572 = vst [vmem:[%s196 + $0xbb] sm:$0x1] %v571
                %v573 = vld [vmem:[%s195 + $0x2f0] sm:$0x1]
                %574 = vst [vmem:[%s196 + $0xbc] sm:$0x1] %v573
                %v575 = vld [vmem:[%s195 + $0x2f2] sm:$0x1]
                %576 = vst [vmem:[%s196 + $0xbd] sm:$0x1] %v575
                %v577 = vld [vmem:[%s195 + $0x2f4] sm:$0x1]
                %578 = vst [vmem:[%s196 + $0xbe] sm:$0x1] %v577
                %v579 = vld [vmem:[%s195 + $0x2f6] sm:$0x1]
                %580 = vst [vmem:[%s196 + $0xbf] sm:$0x1] %v579
                %v581 = vld [vmem:[%s195 + $0x300] sm:$0x1]
                %582 = vst [vmem:[%s196 + $0xc0] sm:$0x1] %v581
                %v583 = vld [vmem:[%s195 + $0x302] sm:$0x1]
                %584 = vst [vmem:[%s196 + $0xc1] sm:$0x1] %v583
                %v585 = vld [vmem:[%s195 + $0x304] sm:$0x1]
                %586 = vst [vmem:[%s196 + $0xc2] sm:$0x1] %v585
                %v587 = vld [vmem:[%s195 + $0x306] sm:$0x1]
                %588 = vst [vmem:[%s196 + $0xc3] sm:$0x1] %v587
                %v589 = vld [vmem:[%s195 + $0x310] sm:$0x1]
                %590 = vst [vmem:[%s196 + $0xc4] sm:$0x1] %v589
                %v591 = vld [vmem:[%s195 + $0x312] sm:$0x1]
                %592 = vst [vmem:[%s196 + $0xc5] sm:$0x1] %v591
                %v593 = vld [vmem:[%s195 + $0x314] sm:$0x1]
                %594 = vst [vmem:[%s196 + $0xc6] sm:$0x1] %v593
                %v595 = vld [vmem:[%s195 + $0x316] sm:$0x1]
                %596 = vst [vmem:[%s196 + $0xc7] sm:$0x1] %v595
                %v597 = vld [vmem:[%s195 + $0x320] sm:$0x1]
                %598 = vst [vmem:[%s196 + $0xc8] sm:$0x1] %v597
                %v599 = vld [vmem:[%s195 + $0x322] sm:$0x1]
                %600 = vst [vmem:[%s196 + $0xc9] sm:$0x1] %v599
                %v601 = vld [vmem:[%s195 + $0x324] sm:$0x1]
                %602 = vst [vmem:[%s196 + $0xca] sm:$0x1] %v601
                %v603 = vld [vmem:[%s195 + $0x326] sm:$0x1]
                %604 = vst [vmem:[%s196 + $0xcb] sm:$0x1] %v603
                %v605 = vld [vmem:[%s195 + $0x330] sm:$0x1]
                %606 = vst [vmem:[%s196 + $0xcc] sm:$0x1] %v605
                %v607 = vld [vmem:[%s195 + $0x332] sm:$0x1]
                %608 = vst [vmem:[%s196 + $0xcd] sm:$0x1] %v607
                %v609 = vld [vmem:[%s195 + $0x334] sm:$0x1]
                %610 = vst [vmem:[%s196 + $0xce] sm:$0x1] %v609
                %v611 = vld [vmem:[%s195 + $0x336] sm:$0x1]
                %612 = vst [vmem:[%s196 + $0xcf] sm:$0x1] %v611
                %v613 = vld [vmem:[%s195 + $0x340] sm:$0x1]
                %614 = vst [vmem:[%s196 + $0xd0] sm:$0x1] %v613
                %v615 = vld [vmem:[%s195 + $0x342] sm:$0x1]
                %616 = vst [vmem:[%s196 + $0xd1] sm:$0x1] %v615
                %v617 = vld [vmem:[%s195 + $0x344] sm:$0x1]
                %618 = vst [vmem:[%s196 + $0xd2] sm:$0x1] %v617
                %v619 = vld [vmem:[%s195 + $0x346] sm:$0x1]
                %620 = vst [vmem:[%s196 + $0xd3] sm:$0x1] %v619
                %v621 = vld [vmem:[%s195 + $0x350] sm:$0x1]
                %622 = vst [vmem:[%s196 + $0xd4] sm:$0x1] %v621
                %v623 = vld [vmem:[%s195 + $0x352] sm:$0x1]
                %624 = vst [vmem:[%s196 + $0xd5] sm:$0x1] %v623
                %v625 = vld [vmem:[%s195 + $0x354] sm:$0x1]
                %626 = vst [vmem:[%s196 + $0xd6] sm:$0x1] %v625
                %v627 = vld [vmem:[%s195 + $0x356] sm:$0x1]
                %628 = vst [vmem:[%s196 + $0xd7] sm:$0x1] %v627
                %v629 = vld [vmem:[%s195 + $0x360] sm:$0x1]
                %630 = vst [vmem:[%s196 + $0xd8] sm:$0x1] %v629
                %v631 = vld [vmem:[%s195 + $0x362] sm:$0x1]
                %632 = vst [vmem:[%s196 + $0xd9] sm:$0x1] %v631
                %v633 = vld [vmem:[%s195 + $0x364] sm:$0x1]
                %634 = vst [vmem:[%s196 + $0xda] sm:$0x1] %v633
                %v635 = vld [vmem:[%s195 + $0x366] sm:$0x1]
                %636 = vst [vmem:[%s196 + $0xdb] sm:$0x1] %v635
                %v637 = vld [vmem:[%s195 + $0x370] sm:$0x1]
                %638 = vst [vmem:[%s196 + $0xdc] sm:$0x1] %v637
                %v639 = vld [vmem:[%s195 + $0x372] sm:$0x1]
                %640 = vst [vmem:[%s196 + $0xdd] sm:$0x1] %v639
                %v641 = vld [vmem:[%s195 + $0x374] sm:$0x1]
                %642 = vst [vmem:[%s196 + $0xde] sm:$0x1] %v641
                %v643 = vld [vmem:[%s195 + $0x376] sm:$0x1]
                %644 = vst [vmem:[%s196 + $0xdf] sm:$0x1] %v643
                %v645 = vld [vmem:[%s195 + $0x380] sm:$0x1]
                %646 = vst [vmem:[%s196 + $0xe0] sm:$0x1] %v645
                %v647 = vld [vmem:[%s195 + $0x382] sm:$0x1]
                %648 = vst [vmem:[%s196 + $0xe1] sm:$0x1] %v647
                %v649 = vld [vmem:[%s195 + $0x384] sm:$0x1]
                %650 = vst [vmem:[%s196 + $0xe2] sm:$0x1] %v649
                %v651 = vld [vmem:[%s195 + $0x386] sm:$0x1]
                %652 = vst [vmem:[%s196 + $0xe3] sm:$0x1] %v651
                %v653 = vld [vmem:[%s195 + $0x390] sm:$0x1]
                %654 = vst [vmem:[%s196 + $0xe4] sm:$0x1] %v653
                %v655 = vld [vmem:[%s195 + $0x392] sm:$0x1]
                %656 = vst [vmem:[%s196 + $0xe5] sm:$0x1] %v655
                %v657 = vld [vmem:[%s195 + $0x394] sm:$0x1]
                %658 = vst [vmem:[%s196 + $0xe6] sm:$0x1] %v657
                %v659 = vld [vmem:[%s195 + $0x396] sm:$0x1]
                %660 = vst [vmem:[%s196 + $0xe7] sm:$0x1] %v659
                %v661 = vld [vmem:[%s195 + $0x3a0] sm:$0x1]
                %662 = vst [vmem:[%s196 + $0xe8] sm:$0x1] %v661
                %v663 = vld [vmem:[%s195 + $0x3a2] sm:$0x1]
                %664 = vst [vmem:[%s196 + $0xe9] sm:$0x1] %v663
                %v665 = vld [vmem:[%s195 + $0x3a4] sm:$0x1]
                %666 = vst [vmem:[%s196 + $0xea] sm:$0x1] %v665
                %v667 = vld [vmem:[%s195 + $0x3a6] sm:$0x1]
                %668 = vst [vmem:[%s196 + $0xeb] sm:$0x1] %v667
                %v669 = vld [vmem:[%s195 + $0x3b0] sm:$0x1]
                %670 = vst [vmem:[%s196 + $0xec] sm:$0x1] %v669
                %v671 = vld [vmem:[%s195 + $0x3b2] sm:$0x1]
                %672 = vst [vmem:[%s196 + $0xed] sm:$0x1] %v671
                %v673 = vld [vmem:[%s195 + $0x3b4] sm:$0x1]
                %674 = vst [vmem:[%s196 + $0xee] sm:$0x1] %v673
                %v675 = vld [vmem:[%s195 + $0x3b6] sm:$0x1]
                %676 = vst [vmem:[%s196 + $0xef] sm:$0x1] %v675
                %v677 = vld [vmem:[%s195 + $0x3c0] sm:$0x1]
                %678 = vst [vmem:[%s196 + $0xf0] sm:$0x1] %v677
                %v679 = vld [vmem:[%s195 + $0x3c2] sm:$0x1]
                %680 = vst [vmem:[%s196 + $0xf1] sm:$0x1] %v679
                %v681 = vld [vmem:[%s195 + $0x3c4] sm:$0x1]
                %682 = vst [vmem:[%s196 + $0xf2] sm:$0x1] %v681
                %v683 = vld [vmem:[%s195 + $0x3c6] sm:$0x1]
                %684 = vst [vmem:[%s196 + $0xf3] sm:$0x1] %v683
                %v685 = vld [vmem:[%s195 + $0x3d0] sm:$0x1]
                %686 = vst [vmem:[%s196 + $0xf4] sm:$0x1] %v685
                %v687 = vld [vmem:[%s195 + $0x3d2] sm:$0x1]
                %688 = vst [vmem:[%s196 + $0xf5] sm:$0x1] %v687
                %v689 = vld [vmem:[%s195 + $0x3d4] sm:$0x1]
                %690 = vst [vmem:[%s196 + $0xf6] sm:$0x1] %v689
                %v691 = vld [vmem:[%s195 + $0x3d6] sm:$0x1]
                %692 = vst [vmem:[%s196 + $0xf7] sm:$0x1] %v691
                %v693 = vld [vmem:[%s195 + $0x3e0] sm:$0x1]
                %694 = vst [vmem:[%s196 + $0xf8] sm:$0x1] %v693
                %v695 = vld [vmem:[%s195 + $0x3e2] sm:$0x1]
                %696 = vst [vmem:[%s196 + $0xf9] sm:$0x1] %v695
                %v697 = vld [vmem:[%s195 + $0x3e4] sm:$0x1]
                %698 = vst [vmem:[%s196 + $0xfa] sm:$0x1] %v697
                %v699 = vld [vmem:[%s195 + $0x3e6] sm:$0x1]
                %700 = vst [vmem:[%s196 + $0xfb] sm:$0x1] %v699
                %v701 = vld [vmem:[%s195 + $0x3f0] sm:$0x1]
                %702 = vst [vmem:[%s196 + $0xfc] sm:$0x1] %v701
                %v703 = vld [vmem:[%s195 + $0x3f2] sm:$0x1]
                %704 = vst [vmem:[%s196 + $0xfd] sm:$0x1] %v703
                %v705 = vld [vmem:[%s195 + $0x3f4] sm:$0x1]
                %706 = vst [vmem:[%s196 + $0xfe] sm:$0x1] %v705
                %v707 = vld [vmem:[%s195 + $0x3f6] sm:$0x1]
                %708 = vst [vmem:[%s196 + $0xff] sm:$0x1] %v707
              $region49: #{downsample_module_forward.1} parent=43 // loop_footer
                %s194 = sadd.s32 1, %s190
              $region50: #{downsample_module_forward.1} parent=43 // loop_footer_branch
                %189 = sbr.rel target = $region46
              $region51: #{downsample_module_forward.1} parent=43 // loop_exit
                _
            $region44: #{downsample_module_forward.1} parent=35 // pred_fallthru
              _
          $region36: #{downsample_module_forward.1} parent=31 // pred_fallthru
            _
          %1240 = vnop
        $region32: #{downsample_module_forward.1} parent=27 // pred_fallthru
          _
      $region28: #{downsample_module_forward.1} parent=5 // pred_fallthru
        _
      %p1241 = scmp.le.s32.totalorder 1, %s10
      %p1242 = scmp.lt.s32.totalorder %s10, 3
      %p1243 = pnand %p1241, %p1242
      %p1244 = pneg %p1243
      // Predicated region
      $region70: #{downsample_module_forward.1} parent=5 // pred_check
        _
      $region71: #{downsample_module_forward.1} parent=5 // pred_check_branch
        %1246 = sbr.rel (%p1243) target = $region73
      $region72: #{downsample_module_forward.1} parent=5 // pred_region
        %s1247 = ssub.s32 %s10, 1
        %s1248 = sand.u32 %s37, 1
        %s1249 = sand.u32 %s37, 1
        %s1250 = smul.addr %s1249, 256
        %s1251 = scalar_lea.vmem [#allocation2], %s1250
        // Predicated region
        $region74: #{downsample_module_forward.1} parent=72 // pred_check
          %p1252 = pneg %p50
        $region75: #{downsample_module_forward.1} parent=72 // pred_check_branch
          %1254 = sbr.rel (%p1252) target = $region77
        $region76: #{downsample_module_forward.1} parent=72 // pred_region
          _
        $region77: #{downsample_module_forward.1} parent=72 // pred_fallthru
          _
        %s1255 = sand.u32 %s37, 1
        %s1256 = sand.u32 %s37, 1
        %s1257 = smul.addr %s1256, 256
        %s1258 = scalar_lea.vmem [#allocation2], %s1257
        %p1259 = pneg %p50
        %p1260 = pneg %p47
        %p1261 = pneg %p71
        %p1262 = pneg %p68
        %p1263 = pneg %p92
        %p1264 = pneg %p89
        %p1265 = pneg %p113
        %p1266 = pneg %p110
        %p1267 = pneg %p141
        %p1268 = pneg %p138
        %s1269 = sand.u32 %s128, 1
        %s1270 = sand.u32 %s128, 1
        %s1271 = smul.addr %s1270, 64
        %s1272 = scalar_lea.vmem [#allocation3], %s1271
        %s1273 = smul.u32 2, %s19
        %s1274 = smul.u32 4, %s20
        %s1275 = smul.u32 2, %s19
        %s1276 = smul.u32 4, %s20
        %v1278 = vld [vmem:[%s1] sm:$0xff]
        %v1279 = vld [vmem:[%s2] sm:$0xf]
        %v1280 = vld [vmem:[%s2 + $0x4] sm:$0xf]
        %v1281 = vld [vmem:[%s3] sm:$0xff]
        loop: start=0, step=1, limit=2
        $region78: #{downsample_module_forward.1} parent=72 // loop_pre_header
          _
        $region79: #{downsample_module_forward.1} parent=72 // loop_header
          %s1283 = sphi 0, %s1287
          %p1284 = scmp.ge.s32.totalorder %s1283, 2
        $region80: #{downsample_module_forward.1} parent=72 // loop_header_branch
          %1286 = sbr.rel (%p1284) target = $region84
        $region81: #{downsample_module_forward.1} parent=72 // loop_body
          %s1288 = smul.u32 %s1283, 16
          %s1289 = scalar_lea.vmem %s1251, %s1288 [#allocation2]
          %v1290 = vld [vmem:[%s1289] sm:$0x1]
          %v1291 = vld [vmem:[%s1289 + $0x4] sm:$0x1]
          %v1292 = vld [vmem:[%s1289 + $0x8] sm:$0x1]
          %v1293 = vld [vmem:[%s1289 + $0xc] sm:$0x1]
          %v1294 = vmul.f32 %v1290, 0.6666667
          %v1295 = vmul.f32 %v1291, 0.6666667
          %v1296 = vmul.f32 %v1292, 0.6666667
          %v1297 = vmul.f32 %v1293, 0.6666667
          %vm1298 = vcmp.ge.f32.partialorder %v1294, 1.0
          %vm1299 = vcmp.ge.f32.partialorder %v1295, 1.0
          %vm1300 = vcmp.ge.f32.partialorder %v1296, 1.0
          %vm1301 = vcmp.ge.f32.partialorder %v1297, 1.0
          %v1302 = vsel %vm1298, 1.0, 0.0
          %v1303 = vsel %vm1299, 1.0, 0.0
          %v1304 = vsel %vm1300, 1.0, 0.0
          %v1305 = vsel %vm1301, 1.0, 0.0
          %v1306 = vsel %vm1298, 0.0, %v1294
          %v1307 = vsel %vm1299, 0.0, %v1295
          %v1308 = vsel %vm1300, 0.0, %v1296
          %v1309 = vsel %vm1301, 0.0, %v1297
          %s1310 = sadd.s32 %s1288, 32
          %s1311 = scalar_lea.vmem %s1251, %s1310 [#allocation2]
          %v1312 = vld [vmem:[%s1311] sm:$0x1]
          %v1313 = vld [vmem:[%s1311 + $0x4] sm:$0x1]
          %v1314 = vld [vmem:[%s1311 + $0x8] sm:$0x1]
          %v1315 = vld [vmem:[%s1311 + $0xc] sm:$0x1]
          %v1316 = vsub.f32 %v1312, %v1306
          %v1317 = vsub.f32 %v1313, %v1307
          %v1318 = vsub.f32 %v1314, %v1308
          %v1319 = vsub.f32 %v1315, %v1309
          %v1320 = vmul.f32 %v1316, 0.6666667
          %v1321 = vmul.f32 %v1317, 0.6666667
          %v1322 = vmul.f32 %v1318, 0.6666667
          %v1323 = vmul.f32 %v1319, 0.6666667
          %v1324 = vadd.f32 %v1306, %v1320
          %v1325 = vadd.f32 %v1307, %v1321
          %v1326 = vadd.f32 %v1308, %v1322
          %v1327 = vadd.f32 %v1309, %v1323
          %vm1328 = vcmp.ge.f32.partialorder %v1324, 1.0
          %vm1329 = vcmp.ge.f32.partialorder %v1325, 1.0
          %vm1330 = vcmp.ge.f32.partialorder %v1326, 1.0
          %vm1331 = vcmp.ge.f32.partialorder %v1327, 1.0
          %v1332 = vsel %vm1328, 1.0, 0.0
          %v1333 = vsel %vm1329, 1.0, 0.0
          %v1334 = vsel %vm1330, 1.0, 0.0
          %v1335 = vsel %vm1331, 1.0, 0.0
          %v1336 = vadd.f32 %v1302, %v1332
          %v1337 = vadd.f32 %v1303, %v1333
          %v1338 = vadd.f32 %v1304, %v1334
          %v1339 = vadd.f32 %v1305, %v1335
          %v1340 = vsel %vm1328, 0.0, %v1324
          %v1341 = vsel %vm1329, 0.0, %v1325
          %v1342 = vsel %vm1330, 0.0, %v1326
          %v1343 = vsel %vm1331, 0.0, %v1327
          %s1344 = sadd.s32 %s1288, 64
          %s1345 = scalar_lea.vmem %s1251, %s1344 [#allocation2]
          %v1346 = vld [vmem:[%s1345] sm:$0x1]
          %v1347 = vld [vmem:[%s1345 + $0x4] sm:$0x1]
          %v1348 = vld [vmem:[%s1345 + $0x8] sm:$0x1]
          %v1349 = vld [vmem:[%s1345 + $0xc] sm:$0x1]
          %v1350 = vsub.f32 %v1346, %v1340
          %v1351 = vsub.f32 %v1347, %v1341
          %v1352 = vsub.f32 %v1348, %v1342
          %v1353 = vsub.f32 %v1349, %v1343
          %v1354 = vmul.f32 %v1350, 0.6666667
          %v1355 = vmul.f32 %v1351, 0.6666667
          %v1356 = vmul.f32 %v1352, 0.6666667
          %v1357 = vmul.f32 %v1353, 0.6666667
          %v1358 = vadd.f32 %v1340, %v1354
          %v1359 = vadd.f32 %v1341, %v1355
          %v1360 = vadd.f32 %v1342, %v1356
          %v1361 = vadd.f32 %v1343, %v1357
          %vm1362 = vcmp.ge.f32.partialorder %v1358, 1.0
          %vm1363 = vcmp.ge.f32.partialorder %v1359, 1.0
          %vm1364 = vcmp.ge.f32.partialorder %v1360, 1.0
          %vm1365 = vcmp.ge.f32.partialorder %v1361, 1.0
          %v1366 = vsel %vm1362, 1.0, 0.0
          %v1367 = vsel %vm1363, 1.0, 0.0
          %v1368 = vsel %vm1364, 1.0, 0.0
          %v1369 = vsel %vm1365, 1.0, 0.0
          %v1370 = vadd.f32 %v1336, %v1366
          %v1371 = vadd.f32 %v1337, %v1367
          %v1372 = vadd.f32 %v1338, %v1368
          %v1373 = vadd.f32 %v1339, %v1369
          %v1374 = vsel %vm1362, 0.0, %v1358
          %v1375 = vsel %vm1363, 0.0, %v1359
          %v1376 = vsel %vm1364, 0.0, %v1360
          %v1377 = vsel %vm1365, 0.0, %v1361
          %s1378 = sadd.s32 %s1288, 96
          %s1379 = scalar_lea.vmem %s1251, %s1378 [#allocation2]
          %v1380 = vld [vmem:[%s1379] sm:$0x1]
          %v1381 = vld [vmem:[%s1379 + $0x4] sm:$0x1]
          %v1382 = vld [vmem:[%s1379 + $0x8] sm:$0x1]
          %v1383 = vld [vmem:[%s1379 + $0xc] sm:$0x1]
          %v1384 = vsub.f32 %v1380, %v1374
          %v1385 = vsub.f32 %v1381, %v1375
          %v1386 = vsub.f32 %v1382, %v1376
          %v1387 = vsub.f32 %v1383, %v1377
          %v1388 = vmul.f32 %v1384, 0.6666667
          %v1389 = vmul.f32 %v1385, 0.6666667
          %v1390 = vmul.f32 %v1386, 0.6666667
          %v1391 = vmul.f32 %v1387, 0.6666667
          %v1392 = vadd.f32 %v1374, %v1388
          %v1393 = vadd.f32 %v1375, %v1389
          %v1394 = vadd.f32 %v1376, %v1390
          %v1395 = vadd.f32 %v1377, %v1391
          %vm1396 = vcmp.ge.f32.partialorder %v1392, 1.0
          %vm1397 = vcmp.ge.f32.partialorder %v1393, 1.0
          %vm1398 = vcmp.ge.f32.partialorder %v1394, 1.0
          %vm1399 = vcmp.ge.f32.partialorder %v1395, 1.0
          %v1400 = vsel %vm1396, 1.0, 0.0
          %v1401 = vsel %vm1397, 1.0, 0.0
          %v1402 = vsel %vm1398, 1.0, 0.0
          %v1403 = vsel %vm1399, 1.0, 0.0
          %v1404 = vadd.f32 %v1370, %v1400
          %v1405 = vadd.f32 %v1371, %v1401
          %v1406 = vadd.f32 %v1372, %v1402
          %v1407 = vadd.f32 %v1373, %v1403
          %v1408 = vsel %vm1396, 0.0, %v1392
          %v1409 = vsel %vm1397, 0.0, %v1393
          %v1410 = vsel %vm1398, 0.0, %v1394
          %v1411 = vsel %vm1399, 0.0, %v1395
          %s1412 = sadd.s32 %s1288, 128
          %s1413 = scalar_lea.vmem %s1251, %s1412 [#allocation2]
          %v1414 = vld [vmem:[%s1413] sm:$0x1]
          %v1415 = vld [vmem:[%s1413 + $0x4] sm:$0x1]
          %v1416 = vld [vmem:[%s1413 + $0x8] sm:$0x1]
          %v1417 = vld [vmem:[%s1413 + $0xc] sm:$0x1]
          %v1418 = vsub.f32 %v1414, %v1408
          %v1419 = vsub.f32 %v1415, %v1409
          %v1420 = vsub.f32 %v1416, %v1410
          %v1421 = vsub.f32 %v1417, %v1411
          %v1422 = vmul.f32 %v1418, 0.6666667
          %v1423 = vmul.f32 %v1419, 0.6666667
          %v1424 = vmul.f32 %v1420, 0.6666667
          %v1425 = vmul.f32 %v1421, 0.6666667
          %v1426 = vadd.f32 %v1408, %v1422
          %v1427 = vadd.f32 %v1409, %v1423
          %v1428 = vadd.f32 %v1410, %v1424
          %v1429 = vadd.f32 %v1411, %v1425
          %vm1430 = vcmp.ge.f32.partialorder %v1426, 1.0
          %vm1431 = vcmp.ge.f32.partialorder %v1427, 1.0
          %vm1432 = vcmp.ge.f32.partialorder %v1428, 1.0
          %vm1433 = vcmp.ge.f32.partialorder %v1429, 1.0
          %v1434 = vsel %vm1430, 1.0, 0.0
          %v1435 = vsel %vm1431, 1.0, 0.0
          %v1436 = vsel %vm1432, 1.0, 0.0
          %v1437 = vsel %vm1433, 1.0, 0.0
          %v1438 = vadd.f32 %v1404, %v1434
          %v1439 = vadd.f32 %v1405, %v1435
          %v1440 = vadd.f32 %v1406, %v1436
          %v1441 = vadd.f32 %v1407, %v1437
          %v1442 = vsel %vm1430, 0.0, %v1426
          %v1443 = vsel %vm1431, 0.0, %v1427
          %v1444 = vsel %vm1432, 0.0, %v1428
          %v1445 = vsel %vm1433, 0.0, %v1429
          %s1446 = sadd.s32 %s1288, 160
          %s1447 = scalar_lea.vmem %s1251, %s1446 [#allocation2]
          %v1448 = vld [vmem:[%s1447] sm:$0x1]
          %v1449 = vld [vmem:[%s1447 + $0x4] sm:$0x1]
          %v1450 = vld [vmem:[%s1447 + $0x8] sm:$0x1]
          %v1451 = vld [vmem:[%s1447 + $0xc] sm:$0x1]
          %v1452 = vsub.f32 %v1448, %v1442
          %v1453 = vsub.f32 %v1449, %v1443
          %v1454 = vsub.f32 %v1450, %v1444
          %v1455 = vsub.f32 %v1451, %v1445
          %v1456 = vmul.f32 %v1452, 0.6666667
          %v1457 = vmul.f32 %v1453, 0.6666667
          %v1458 = vmul.f32 %v1454, 0.6666667
          %v1459 = vmul.f32 %v1455, 0.6666667
          %v1460 = vadd.f32 %v1442, %v1456
          %v1461 = vadd.f32 %v1443, %v1457
          %v1462 = vadd.f32 %v1444, %v1458
          %v1463 = vadd.f32 %v1445, %v1459
          %vm1464 = vcmp.ge.f32.partialorder %v1460, 1.0
          %vm1465 = vcmp.ge.f32.partialorder %v1461, 1.0
          %vm1466 = vcmp.ge.f32.partialorder %v1462, 1.0
          %vm1467 = vcmp.ge.f32.partialorder %v1463, 1.0
          %v1468 = vsel %vm1464, 1.0, 0.0
          %v1469 = vsel %vm1465, 1.0, 0.0
          %v1470 = vsel %vm1466, 1.0, 0.0
          %v1471 = vsel %vm1467, 1.0, 0.0
          %v1472 = vadd.f32 %v1438, %v1468
          %v1473 = vadd.f32 %v1439, %v1469
          %v1474 = vadd.f32 %v1440, %v1470
          %v1475 = vadd.f32 %v1441, %v1471
          %v1476 = vsel %vm1464, 0.0, %v1460
          %v1477 = vsel %vm1465, 0.0, %v1461
          %v1478 = vsel %vm1466, 0.0, %v1462
          %v1479 = vsel %vm1467, 0.0, %v1463
          %s1480 = sadd.s32 %s1288, 192
          %s1481 = scalar_lea.vmem %s1251, %s1480 [#allocation2]
          %v1482 = vld [vmem:[%s1481] sm:$0x1]
          %v1483 = vld [vmem:[%s1481 + $0x4] sm:$0x1]
          %v1484 = vld [vmem:[%s1481 + $0x8] sm:$0x1]
          %v1485 = vld [vmem:[%s1481 + $0xc] sm:$0x1]
          %v1486 = vsub.f32 %v1482, %v1476
          %v1487 = vsub.f32 %v1483, %v1477
          %v1488 = vsub.f32 %v1484, %v1478
          %v1489 = vsub.f32 %v1485, %v1479
          %v1490 = vmul.f32 %v1486, 0.6666667
          %v1491 = vmul.f32 %v1487, 0.6666667
          %v1492 = vmul.f32 %v1488, 0.6666667
          %v1493 = vmul.f32 %v1489, 0.6666667
          %v1494 = vadd.f32 %v1476, %v1490
          %v1495 = vadd.f32 %v1477, %v1491
          %v1496 = vadd.f32 %v1478, %v1492
          %v1497 = vadd.f32 %v1479, %v1493
          %vm1498 = vcmp.ge.f32.partialorder %v1494, 1.0
          %vm1499 = vcmp.ge.f32.partialorder %v1495, 1.0
          %vm1500 = vcmp.ge.f32.partialorder %v1496, 1.0
          %vm1501 = vcmp.ge.f32.partialorder %v1497, 1.0
          %v1502 = vsel %vm1498, 1.0, 0.0
          %v1503 = vsel %vm1499, 1.0, 0.0
          %v1504 = vsel %vm1500, 1.0, 0.0
          %v1505 = vsel %vm1501, 1.0, 0.0
          %v1506 = vadd.f32 %v1472, %v1502
          %v1507 = vadd.f32 %v1473, %v1503
          %v1508 = vadd.f32 %v1474, %v1504
          %v1509 = vadd.f32 %v1475, %v1505
          %v1510 = vsel %vm1498, 0.0, %v1494
          %v1511 = vsel %vm1499, 0.0, %v1495
          %v1512 = vsel %vm1500, 0.0, %v1496
          %v1513 = vsel %vm1501, 0.0, %v1497
          %s1514 = sadd.s32 %s1288, 224
          %s1515 = scalar_lea.vmem %s1251, %s1514 [#allocation2]
          %v1516 = vld [vmem:[%s1515] sm:$0x1]
          %v1517 = vld [vmem:[%s1515 + $0x4] sm:$0x1]
          %v1518 = vld [vmem:[%s1515 + $0x8] sm:$0x1]
          %v1519 = vld [vmem:[%s1515 + $0xc] sm:$0x1]
          %v1520 = vsub.f32 %v1516, %v1510
          %v1521 = vsub.f32 %v1517, %v1511
          %v1522 = vsub.f32 %v1518, %v1512
          %v1523 = vsub.f32 %v1519, %v1513
          %v1524 = vmul.f32 %v1520, 0.6666667
          %v1525 = vmul.f32 %v1521, 0.6666667
          %v1526 = vmul.f32 %v1522, 0.6666667
          %v1527 = vmul.f32 %v1523, 0.6666667
          %v1528 = vadd.f32 %v1510, %v1524
          %v1529 = vadd.f32 %v1511, %v1525
          %v1530 = vadd.f32 %v1512, %v1526
          %v1531 = vadd.f32 %v1513, %v1527
          %vm1532 = vcmp.ge.f32.partialorder %v1528, 1.0
          %vm1533 = vcmp.ge.f32.partialorder %v1529, 1.0
          %vm1534 = vcmp.ge.f32.partialorder %v1530, 1.0
          %vm1535 = vcmp.ge.f32.partialorder %v1531, 1.0
          %v1536 = vsel %vm1532, 1.0, 0.0
          %v1537 = vsel %vm1533, 1.0, 0.0
          %v1538 = vsel %vm1534, 1.0, 0.0
          %v1539 = vsel %vm1535, 1.0, 0.0
          %v1540 = vadd.f32 %v1506, %v1536
          %v1541 = vadd.f32 %v1507, %v1537
          %v1542 = vadd.f32 %v1508, %v1538
          %v1543 = vadd.f32 %v1509, %v1539
          %v1544 = vpack.c.bf16 %v1540, %v1540
          %v1545 = vpack.c.bf16 %v1541, %v1541
          %v1546 = vpack.c.bf16 %v1542, %v1542
          %v1547 = vpack.c.bf16 %v1543, %v1543
          %v1552 = vunpack.c.l.b16 %v1544
          %v1553 = vunpack.c.l.b16 %v1545
          %v1554 = vunpack.c.l.b16 %v1546
          %v1555 = vunpack.c.l.b16 %v1547
          %v1556 = vrot.slane %v1553, 7
          %vm1557 = vcmask 1041409
          %v1558 = vsel %vm1557, %v1556, %v1552
          %v1559 = vrot.slane %v1554, 6
          %vm1560 = vcmask 1042434
          %v1561 = vsel %vm1560, %v1559, %v1558
          %v1562 = vrot.slane %v1555, 5
          %vm1563 = vcmask 1043459
          %v1564 = vsel %vm1563, %v1562, %v1561
          %v1565 = vpack.c.b16 %v1564, %v1564
          %v1568 = vunpack.c.l.b16 %v1279
          %v1569 = vunpack.c.l.b16 %v1280
          %v1570 = vpack.c.b16 %v1569, %v1568
          %vm1572 = vcmask 130048
          %v1574 = vsel %vm1572, %v1565, 0
          %1576 = vmatprep.subr.bf16.mxu0 0
          %1577 = vmatpush1.bf16.msra.mxu0 %v1570
          %1578 = vmatprep.subr.bf16.mxu0 0
          %1579 = vmatpush1.bf16.msra.mxu0 0
          %1580 = vmatprep.subr.bf16.mxu0 0
          %1581 = vmatpush1.bf16.msra.mxu0 0
          %1582 = vmatprep.subr.bf16.mxu0 0
          %1583 = vmatpush1.bf16.msra.mxu0 0
          %1584 = vmatprep.subr.bf16.mxu0 0
          %1585 = vmatpush1.bf16.msra.mxu0 0
          %1586 = vmatprep.subr.bf16.mxu0 0
          %1587 = vmatpush1.bf16.msra.mxu0 0
          %1588 = vmatprep.subr.bf16.mxu0 0
          %1589 = vmatpush1.bf16.msra.mxu0 0
          %1590 = vmatprep.subr.bf16.mxu0 0
          %1591 = vmatpush1.bf16.msra.mxu0 0
          %1592 = vmatprep.subr.bf16.mxu0 0
          %1593 = vmatpush1.bf16.msra.mxu0 0
          %1594 = vmatprep.subr.bf16.mxu0 0
          %1595 = vmatpush1.bf16.msra.mxu0 0
          %1596 = vmatprep.subr.bf16.mxu0 0
          %1597 = vmatpush1.bf16.msra.mxu0 0
          %1598 = vmatprep.subr.bf16.mxu0 0
          %1599 = vmatpush1.bf16.msra.mxu0 0
          %1600 = vmatprep.subr.bf16.mxu0 0
          %1601 = vmatpush1.bf16.msra.mxu0 0
          %1602 = vmatprep.subr.bf16.mxu0 0
          %1603 = vmatpush1.bf16.msra.mxu0 0
          %1604 = vmatprep.subr.bf16.mxu0 0
          %1605 = vmatpush1.bf16.msra.mxu0 0
          %1606 = vmatprep.subr.bf16.mxu0 0
          %1607 = vmatpush1.bf16.msra.mxu0 0
          %1608 = vmatprep.mubr.bf16.mxu0 0
          %1609 = vmatmul.mubr.bf16.gmra.mrb[0].mxu0 %v1574
          %v1610 = vpop.f32.mrb[0].mxu0
          %v1611 = vadd.f32 0.0, %v1610
          %v1612 = vpop.f32.mrb[0].mxu0
          %v1613 = vpop.f32.mrb[0].mxu0
          %v1614 = vpop.f32.mrb[0].mxu0
          %1615 = vdwg.mxu0
          %1617 = vset.pattern.permute.xlu0 0
          %1618 = vperm.xlu0 %1617, %v1281
          %v1619 = vpop.permute.xlu0 %1618
          %vm1621 = vcmask 31744
          %v1623 = vsel %vm1621, %v1278, 0
          %vm1625 = vcmask 1043456
          %v1627 = vsel %vm1625, %v1611, 0
          %1629 = vmatprep.subr.mxu0 0.0
          %1630 = vmatpush1.msra.mxu0 %v1627
          %1631 = vmatprep.subr.mxu0 0.0
          %1632 = vmatpush1.msra.mxu0 0.0
          %1633 = vmatprep.subr.mxu0 0.0
          %1634 = vmatpush1.msra.mxu0 0.0
          %1635 = vmatprep.subr.mxu0 0.0
          %1636 = vmatpush1.msra.mxu0 0.0
          %1637 = vmatprep.subr.mxu0 0.0
          %1638 = vmatpush1.msra.mxu0 0.0
          %1639 = vmatprep.subr.mxu0 0.0
          %1640 = vmatpush1.msra.mxu0 0.0
          %1641 = vmatprep.subr.mxu0 0.0
          %1642 = vmatpush1.msra.mxu0 0.0
          %1643 = vmatprep.subr.mxu0 0.0
          %1644 = vmatpush1.msra.mxu0 0.0
          %1645 = vmatprep.subr.mxu0 0.0
          %1646 = vmatpush1.msra.mxu0 0.0
          %1647 = vmatprep.subr.mxu0 0.0
          %1648 = vmatpush1.msra.mxu0 0.0
          %1649 = vmatprep.subr.mxu0 0.0
          %1650 = vmatpush1.msra.mxu0 0.0
          %1651 = vmatprep.subr.mxu0 0.0
          %1652 = vmatpush1.msra.mxu0 0.0
          %1653 = vmatprep.subr.mxu0 0.0
          %1654 = vmatpush1.msra.mxu0 0.0
          %1655 = vmatprep.subr.mxu0 0.0
          %1656 = vmatpush1.msra.mxu0 0.0
          %1657 = vmatprep.subr.mxu0 0.0
          %1658 = vmatpush1.msra.mxu0 0.0
          %1659 = vmatprep.subr.mxu0 0.0
          %1660 = vmatpush1.msra.mxu0 0.0
          %1661 = vmatprep.subr.mxu0 0.0
          %1662 = vmatpush1.msra.mxu0 0.0
          %1663 = vmatprep.subr.mxu0 0.0
          %1664 = vmatpush1.msra.mxu0 0.0
          %1665 = vmatprep.subr.mxu0 0.0
          %1666 = vmatpush1.msra.mxu0 0.0
          %1667 = vmatprep.subr.mxu0 0.0
          %1668 = vmatpush1.msra.mxu0 0.0
          %1669 = vmatprep.subr.mxu0 0.0
          %1670 = vmatpush1.msra.mxu0 0.0
          %1671 = vmatprep.subr.mxu0 0.0
          %1672 = vmatpush1.msra.mxu0 0.0
          %1673 = vmatprep.subr.mxu0 0.0
          %1674 = vmatpush1.msra.mxu0 0.0
          %1675 = vmatprep.subr.mxu0 0.0
          %1676 = vmatpush1.msra.mxu0 0.0
          %1677 = vmatprep.subr.mxu0 0.0
          %1678 = vmatpush1.msra.mxu0 0.0
          %1679 = vmatprep.subr.mxu0 0.0
          %1680 = vmatpush1.msra.mxu0 0.0
          %1681 = vmatprep.subr.mxu0 0.0
          %1682 = vmatpush1.msra.mxu0 0.0
          %1683 = vmatprep.subr.mxu0 0.0
          %1684 = vmatpush1.msra.mxu0 0.0
          %1685 = vmatprep.subr.mxu0 0.0
          %1686 = vmatpush1.msra.mxu0 0.0
          %1687 = vmatprep.subr.mxu0 0.0
          %1688 = vmatpush1.msra.mxu0 0.0
          %1689 = vmatprep.subr.mxu0 0.0
          %1690 = vmatpush1.msra.mxu0 0.0
          %1691 = vmatprep.subr.mxu0 0.0
          %1692 = vmatpush1.msra.mxu0 0.0
          %1693 = vmatprep.mubr.f32.mxu0 0.0
          %1694 = vmatmul.mubr.f32.gmra.mrb[0].mxu0 %v1623
          %v1695 = vpop.f32.mrb[0].mxu0
          %v1696 = vadd.f32 %v1619, %v1695
          %v1697 = vpop.f32.mrb[0].mxu0
          %1698 = vdwg.mxu0
          %s1699 = smul.u32 %s1283, 32
          %s1700 = scalar_lea.vmem %s1272, %s1699 [#allocation3]
          %vm1701 = vcmask 64512
          %1702 = vst.msk [vmem:[%s1700] sm:$0xff] %vm1701, %v1696
          %s1703 = sadd.s32 1, %s1288
          %s1704 = scalar_lea.vmem %s1251, %s1703 [#allocation2]
          %v1705 = vld [vmem:[%s1704] sm:$0x1]
          %v1706 = vld [vmem:[%s1704 + $0x4] sm:$0x1]
          %v1707 = vld [vmem:[%s1704 + $0x8] sm:$0x1]
          %v1708 = vld [vmem:[%s1704 + $0xc] sm:$0x1]
          %v1709 = vmul.f32 %v1705, 0.6666667
          %v1710 = vmul.f32 %v1706, 0.6666667
          %v1711 = vmul.f32 %v1707, 0.6666667
          %v1712 = vmul.f32 %v1708, 0.6666667
          %vm1713 = vcmp.ge.f32.partialorder %v1709, 1.0
          %vm1714 = vcmp.ge.f32.partialorder %v1710, 1.0
          %vm1715 = vcmp.ge.f32.partialorder %v1711, 1.0
          %vm1716 = vcmp.ge.f32.partialorder %v1712, 1.0
          %v1717 = vsel %vm1713, 1.0, 0.0
          %v1718 = vsel %vm1714, 1.0, 0.0
          %v1719 = vsel %vm1715, 1.0, 0.0
          %v1720 = vsel %vm1716, 1.0, 0.0
          %v1721 = vsel %vm1713, 0.0, %v1709
          %v1722 = vsel %vm1714, 0.0, %v1710
          %v1723 = vsel %vm1715, 0.0, %v1711
          %v1724 = vsel %vm1716, 0.0, %v1712
          %s1725 = sadd.s32 %s1703, 32
          %s1726 = scalar_lea.vmem %s1251, %s1725 [#allocation2]
          %v1727 = vld [vmem:[%s1726] sm:$0x1]
          %v1728 = vld [vmem:[%s1726 + $0x4] sm:$0x1]
          %v1729 = vld [vmem:[%s1726 + $0x8] sm:$0x1]
          %v1730 = vld [vmem:[%s1726 + $0xc] sm:$0x1]
          %v1731 = vsub.f32 %v1727, %v1721
          %v1732 = vsub.f32 %v1728, %v1722
          %v1733 = vsub.f32 %v1729, %v1723
          %v1734 = vsub.f32 %v1730, %v1724
          %v1735 = vmul.f32 %v1731, 0.6666667
          %v1736 = vmul.f32 %v1732, 0.6666667
          %v1737 = vmul.f32 %v1733, 0.6666667
          %v1738 = vmul.f32 %v1734, 0.6666667
          %v1739 = vadd.f32 %v1721, %v1735
          %v1740 = vadd.f32 %v1722, %v1736
          %v1741 = vadd.f32 %v1723, %v1737
          %v1742 = vadd.f32 %v1724, %v1738
          %vm1743 = vcmp.ge.f32.partialorder %v1739, 1.0
          %vm1744 = vcmp.ge.f32.partialorder %v1740, 1.0
          %vm1745 = vcmp.ge.f32.partialorder %v1741, 1.0
          %vm1746 = vcmp.ge.f32.partialorder %v1742, 1.0
          %v1747 = vsel %vm1743, 1.0, 0.0
          %v1748 = vsel %vm1744, 1.0, 0.0
          %v1749 = vsel %vm1745, 1.0, 0.0
          %v1750 = vsel %vm1746, 1.0, 0.0
          %v1751 = vadd.f32 %v1717, %v1747
          %v1752 = vadd.f32 %v1718, %v1748
          %v1753 = vadd.f32 %v1719, %v1749
          %v1754 = vadd.f32 %v1720, %v1750
          %v1755 = vsel %vm1743, 0.0, %v1739
          %v1756 = vsel %vm1744, 0.0, %v1740
          %v1757 = vsel %vm1745, 0.0, %v1741
          %v1758 = vsel %vm1746, 0.0, %v1742
          %s1759 = sadd.s32 %s1703, 64
          %s1760 = scalar_lea.vmem %s1251, %s1759 [#allocation2]
          %v1761 = vld [vmem:[%s1760] sm:$0x1]
          %v1762 = vld [vmem:[%s1760 + $0x4] sm:$0x1]
          %v1763 = vld [vmem:[%s1760 + $0x8] sm:$0x1]
          %v1764 = vld [vmem:[%s1760 + $0xc] sm:$0x1]
          %v1765 = vsub.f32 %v1761, %v1755
          %v1766 = vsub.f32 %v1762, %v1756
          %v1767 = vsub.f32 %v1763, %v1757
          %v1768 = vsub.f32 %v1764, %v1758
          %v1769 = vmul.f32 %v1765, 0.6666667
          %v1770 = vmul.f32 %v1766, 0.6666667
          %v1771 = vmul.f32 %v1767, 0.6666667
          %v1772 = vmul.f32 %v1768, 0.6666667
          %v1773 = vadd.f32 %v1755, %v1769
          %v1774 = vadd.f32 %v1756, %v1770
          %v1775 = vadd.f32 %v1757, %v1771
          %v1776 = vadd.f32 %v1758, %v1772
          %vm1777 = vcmp.ge.f32.partialorder %v1773, 1.0
          %vm1778 = vcmp.ge.f32.partialorder %v1774, 1.0
          %vm1779 = vcmp.ge.f32.partialorder %v1775, 1.0
          %vm1780 = vcmp.ge.f32.partialorder %v1776, 1.0
          %v1781 = vsel %vm1777, 1.0, 0.0
          %v1782 = vsel %vm1778, 1.0, 0.0
          %v1783 = vsel %vm1779, 1.0, 0.0
          %v1784 = vsel %vm1780, 1.0, 0.0
          %v1785 = vadd.f32 %v1751, %v1781
          %v1786 = vadd.f32 %v1752, %v1782
          %v1787 = vadd.f32 %v1753, %v1783
          %v1788 = vadd.f32 %v1754, %v1784
          %v1789 = vsel %vm1777, 0.0, %v1773
          %v1790 = vsel %vm1778, 0.0, %v1774
          %v1791 = vsel %vm1779, 0.0, %v1775
          %v1792 = vsel %vm1780, 0.0, %v1776
          %s1793 = sadd.s32 %s1703, 96
          %s1794 = scalar_lea.vmem %s1251, %s1793 [#allocation2]
          %v1795 = vld [vmem:[%s1794] sm:$0x1]
          %v1796 = vld [vmem:[%s1794 + $0x4] sm:$0x1]
          %v1797 = vld [vmem:[%s1794 + $0x8] sm:$0x1]
          %v1798 = vld [vmem:[%s1794 + $0xc] sm:$0x1]
          %v1799 = vsub.f32 %v1795, %v1789
          %v1800 = vsub.f32 %v1796, %v1790
          %v1801 = vsub.f32 %v1797, %v1791
          %v1802 = vsub.f32 %v1798, %v1792
          %v1803 = vmul.f32 %v1799, 0.6666667
          %v1804 = vmul.f32 %v1800, 0.6666667
          %v1805 = vmul.f32 %v1801, 0.6666667
          %v1806 = vmul.f32 %v1802, 0.6666667
          %v1807 = vadd.f32 %v1789, %v1803
          %v1808 = vadd.f32 %v1790, %v1804
          %v1809 = vadd.f32 %v1791, %v1805
          %v1810 = vadd.f32 %v1792, %v1806
          %vm1811 = vcmp.ge.f32.partialorder %v1807, 1.0
          %vm1812 = vcmp.ge.f32.partialorder %v1808, 1.0
          %vm1813 = vcmp.ge.f32.partialorder %v1809, 1.0
          %vm1814 = vcmp.ge.f32.partialorder %v1810, 1.0
          %v1815 = vsel %vm1811, 1.0, 0.0
          %v1816 = vsel %vm1812, 1.0, 0.0
          %v1817 = vsel %vm1813, 1.0, 0.0
          %v1818 = vsel %vm1814, 1.0, 0.0
          %v1819 = vadd.f32 %v1785, %v1815
          %v1820 = vadd.f32 %v1786, %v1816
          %v1821 = vadd.f32 %v1787, %v1817
          %v1822 = vadd.f32 %v1788, %v1818
          %v1823 = vsel %vm1811, 0.0, %v1807
          %v1824 = vsel %vm1812, 0.0, %v1808
          %v1825 = vsel %vm1813, 0.0, %v1809
          %v1826 = vsel %vm1814, 0.0, %v1810
          %s1827 = sadd.s32 %s1703, 128
          %s1828 = scalar_lea.vmem %s1251, %s1827 [#allocation2]
          %v1829 = vld [vmem:[%s1828] sm:$0x1]
          %v1830 = vld [vmem:[%s1828 + $0x4] sm:$0x1]
          %v1831 = vld [vmem:[%s1828 + $0x8] sm:$0x1]
          %v1832 = vld [vmem:[%s1828 + $0xc] sm:$0x1]
          %v1833 = vsub.f32 %v1829, %v1823
          %v1834 = vsub.f32 %v1830, %v1824
          %v1835 = vsub.f32 %v1831, %v1825
          %v1836 = vsub.f32 %v1832, %v1826
          %v1837 = vmul.f32 %v1833, 0.6666667
          %v1838 = vmul.f32 %v1834, 0.6666667
          %v1839 = vmul.f32 %v1835, 0.6666667
          %v1840 = vmul.f32 %v1836, 0.6666667
          %v1841 = vadd.f32 %v1823, %v1837
          %v1842 = vadd.f32 %v1824, %v1838
          %v1843 = vadd.f32 %v1825, %v1839
          %v1844 = vadd.f32 %v1826, %v1840
          %vm1845 = vcmp.ge.f32.partialorder %v1841, 1.0
          %vm1846 = vcmp.ge.f32.partialorder %v1842, 1.0
          %vm1847 = vcmp.ge.f32.partialorder %v1843, 1.0
          %vm1848 = vcmp.ge.f32.partialorder %v1844, 1.0
          %v1849 = vsel %vm1845, 1.0, 0.0
          %v1850 = vsel %vm1846, 1.0, 0.0
          %v1851 = vsel %vm1847, 1.0, 0.0
          %v1852 = vsel %vm1848, 1.0, 0.0
          %v1853 = vadd.f32 %v1819, %v1849
          %v1854 = vadd.f32 %v1820, %v1850
          %v1855 = vadd.f32 %v1821, %v1851
          %v1856 = vadd.f32 %v1822, %v1852
          %v1857 = vsel %vm1845, 0.0, %v1841
          %v1858 = vsel %vm1846, 0.0, %v1842
          %v1859 = vsel %vm1847, 0.0, %v1843
          %v1860 = vsel %vm1848, 0.0, %v1844
          %s1861 = sadd.s32 %s1703, 160
          %s1862 = scalar_lea.vmem %s1251, %s1861 [#allocation2]
          %v1863 = vld [vmem:[%s1862] sm:$0x1]
          %v1864 = vld [vmem:[%s1862 + $0x4] sm:$0x1]
          %v1865 = vld [vmem:[%s1862 + $0x8] sm:$0x1]
          %v1866 = vld [vmem:[%s1862 + $0xc] sm:$0x1]
          %v1867 = vsub.f32 %v1863, %v1857
          %v1868 = vsub.f32 %v1864, %v1858
          %v1869 = vsub.f32 %v1865, %v1859
          %v1870 = vsub.f32 %v1866, %v1860
          %v1871 = vmul.f32 %v1867, 0.6666667
          %v1872 = vmul.f32 %v1868, 0.6666667
          %v1873 = vmul.f32 %v1869, 0.6666667
          %v1874 = vmul.f32 %v1870, 0.6666667
          %v1875 = vadd.f32 %v1857, %v1871
          %v1876 = vadd.f32 %v1858, %v1872
          %v1877 = vadd.f32 %v1859, %v1873
          %v1878 = vadd.f32 %v1860, %v1874
          %vm1879 = vcmp.ge.f32.partialorder %v1875, 1.0
          %vm1880 = vcmp.ge.f32.partialorder %v1876, 1.0
          %vm1881 = vcmp.ge.f32.partialorder %v1877, 1.0
          %vm1882 = vcmp.ge.f32.partialorder %v1878, 1.0
          %v1883 = vsel %vm1879, 1.0, 0.0
          %v1884 = vsel %vm1880, 1.0, 0.0
          %v1885 = vsel %vm1881, 1.0, 0.0
          %v1886 = vsel %vm1882, 1.0, 0.0
          %v1887 = vadd.f32 %v1853, %v1883
          %v1888 = vadd.f32 %v1854, %v1884
          %v1889 = vadd.f32 %v1855, %v1885
          %v1890 = vadd.f32 %v1856, %v1886
          %v1891 = vsel %vm1879, 0.0, %v1875
          %v1892 = vsel %vm1880, 0.0, %v1876
          %v1893 = vsel %vm1881, 0.0, %v1877
          %v1894 = vsel %vm1882, 0.0, %v1878
          %s1895 = sadd.s32 %s1703, 192
          %s1896 = scalar_lea.vmem %s1251, %s1895 [#allocation2]
          %v1897 = vld [vmem:[%s1896] sm:$0x1]
          %v1898 = vld [vmem:[%s1896 + $0x4] sm:$0x1]
          %v1899 = vld [vmem:[%s1896 + $0x8] sm:$0x1]
          %v1900 = vld [vmem:[%s1896 + $0xc] sm:$0x1]
          %v1901 = vsub.f32 %v1897, %v1891
          %v1902 = vsub.f32 %v1898, %v1892
          %v1903 = vsub.f32 %v1899, %v1893
          %v1904 = vsub.f32 %v1900, %v1894
          %v1905 = vmul.f32 %v1901, 0.6666667
          %v1906 = vmul.f32 %v1902, 0.6666667
          %v1907 = vmul.f32 %v1903, 0.6666667
          %v1908 = vmul.f32 %v1904, 0.6666667
          %v1909 = vadd.f32 %v1891, %v1905
          %v1910 = vadd.f32 %v1892, %v1906
          %v1911 = vadd.f32 %v1893, %v1907
          %v1912 = vadd.f32 %v1894, %v1908
          %vm1913 = vcmp.ge.f32.partialorder %v1909, 1.0
          %vm1914 = vcmp.ge.f32.partialorder %v1910, 1.0
          %vm1915 = vcmp.ge.f32.partialorder %v1911, 1.0
          %vm1916 = vcmp.ge.f32.partialorder %v1912, 1.0
          %v1917 = vsel %vm1913, 1.0, 0.0
          %v1918 = vsel %vm1914, 1.0, 0.0
          %v1919 = vsel %vm1915, 1.0, 0.0
          %v1920 = vsel %vm1916, 1.0, 0.0
          %v1921 = vadd.f32 %v1887, %v1917
          %v1922 = vadd.f32 %v1888, %v1918
          %v1923 = vadd.f32 %v1889, %v1919
          %v1924 = vadd.f32 %v1890, %v1920
          %v1925 = vsel %vm1913, 0.0, %v1909
          %v1926 = vsel %vm1914, 0.0, %v1910
          %v1927 = vsel %vm1915, 0.0, %v1911
          %v1928 = vsel %vm1916, 0.0, %v1912
          %s1929 = sadd.s32 %s1703, 224
          %s1930 = scalar_lea.vmem %s1251, %s1929 [#allocation2]
          %v1931 = vld [vmem:[%s1930] sm:$0x1]
          %v1932 = vld [vmem:[%s1930 + $0x4] sm:$0x1]
          %v1933 = vld [vmem:[%s1930 + $0x8] sm:$0x1]
          %v1934 = vld [vmem:[%s1930 + $0xc] sm:$0x1]
          %v1935 = vsub.f32 %v1931, %v1925
          %v1936 = vsub.f32 %v1932, %v1926
          %v1937 = vsub.f32 %v1933, %v1927
          %v1938 = vsub.f32 %v1934, %v1928
          %v1939 = vmul.f32 %v1935, 0.6666667
          %v1940 = vmul.f32 %v1936, 0.6666667
          %v1941 = vmul.f32 %v1937, 0.6666667
          %v1942 = vmul.f32 %v1938, 0.6666667
          %v1943 = vadd.f32 %v1925, %v1939
          %v1944 = vadd.f32 %v1926, %v1940
          %v1945 = vadd.f32 %v1927, %v1941
          %v1946 = vadd.f32 %v1928, %v1942
          %vm1947 = vcmp.ge.f32.partialorder %v1943, 1.0
          %vm1948 = vcmp.ge.f32.partialorder %v1944, 1.0
          %vm1949 = vcmp.ge.f32.partialorder %v1945, 1.0
          %vm1950 = vcmp.ge.f32.partialorder %v1946, 1.0
          %v1951 = vsel %vm1947, 1.0, 0.0
          %v1952 = vsel %vm1948, 1.0, 0.0
          %v1953 = vsel %vm1949, 1.0, 0.0
          %v1954 = vsel %vm1950, 1.0, 0.0
          %v1955 = vadd.f32 %v1921, %v1951
          %v1956 = vadd.f32 %v1922, %v1952
          %v1957 = vadd.f32 %v1923, %v1953
          %v1958 = vadd.f32 %v1924, %v1954
          %v1959 = vpack.c.bf16 %v1955, %v1955
          %v1960 = vpack.c.bf16 %v1956, %v1956
          %v1961 = vpack.c.bf16 %v1957, %v1957
          %v1962 = vpack.c.bf16 %v1958, %v1958
          %v1967 = vunpack.c.l.b16 %v1959
          %v1968 = vunpack.c.l.b16 %v1960
          %v1969 = vunpack.c.l.b16 %v1961
          %v1970 = vunpack.c.l.b16 %v1962
          %v1971 = vrot.slane %v1968, 7
          %v1972 = vsel %vm1557, %v1971, %v1967
          %v1973 = vrot.slane %v1969, 6
          %v1974 = vsel %vm1560, %v1973, %v1972
          %v1975 = vrot.slane %v1970, 5
          %v1976 = vsel %vm1563, %v1975, %v1974
          %v1977 = vpack.c.b16 %v1976, %v1976
          %v1979 = vsel %vm1572, %v1977, 0
          %1981 = vmatprep.subr.bf16.mxu0 0
          %1982 = vmatpush1.bf16.msra.mxu0 %v1570
          %1983 = vmatprep.subr.bf16.mxu0 0
          %1984 = vmatpush1.bf16.msra.mxu0 0
          %1985 = vmatprep.subr.bf16.mxu0 0
          %1986 = vmatpush1.bf16.msra.mxu0 0
          %1987 = vmatprep.subr.bf16.mxu0 0
          %1988 = vmatpush1.bf16.msra.mxu0 0
          %1989 = vmatprep.subr.bf16.mxu0 0
          %1990 = vmatpush1.bf16.msra.mxu0 0
          %1991 = vmatprep.subr.bf16.mxu0 0
          %1992 = vmatpush1.bf16.msra.mxu0 0
          %1993 = vmatprep.subr.bf16.mxu0 0
          %1994 = vmatpush1.bf16.msra.mxu0 0
          %1995 = vmatprep.subr.bf16.mxu0 0
          %1996 = vmatpush1.bf16.msra.mxu0 0
          %1997 = vmatprep.subr.bf16.mxu0 0
          %1998 = vmatpush1.bf16.msra.mxu0 0
          %1999 = vmatprep.subr.bf16.mxu0 0
          %2000 = vmatpush1.bf16.msra.mxu0 0
          %2001 = vmatprep.subr.bf16.mxu0 0
          %2002 = vmatpush1.bf16.msra.mxu0 0
          %2003 = vmatprep.subr.bf16.mxu0 0
          %2004 = vmatpush1.bf16.msra.mxu0 0
          %2005 = vmatprep.subr.bf16.mxu0 0
          %2006 = vmatpush1.bf16.msra.mxu0 0
          %2007 = vmatprep.subr.bf16.mxu0 0
          %2008 = vmatpush1.bf16.msra.mxu0 0
          %2009 = vmatprep.subr.bf16.mxu0 0
          %2010 = vmatpush1.bf16.msra.mxu0 0
          %2011 = vmatprep.subr.bf16.mxu0 0
          %2012 = vmatpush1.bf16.msra.mxu0 0
          %2013 = vmatprep.mubr.bf16.mxu0 0
          %2014 = vmatmul.mubr.bf16.gmra.mrb[0].mxu0 %v1979
          %v2015 = vpop.f32.mrb[0].mxu0
          %v2016 = vadd.f32 0.0, %v2015
          %v2017 = vpop.f32.mrb[0].mxu0
          %v2018 = vpop.f32.mrb[0].mxu0
          %v2019 = vpop.f32.mrb[0].mxu0
          %2020 = vdwg.mxu0
          %v2022 = vsel %vm1625, %v2016, 0
          %2024 = vmatprep.subr.mxu0 0.0
          %2025 = vmatpush1.msra.mxu0 %v2022
          %2026 = vmatprep.subr.mxu0 0.0
          %2027 = vmatpush1.msra.mxu0 0.0
          %2028 = vmatprep.subr.mxu0 0.0
          %2029 = vmatpush1.msra.mxu0 0.0
          %2030 = vmatprep.subr.mxu0 0.0
          %2031 = vmatpush1.msra.mxu0 0.0
          %2032 = vmatprep.subr.mxu0 0.0
          %2033 = vmatpush1.msra.mxu0 0.0
          %2034 = vmatprep.subr.mxu0 0.0
          %2035 = vmatpush1.msra.mxu0 0.0
          %2036 = vmatprep.subr.mxu0 0.0
          %2037 = vmatpush1.msra.mxu0 0.0
          %2038 = vmatprep.subr.mxu0 0.0
          %2039 = vmatpush1.msra.mxu0 0.0
          %2040 = vmatprep.subr.mxu0 0.0
          %2041 = vmatpush1.msra.mxu0 0.0
          %2042 = vmatprep.subr.mxu0 0.0
          %2043 = vmatpush1.msra.mxu0 0.0
          %2044 = vmatprep.subr.mxu0 0.0
          %2045 = vmatpush1.msra.mxu0 0.0
          %2046 = vmatprep.subr.mxu0 0.0
          %2047 = vmatpush1.msra.mxu0 0.0
          %2048 = vmatprep.subr.mxu0 0.0
          %2049 = vmatpush1.msra.mxu0 0.0
          %2050 = vmatprep.subr.mxu0 0.0
          %2051 = vmatpush1.msra.mxu0 0.0
          %2052 = vmatprep.subr.mxu0 0.0
          %2053 = vmatpush1.msra.mxu0 0.0
          %2054 = vmatprep.subr.mxu0 0.0
          %2055 = vmatpush1.msra.mxu0 0.0
          %2056 = vmatprep.subr.mxu0 0.0
          %2057 = vmatpush1.msra.mxu0 0.0
          %2058 = vmatprep.subr.mxu0 0.0
          %2059 = vmatpush1.msra.mxu0 0.0
          %2060 = vmatprep.subr.mxu0 0.0
          %2061 = vmatpush1.msra.mxu0 0.0
          %2062 = vmatprep.subr.mxu0 0.0
          %2063 = vmatpush1.msra.mxu0 0.0
          %2064 = vmatprep.subr.mxu0 0.0
          %2065 = vmatpush1.msra.mxu0 0.0
          %2066 = vmatprep.subr.mxu0 0.0
          %2067 = vmatpush1.msra.mxu0 0.0
          %2068 = vmatprep.subr.mxu0 0.0
          %2069 = vmatpush1.msra.mxu0 0.0
          %2070 = vmatprep.subr.mxu0 0.0
          %2071 = vmatpush1.msra.mxu0 0.0
          %2072 = vmatprep.subr.mxu0 0.0
          %2073 = vmatpush1.msra.mxu0 0.0
          %2074 = vmatprep.subr.mxu0 0.0
          %2075 = vmatpush1.msra.mxu0 0.0
          %2076 = vmatprep.subr.mxu0 0.0
          %2077 = vmatpush1.msra.mxu0 0.0
          %2078 = vmatprep.subr.mxu0 0.0
          %2079 = vmatpush1.msra.mxu0 0.0
          %2080 = vmatprep.subr.mxu0 0.0
          %2081 = vmatpush1.msra.mxu0 0.0
          %2082 = vmatprep.subr.mxu0 0.0
          %2083 = vmatpush1.msra.mxu0 0.0
          %2084 = vmatprep.subr.mxu0 0.0
          %2085 = vmatpush1.msra.mxu0 0.0
          %2086 = vmatprep.subr.mxu0 0.0
          %2087 = vmatpush1.msra.mxu0 0.0
          %2088 = vmatprep.mubr.f32.mxu0 0.0
          %2089 = vmatmul.mubr.f32.gmra.mrb[0].mxu0 %v1623
          %v2090 = vpop.f32.mrb[0].mxu0
          %v2091 = vadd.f32 %v1619, %v2090
          %v2092 = vpop.f32.mrb[0].mxu0
          %2093 = vdwg.mxu0
          %s2094 = sadd.s32 8, %s1699
          %s2095 = scalar_lea.vmem %s1272, %s2094 [#allocation3]
          %2096 = vst.msk [vmem:[%s2095] sm:$0xff] %vm1701, %v2091
          %s2097 = sadd.s32 2, %s1288
          %s2098 = scalar_lea.vmem %s1251, %s2097 [#allocation2]
          %v2099 = vld [vmem:[%s2098] sm:$0x1]
          %v2100 = vld [vmem:[%s2098 + $0x4] sm:$0x1]
          %v2101 = vld [vmem:[%s2098 + $0x8] sm:$0x1]
          %v2102 = vld [vmem:[%s2098 + $0xc] sm:$0x1]
          %v2103 = vmul.f32 %v2099, 0.6666667
          %v2104 = vmul.f32 %v2100, 0.6666667
          %v2105 = vmul.f32 %v2101, 0.6666667
          %v2106 = vmul.f32 %v2102, 0.6666667
          %vm2107 = vcmp.ge.f32.partialorder %v2103, 1.0
          %vm2108 = vcmp.ge.f32.partialorder %v2104, 1.0
          %vm2109 = vcmp.ge.f32.partialorder %v2105, 1.0
          %vm2110 = vcmp.ge.f32.partialorder %v2106, 1.0
          %v2111 = vsel %vm2107, 1.0, 0.0
          %v2112 = vsel %vm2108, 1.0, 0.0
          %v2113 = vsel %vm2109, 1.0, 0.0
          %v2114 = vsel %vm2110, 1.0, 0.0
          %v2115 = vsel %vm2107, 0.0, %v2103
          %v2116 = vsel %vm2108, 0.0, %v2104
          %v2117 = vsel %vm2109, 0.0, %v2105
          %v2118 = vsel %vm2110, 0.0, %v2106
          %s2119 = sadd.s32 %s2097, 32
          %s2120 = scalar_lea.vmem %s1251, %s2119 [#allocation2]
          %v2121 = vld [vmem:[%s2120] sm:$0x1]
          %v2122 = vld [vmem:[%s2120 + $0x4] sm:$0x1]
          %v2123 = vld [vmem:[%s2120 + $0x8] sm:$0x1]
          %v2124 = vld [vmem:[%s2120 + $0xc] sm:$0x1]
          %v2125 = vsub.f32 %v2121, %v2115
          %v2126 = vsub.f32 %v2122, %v2116
          %v2127 = vsub.f32 %v2123, %v2117
          %v2128 = vsub.f32 %v2124, %v2118
          %v2129 = vmul.f32 %v2125, 0.6666667
          %v2130 = vmul.f32 %v2126, 0.6666667
          %v2131 = vmul.f32 %v2127, 0.6666667
          %v2132 = vmul.f32 %v2128, 0.6666667
          %v2133 = vadd.f32 %v2115, %v2129
          %v2134 = vadd.f32 %v2116, %v2130
          %v2135 = vadd.f32 %v2117, %v2131
          %v2136 = vadd.f32 %v2118, %v2132
          %vm2137 = vcmp.ge.f32.partialorder %v2133, 1.0
          %vm2138 = vcmp.ge.f32.partialorder %v2134, 1.0
          %vm2139 = vcmp.ge.f32.partialorder %v2135, 1.0
          %vm2140 = vcmp.ge.f32.partialorder %v2136, 1.0
          %v2141 = vsel %vm2137, 1.0, 0.0
          %v2142 = vsel %vm2138, 1.0, 0.0
          %v2143 = vsel %vm2139, 1.0, 0.0
          %v2144 = vsel %vm2140, 1.0, 0.0
          %v2145 = vadd.f32 %v2111, %v2141
          %v2146 = vadd.f32 %v2112, %v2142
          %v2147 = vadd.f32 %v2113, %v2143
          %v2148 = vadd.f32 %v2114, %v2144
          %v2149 = vsel %vm2137, 0.0, %v2133
          %v2150 = vsel %vm2138, 0.0, %v2134
          %v2151 = vsel %vm2139, 0.0, %v2135
          %v2152 = vsel %vm2140, 0.0, %v2136
          %s2153 = sadd.s32 %s2097, 64
          %s2154 = scalar_lea.vmem %s1251, %s2153 [#allocation2]
          %v2155 = vld [vmem:[%s2154] sm:$0x1]
          %v2156 = vld [vmem:[%s2154 + $0x4] sm:$0x1]
          %v2157 = vld [vmem:[%s2154 + $0x8] sm:$0x1]
          %v2158 = vld [vmem:[%s2154 + $0xc] sm:$0x1]
          %v2159 = vsub.f32 %v2155, %v2149
          %v2160 = vsub.f32 %v2156, %v2150
          %v2161 = vsub.f32 %v2157, %v2151
          %v2162 = vsub.f32 %v2158, %v2152
          %v2163 = vmul.f32 %v2159, 0.6666667
          %v2164 = vmul.f32 %v2160, 0.6666667
          %v2165 = vmul.f32 %v2161, 0.6666667
          %v2166 = vmul.f32 %v2162, 0.6666667
          %v2167 = vadd.f32 %v2149, %v2163
          %v2168 = vadd.f32 %v2150, %v2164
          %v2169 = vadd.f32 %v2151, %v2165
          %v2170 = vadd.f32 %v2152, %v2166
          %vm2171 = vcmp.ge.f32.partialorder %v2167, 1.0
          %vm2172 = vcmp.ge.f32.partialorder %v2168, 1.0
          %vm2173 = vcmp.ge.f32.partialorder %v2169, 1.0
          %vm2174 = vcmp.ge.f32.partialorder %v2170, 1.0
          %v2175 = vsel %vm2171, 1.0, 0.0
          %v2176 = vsel %vm2172, 1.0, 0.0
          %v2177 = vsel %vm2173, 1.0, 0.0
          %v2178 = vsel %vm2174, 1.0, 0.0
          %v2179 = vadd.f32 %v2145, %v2175
          %v2180 = vadd.f32 %v2146, %v2176
          %v2181 = vadd.f32 %v2147, %v2177
          %v2182 = vadd.f32 %v2148, %v2178
          %v2183 = vsel %vm2171, 0.0, %v2167
          %v2184 = vsel %vm2172, 0.0, %v2168
          %v2185 = vsel %vm2173, 0.0, %v2169
          %v2186 = vsel %vm2174, 0.0, %v2170
          %s2187 = sadd.s32 %s2097, 96
          %s2188 = scalar_lea.vmem %s1251, %s2187 [#allocation2]
          %v2189 = vld [vmem:[%s2188] sm:$0x1]
          %v2190 = vld [vmem:[%s2188 + $0x4] sm:$0x1]
          %v2191 = vld [vmem:[%s2188 + $0x8] sm:$0x1]
          %v2192 = vld [vmem:[%s2188 + $0xc] sm:$0x1]
          %v2193 = vsub.f32 %v2189, %v2183
          %v2194 = vsub.f32 %v2190, %v2184
          %v2195 = vsub.f32 %v2191, %v2185
          %v2196 = vsub.f32 %v2192, %v2186
          %v2197 = vmul.f32 %v2193, 0.6666667
          %v2198 = vmul.f32 %v2194, 0.6666667
          %v2199 = vmul.f32 %v2195, 0.6666667
          %v2200 = vmul.f32 %v2196, 0.6666667
          %v2201 = vadd.f32 %v2183, %v2197
          %v2202 = vadd.f32 %v2184, %v2198
          %v2203 = vadd.f32 %v2185, %v2199
          %v2204 = vadd.f32 %v2186, %v2200
          %vm2205 = vcmp.ge.f32.partialorder %v2201, 1.0
          %vm2206 = vcmp.ge.f32.partialorder %v2202, 1.0
          %vm2207 = vcmp.ge.f32.partialorder %v2203, 1.0
          %vm2208 = vcmp.ge.f32.partialorder %v2204, 1.0
          %v2209 = vsel %vm2205, 1.0, 0.0
          %v2210 = vsel %vm2206, 1.0, 0.0
          %v2211 = vsel %vm2207, 1.0, 0.0
          %v2212 = vsel %vm2208, 1.0, 0.0
          %v2213 = vadd.f32 %v2179, %v2209
          %v2214 = vadd.f32 %v2180, %v2210
          %v2215 = vadd.f32 %v2181, %v2211
          %v2216 = vadd.f32 %v2182, %v2212
          %v2217 = vsel %vm2205, 0.0, %v2201
          %v2218 = vsel %vm2206, 0.0, %v2202
          %v2219 = vsel %vm2207, 0.0, %v2203
          %v2220 = vsel %vm2208, 0.0, %v2204
          %s2221 = sadd.s32 %s2097, 128
          %s2222 = scalar_lea.vmem %s1251, %s2221 [#allocation2]
          %v2223 = vld [vmem:[%s2222] sm:$0x1]
          %v2224 = vld [vmem:[%s2222 + $0x4] sm:$0x1]
          %v2225 = vld [vmem:[%s2222 + $0x8] sm:$0x1]
          %v2226 = vld [vmem:[%s2222 + $0xc] sm:$0x1]
          %v2227 = vsub.f32 %v2223, %v2217
          %v2228 = vsub.f32 %v2224, %v2218
          %v2229 = vsub.f32 %v2225, %v2219
          %v2230 = vsub.f32 %v2226, %v2220
          %v2231 = vmul.f32 %v2227, 0.6666667
          %v2232 = vmul.f32 %v2228, 0.6666667
          %v2233 = vmul.f32 %v2229, 0.6666667
          %v2234 = vmul.f32 %v2230, 0.6666667
          %v2235 = vadd.f32 %v2217, %v2231
          %v2236 = vadd.f32 %v2218, %v2232
          %v2237 = vadd.f32 %v2219, %v2233
          %v2238 = vadd.f32 %v2220, %v2234
          %vm2239 = vcmp.ge.f32.partialorder %v2235, 1.0
          %vm2240 = vcmp.ge.f32.partialorder %v2236, 1.0
          %vm2241 = vcmp.ge.f32.partialorder %v2237, 1.0
          %vm2242 = vcmp.ge.f32.partialorder %v2238, 1.0
          %v2243 = vsel %vm2239, 1.0, 0.0
          %v2244 = vsel %vm2240, 1.0, 0.0
          %v2245 = vsel %vm2241, 1.0, 0.0
          %v2246 = vsel %vm2242, 1.0, 0.0
          %v2247 = vadd.f32 %v2213, %v2243
          %v2248 = vadd.f32 %v2214, %v2244
          %v2249 = vadd.f32 %v2215, %v2245
          %v2250 = vadd.f32 %v2216, %v2246
          %v2251 = vsel %vm2239, 0.0, %v2235
          %v2252 = vsel %vm2240, 0.0, %v2236
          %v2253 = vsel %vm2241, 0.0, %v2237
          %v2254 = vsel %vm2242, 0.0, %v2238
          %s2255 = sadd.s32 %s2097, 160
          %s2256 = scalar_lea.vmem %s1251, %s2255 [#allocation2]
          %v2257 = vld [vmem:[%s2256] sm:$0x1]
          %v2258 = vld [vmem:[%s2256 + $0x4] sm:$0x1]
          %v2259 = vld [vmem:[%s2256 + $0x8] sm:$0x1]
          %v2260 = vld [vmem:[%s2256 + $0xc] sm:$0x1]
          %v2261 = vsub.f32 %v2257, %v2251
          %v2262 = vsub.f32 %v2258, %v2252
          %v2263 = vsub.f32 %v2259, %v2253
          %v2264 = vsub.f32 %v2260, %v2254
          %v2265 = vmul.f32 %v2261, 0.6666667
          %v2266 = vmul.f32 %v2262, 0.6666667
          %v2267 = vmul.f32 %v2263, 0.6666667
          %v2268 = vmul.f32 %v2264, 0.6666667
          %v2269 = vadd.f32 %v2251, %v2265
          %v2270 = vadd.f32 %v2252, %v2266
          %v2271 = vadd.f32 %v2253, %v2267
          %v2272 = vadd.f32 %v2254, %v2268
          %vm2273 = vcmp.ge.f32.partialorder %v2269, 1.0
          %vm2274 = vcmp.ge.f32.partialorder %v2270, 1.0
          %vm2275 = vcmp.ge.f32.partialorder %v2271, 1.0
          %vm2276 = vcmp.ge.f32.partialorder %v2272, 1.0
          %v2277 = vsel %vm2273, 1.0, 0.0
          %v2278 = vsel %vm2274, 1.0, 0.0
          %v2279 = vsel %vm2275, 1.0, 0.0
          %v2280 = vsel %vm2276, 1.0, 0.0
          %v2281 = vadd.f32 %v2247, %v2277
          %v2282 = vadd.f32 %v2248, %v2278
          %v2283 = vadd.f32 %v2249, %v2279
          %v2284 = vadd.f32 %v2250, %v2280
          %v2285 = vsel %vm2273, 0.0, %v2269
          %v2286 = vsel %vm2274, 0.0, %v2270
          %v2287 = vsel %vm2275, 0.0, %v2271
          %v2288 = vsel %vm2276, 0.0, %v2272
          %s2289 = sadd.s32 %s2097, 192
          %s2290 = scalar_lea.vmem %s1251, %s2289 [#allocation2]
          %v2291 = vld [vmem:[%s2290] sm:$0x1]
          %v2292 = vld [vmem:[%s2290 + $0x4] sm:$0x1]
          %v2293 = vld [vmem:[%s2290 + $0x8] sm:$0x1]
          %v2294 = vld [vmem:[%s2290 + $0xc] sm:$0x1]
          %v2295 = vsub.f32 %v2291, %v2285
          %v2296 = vsub.f32 %v2292, %v2286
          %v2297 = vsub.f32 %v2293, %v2287
          %v2298 = vsub.f32 %v2294, %v2288
          %v2299 = vmul.f32 %v2295, 0.6666667
          %v2300 = vmul.f32 %v2296, 0.6666667
          %v2301 = vmul.f32 %v2297, 0.6666667
          %v2302 = vmul.f32 %v2298, 0.6666667
          %v2303 = vadd.f32 %v2285, %v2299
          %v2304 = vadd.f32 %v2286, %v2300
          %v2305 = vadd.f32 %v2287, %v2301
          %v2306 = vadd.f32 %v2288, %v2302
          %vm2307 = vcmp.ge.f32.partialorder %v2303, 1.0
          %vm2308 = vcmp.ge.f32.partialorder %v2304, 1.0
          %vm2309 = vcmp.ge.f32.partialorder %v2305, 1.0
          %vm2310 = vcmp.ge.f32.partialorder %v2306, 1.0
          %v2311 = vsel %vm2307, 1.0, 0.0
          %v2312 = vsel %vm2308, 1.0, 0.0
          %v2313 = vsel %vm2309, 1.0, 0.0
          %v2314 = vsel %vm2310, 1.0, 0.0
          %v2315 = vadd.f32 %v2281, %v2311
          %v2316 = vadd.f32 %v2282, %v2312
          %v2317 = vadd.f32 %v2283, %v2313
          %v2318 = vadd.f32 %v2284, %v2314
          %v2319 = vsel %vm2307, 0.0, %v2303
          %v2320 = vsel %vm2308, 0.0, %v2304
          %v2321 = vsel %vm2309, 0.0, %v2305
          %v2322 = vsel %vm2310, 0.0, %v2306
          %s2323 = sadd.s32 %s2097, 224
          %s2324 = scalar_lea.vmem %s1251, %s2323 [#allocation2]
          %v2325 = vld [vmem:[%s2324] sm:$0x1]
          %v2326 = vld [vmem:[%s2324 + $0x4] sm:$0x1]
          %v2327 = vld [vmem:[%s2324 + $0x8] sm:$0x1]
          %v2328 = vld [vmem:[%s2324 + $0xc] sm:$0x1]
          %v2329 = vsub.f32 %v2325, %v2319
          %v2330 = vsub.f32 %v2326, %v2320
          %v2331 = vsub.f32 %v2327, %v2321
          %v2332 = vsub.f32 %v2328, %v2322
          %v2333 = vmul.f32 %v2329, 0.6666667
          %v2334 = vmul.f32 %v2330, 0.6666667
          %v2335 = vmul.f32 %v2331, 0.6666667
          %v2336 = vmul.f32 %v2332, 0.6666667
          %v2337 = vadd.f32 %v2319, %v2333
          %v2338 = vadd.f32 %v2320, %v2334
          %v2339 = vadd.f32 %v2321, %v2335
          %v2340 = vadd.f32 %v2322, %v2336
          %vm2341 = vcmp.ge.f32.partialorder %v2337, 1.0
          %vm2342 = vcmp.ge.f32.partialorder %v2338, 1.0
          %vm2343 = vcmp.ge.f32.partialorder %v2339, 1.0
          %vm2344 = vcmp.ge.f32.partialorder %v2340, 1.0
          %v2345 = vsel %vm2341, 1.0, 0.0
          %v2346 = vsel %vm2342, 1.0, 0.0
          %v2347 = vsel %vm2343, 1.0, 0.0
          %v2348 = vsel %vm2344, 1.0, 0.0
          %v2349 = vadd.f32 %v2315, %v2345
          %v2350 = vadd.f32 %v2316, %v2346
          %v2351 = vadd.f32 %v2317, %v2347
          %v2352 = vadd.f32 %v2318, %v2348
          %v2353 = vpack.c.bf16 %v2349, %v2349
          %v2354 = vpack.c.bf16 %v2350, %v2350
          %v2355 = vpack.c.bf16 %v2351, %v2351
          %v2356 = vpack.c.bf16 %v2352, %v2352
          %v2361 = vunpack.c.l.b16 %v2353
          %v2362 = vunpack.c.l.b16 %v2354
          %v2363 = vunpack.c.l.b16 %v2355
          %v2364 = vunpack.c.l.b16 %v2356
          %v2365 = vrot.slane %v2362, 7
          %v2366 = vsel %vm1557, %v2365, %v2361
          %v2367 = vrot.slane %v2363, 6
          %v2368 = vsel %vm1560, %v2367, %v2366
          %v2369 = vrot.slane %v2364, 5
          %v2370 = vsel %vm1563, %v2369, %v2368
          %v2371 = vpack.c.b16 %v2370, %v2370
          %v2373 = vsel %vm1572, %v2371, 0
          %2375 = vmatprep.subr.bf16.mxu0 0
          %2376 = vmatpush1.bf16.msra.mxu0 %v1570
          %2377 = vmatprep.subr.bf16.mxu0 0
          %2378 = vmatpush1.bf16.msra.mxu0 0
          %2379 = vmatprep.subr.bf16.mxu0 0
          %2380 = vmatpush1.bf16.msra.mxu0 0
          %2381 = vmatprep.subr.bf16.mxu0 0
          %2382 = vmatpush1.bf16.msra.mxu0 0
          %2383 = vmatprep.subr.bf16.mxu0 0
          %2384 = vmatpush1.bf16.msra.mxu0 0
          %2385 = vmatprep.subr.bf16.mxu0 0
          %2386 = vmatpush1.bf16.msra.mxu0 0
          %2387 = vmatprep.subr.bf16.mxu0 0
          %2388 = vmatpush1.bf16.msra.mxu0 0
          %2389 = vmatprep.subr.bf16.mxu0 0
          %2390 = vmatpush1.bf16.msra.mxu0 0
          %2391 = vmatprep.subr.bf16.mxu0 0
          %2392 = vmatpush1.bf16.msra.mxu0 0
          %2393 = vmatprep.subr.bf16.mxu0 0
          %2394 = vmatpush1.bf16.msra.mxu0 0
          %2395 = vmatprep.subr.bf16.mxu0 0
          %2396 = vmatpush1.bf16.msra.mxu0 0
          %2397 = vmatprep.subr.bf16.mxu0 0
          %2398 = vmatpush1.bf16.msra.mxu0 0
          %2399 = vmatprep.subr.bf16.mxu0 0
          %2400 = vmatpush1.bf16.msra.mxu0 0
          %2401 = vmatprep.subr.bf16.mxu0 0
          %2402 = vmatpush1.bf16.msra.mxu0 0
          %2403 = vmatprep.subr.bf16.mxu0 0
          %2404 = vmatpush1.bf16.msra.mxu0 0
          %2405 = vmatprep.subr.bf16.mxu0 0
          %2406 = vmatpush1.bf16.msra.mxu0 0
          %2407 = vmatprep.mubr.bf16.mxu0 0
          %2408 = vmatmul.mubr.bf16.gmra.mrb[0].mxu0 %v2373
          %v2409 = vpop.f32.mrb[0].mxu0
          %v2410 = vadd.f32 0.0, %v2409
          %v2411 = vpop.f32.mrb[0].mxu0
          %v2412 = vpop.f32.mrb[0].mxu0
          %v2413 = vpop.f32.mrb[0].mxu0
          %2414 = vdwg.mxu0
          %v2416 = vsel %vm1625, %v2410, 0
          %2418 = vmatprep.subr.mxu0 0.0
          %2419 = vmatpush1.msra.mxu0 %v2416
          %2420 = vmatprep.subr.mxu0 0.0
          %2421 = vmatpush1.msra.mxu0 0.0
          %2422 = vmatprep.subr.mxu0 0.0
          %2423 = vmatpush1.msra.mxu0 0.0
          %2424 = vmatprep.subr.mxu0 0.0
          %2425 = vmatpush1.msra.mxu0 0.0
          %2426 = vmatprep.subr.mxu0 0.0
          %2427 = vmatpush1.msra.mxu0 0.0
          %2428 = vmatprep.subr.mxu0 0.0
          %2429 = vmatpush1.msra.mxu0 0.0
          %2430 = vmatprep.subr.mxu0 0.0
          %2431 = vmatpush1.msra.mxu0 0.0
          %2432 = vmatprep.subr.mxu0 0.0
          %2433 = vmatpush1.msra.mxu0 0.0
          %2434 = vmatprep.subr.mxu0 0.0
          %2435 = vmatpush1.msra.mxu0 0.0
          %2436 = vmatprep.subr.mxu0 0.0
          %2437 = vmatpush1.msra.mxu0 0.0
          %2438 = vmatprep.subr.mxu0 0.0
          %2439 = vmatpush1.msra.mxu0 0.0
          %2440 = vmatprep.subr.mxu0 0.0
          %2441 = vmatpush1.msra.mxu0 0.0
          %2442 = vmatprep.subr.mxu0 0.0
          %2443 = vmatpush1.msra.mxu0 0.0
          %2444 = vmatprep.subr.mxu0 0.0
          %2445 = vmatpush1.msra.mxu0 0.0
          %2446 = vmatprep.subr.mxu0 0.0
          %2447 = vmatpush1.msra.mxu0 0.0
          %2448 = vmatprep.subr.mxu0 0.0
          %2449 = vmatpush1.msra.mxu0 0.0
          %2450 = vmatprep.subr.mxu0 0.0
          %2451 = vmatpush1.msra.mxu0 0.0
          %2452 = vmatprep.subr.mxu0 0.0
          %2453 = vmatpush1.msra.mxu0 0.0
          %2454 = vmatprep.subr.mxu0 0.0
          %2455 = vmatpush1.msra.mxu0 0.0
          %2456 = vmatprep.subr.mxu0 0.0
          %2457 = vmatpush1.msra.mxu0 0.0
          %2458 = vmatprep.subr.mxu0 0.0
          %2459 = vmatpush1.msra.mxu0 0.0
          %2460 = vmatprep.subr.mxu0 0.0
          %2461 = vmatpush1.msra.mxu0 0.0
          %2462 = vmatprep.subr.mxu0 0.0
          %2463 = vmatpush1.msra.mxu0 0.0
          %2464 = vmatprep.subr.mxu0 0.0
          %2465 = vmatpush1.msra.mxu0 0.0
          %2466 = vmatprep.subr.mxu0 0.0
          %2467 = vmatpush1.msra.mxu0 0.0
          %2468 = vmatprep.subr.mxu0 0.0
          %2469 = vmatpush1.msra.mxu0 0.0
          %2470 = vmatprep.subr.mxu0 0.0
          %2471 = vmatpush1.msra.mxu0 0.0
          %2472 = vmatprep.subr.mxu0 0.0
          %2473 = vmatpush1.msra.mxu0 0.0
          %2474 = vmatprep.subr.mxu0 0.0
          %2475 = vmatpush1.msra.mxu0 0.0
          %2476 = vmatprep.subr.mxu0 0.0
          %2477 = vmatpush1.msra.mxu0 0.0
          %2478 = vmatprep.subr.mxu0 0.0
          %2479 = vmatpush1.msra.mxu0 0.0
          %2480 = vmatprep.subr.mxu0 0.0
          %2481 = vmatpush1.msra.mxu0 0.0
          %2482 = vmatprep.mubr.f32.mxu0 0.0
          %2483 = vmatmul.mubr.f32.gmra.mrb[0].mxu0 %v1623
          %v2484 = vpop.f32.mrb[0].mxu0
          %v2485 = vadd.f32 %v1619, %v2484
          %v2486 = vpop.f32.mrb[0].mxu0
          %2487 = vdwg.mxu0
          %s2488 = sadd.s32 16, %s1699
          %s2489 = scalar_lea.vmem %s1272, %s2488 [#allocation3]
          %2490 = vst.msk [vmem:[%s2489] sm:$0xff] %vm1701, %v2485
          %s2491 = sadd.s32 3, %s1288
          %s2492 = scalar_lea.vmem %s1251, %s2491 [#allocation2]
          %v2493 = vld [vmem:[%s2492] sm:$0x1]
          %v2494 = vld [vmem:[%s2492 + $0x4] sm:$0x1]
          %v2495 = vld [vmem:[%s2492 + $0x8] sm:$0x1]
          %v2496 = vld [vmem:[%s2492 + $0xc] sm:$0x1]
          %v2497 = vmul.f32 %v2493, 0.6666667
          %v2498 = vmul.f32 %v2494, 0.6666667
          %v2499 = vmul.f32 %v2495, 0.6666667
          %v2500 = vmul.f32 %v2496, 0.6666667
          %vm2501 = vcmp.ge.f32.partialorder %v2497, 1.0
          %vm2502 = vcmp.ge.f32.partialorder %v2498, 1.0
          %vm2503 = vcmp.ge.f32.partialorder %v2499, 1.0
          %vm2504 = vcmp.ge.f32.partialorder %v2500, 1.0
          %v2505 = vsel %vm2501, 1.0, 0.0
          %v2506 = vsel %vm2502, 1.0, 0.0
          %v2507 = vsel %vm2503, 1.0, 0.0
          %v2508 = vsel %vm2504, 1.0, 0.0
          %v2509 = vsel %vm2501, 0.0, %v2497
          %v2510 = vsel %vm2502, 0.0, %v2498
          %v2511 = vsel %vm2503, 0.0, %v2499
          %v2512 = vsel %vm2504, 0.0, %v2500
          %s2513 = sadd.s32 %s2491, 32
          %s2514 = scalar_lea.vmem %s1251, %s2513 [#allocation2]
          %v2515 = vld [vmem:[%s2514] sm:$0x1]
          %v2516 = vld [vmem:[%s2514 + $0x4] sm:$0x1]
          %v2517 = vld [vmem:[%s2514 + $0x8] sm:$0x1]
          %v2518 = vld [vmem:[%s2514 + $0xc] sm:$0x1]
          %v2519 = vsub.f32 %v2515, %v2509
          %v2520 = vsub.f32 %v2516, %v2510
          %v2521 = vsub.f32 %v2517, %v2511
          %v2522 = vsub.f32 %v2518, %v2512
          %v2523 = vmul.f32 %v2519, 0.6666667
          %v2524 = vmul.f32 %v2520, 0.6666667
          %v2525 = vmul.f32 %v2521, 0.6666667
          %v2526 = vmul.f32 %v2522, 0.6666667
          %v2527 = vadd.f32 %v2509, %v2523
          %v2528 = vadd.f32 %v2510, %v2524
          %v2529 = vadd.f32 %v2511, %v2525
          %v2530 = vadd.f32 %v2512, %v2526
          %vm2531 = vcmp.ge.f32.partialorder %v2527, 1.0
          %vm2532 = vcmp.ge.f32.partialorder %v2528, 1.0
          %vm2533 = vcmp.ge.f32.partialorder %v2529, 1.0
          %vm2534 = vcmp.ge.f32.partialorder %v2530, 1.0
          %v2535 = vsel %vm2531, 1.0, 0.0
          %v2536 = vsel %vm2532, 1.0, 0.0
          %v2537 = vsel %vm2533, 1.0, 0.0
          %v2538 = vsel %vm2534, 1.0, 0.0
          %v2539 = vadd.f32 %v2505, %v2535
          %v2540 = vadd.f32 %v2506, %v2536
          %v2541 = vadd.f32 %v2507, %v2537
          %v2542 = vadd.f32 %v2508, %v2538
          %v2543 = vsel %vm2531, 0.0, %v2527
          %v2544 = vsel %vm2532, 0.0, %v2528
          %v2545 = vsel %vm2533, 0.0, %v2529
          %v2546 = vsel %vm2534, 0.0, %v2530
          %s2547 = sadd.s32 %s2491, 64
          %s2548 = scalar_lea.vmem %s1251, %s2547 [#allocation2]
          %v2549 = vld [vmem:[%s2548] sm:$0x1]
          %v2550 = vld [vmem:[%s2548 + $0x4] sm:$0x1]
          %v2551 = vld [vmem:[%s2548 + $0x8] sm:$0x1]
          %v2552 = vld [vmem:[%s2548 + $0xc] sm:$0x1]
          %v2553 = vsub.f32 %v2549, %v2543
          %v2554 = vsub.f32 %v2550, %v2544
          %v2555 = vsub.f32 %v2551, %v2545
          %v2556 = vsub.f32 %v2552, %v2546
          %v2557 = vmul.f32 %v2553, 0.6666667
          %v2558 = vmul.f32 %v2554, 0.6666667
          %v2559 = vmul.f32 %v2555, 0.6666667
          %v2560 = vmul.f32 %v2556, 0.6666667
          %v2561 = vadd.f32 %v2543, %v2557
          %v2562 = vadd.f32 %v2544, %v2558
          %v2563 = vadd.f32 %v2545, %v2559
          %v2564 = vadd.f32 %v2546, %v2560
          %vm2565 = vcmp.ge.f32.partialorder %v2561, 1.0
          %vm2566 = vcmp.ge.f32.partialorder %v2562, 1.0
          %vm2567 = vcmp.ge.f32.partialorder %v2563, 1.0
          %vm2568 = vcmp.ge.f32.partialorder %v2564, 1.0
          %v2569 = vsel %vm2565, 1.0, 0.0
          %v2570 = vsel %vm2566, 1.0, 0.0
          %v2571 = vsel %vm2567, 1.0, 0.0
          %v2572 = vsel %vm2568, 1.0, 0.0
          %v2573 = vadd.f32 %v2539, %v2569
          %v2574 = vadd.f32 %v2540, %v2570
          %v2575 = vadd.f32 %v2541, %v2571
          %v2576 = vadd.f32 %v2542, %v2572
          %v2577 = vsel %vm2565, 0.0, %v2561
          %v2578 = vsel %vm2566, 0.0, %v2562
          %v2579 = vsel %vm2567, 0.0, %v2563
          %v2580 = vsel %vm2568, 0.0, %v2564
          %s2581 = sadd.s32 %s2491, 96
          %s2582 = scalar_lea.vmem %s1251, %s2581 [#allocation2]
          %v2583 = vld [vmem:[%s2582] sm:$0x1]
          %v2584 = vld [vmem:[%s2582 + $0x4] sm:$0x1]
          %v2585 = vld [vmem:[%s2582 + $0x8] sm:$0x1]
          %v2586 = vld [vmem:[%s2582 + $0xc] sm:$0x1]
          %v2587 = vsub.f32 %v2583, %v2577
          %v2588 = vsub.f32 %v2584, %v2578
          %v2589 = vsub.f32 %v2585, %v2579
          %v2590 = vsub.f32 %v2586, %v2580
          %v2591 = vmul.f32 %v2587, 0.6666667
          %v2592 = vmul.f32 %v2588, 0.6666667
          %v2593 = vmul.f32 %v2589, 0.6666667
          %v2594 = vmul.f32 %v2590, 0.6666667
          %v2595 = vadd.f32 %v2577, %v2591
          %v2596 = vadd.f32 %v2578, %v2592
          %v2597 = vadd.f32 %v2579, %v2593
          %v2598 = vadd.f32 %v2580, %v2594
          %vm2599 = vcmp.ge.f32.partialorder %v2595, 1.0
          %vm2600 = vcmp.ge.f32.partialorder %v2596, 1.0
          %vm2601 = vcmp.ge.f32.partialorder %v2597, 1.0
          %vm2602 = vcmp.ge.f32.partialorder %v2598, 1.0
          %v2603 = vsel %vm2599, 1.0, 0.0
          %v2604 = vsel %vm2600, 1.0, 0.0
          %v2605 = vsel %vm2601, 1.0, 0.0
          %v2606 = vsel %vm2602, 1.0, 0.0
          %v2607 = vadd.f32 %v2573, %v2603
          %v2608 = vadd.f32 %v2574, %v2604
          %v2609 = vadd.f32 %v2575, %v2605
          %v2610 = vadd.f32 %v2576, %v2606
          %v2611 = vsel %vm2599, 0.0, %v2595
          %v2612 = vsel %vm2600, 0.0, %v2596
          %v2613 = vsel %vm2601, 0.0, %v2597
          %v2614 = vsel %vm2602, 0.0, %v2598
          %s2615 = sadd.s32 %s2491, 128
          %s2616 = scalar_lea.vmem %s1251, %s2615 [#allocation2]
          %v2617 = vld [vmem:[%s2616] sm:$0x1]
          %v2618 = vld [vmem:[%s2616 + $0x4] sm:$0x1]
          %v2619 = vld [vmem:[%s2616 + $0x8] sm:$0x1]
          %v2620 = vld [vmem:[%s2616 + $0xc] sm:$0x1]
          %v2621 = vsub.f32 %v2617, %v2611
          %v2622 = vsub.f32 %v2618, %v2612
          %v2623 = vsub.f32 %v2619, %v2613
          %v2624 = vsub.f32 %v2620, %v2614
          %v2625 = vmul.f32 %v2621, 0.6666667
          %v2626 = vmul.f32 %v2622, 0.6666667
          %v2627 = vmul.f32 %v2623, 0.6666667
          %v2628 = vmul.f32 %v2624, 0.6666667
          %v2629 = vadd.f32 %v2611, %v2625
          %v2630 = vadd.f32 %v2612, %v2626
          %v2631 = vadd.f32 %v2613, %v2627
          %v2632 = vadd.f32 %v2614, %v2628
          %vm2633 = vcmp.ge.f32.partialorder %v2629, 1.0
          %vm2634 = vcmp.ge.f32.partialorder %v2630, 1.0
          %vm2635 = vcmp.ge.f32.partialorder %v2631, 1.0
          %vm2636 = vcmp.ge.f32.partialorder %v2632, 1.0
          %v2637 = vsel %vm2633, 1.0, 0.0
          %v2638 = vsel %vm2634, 1.0, 0.0
          %v2639 = vsel %vm2635, 1.0, 0.0
          %v2640 = vsel %vm2636, 1.0, 0.0
          %v2641 = vadd.f32 %v2607, %v2637
          %v2642 = vadd.f32 %v2608, %v2638
          %v2643 = vadd.f32 %v2609, %v2639
          %v2644 = vadd.f32 %v2610, %v2640
          %v2645 = vsel %vm2633, 0.0, %v2629
          %v2646 = vsel %vm2634, 0.0, %v2630
          %v2647 = vsel %vm2635, 0.0, %v2631
          %v2648 = vsel %vm2636, 0.0, %v2632
          %s2649 = sadd.s32 %s2491, 160
          %s2650 = scalar_lea.vmem %s1251, %s2649 [#allocation2]
          %v2651 = vld [vmem:[%s2650] sm:$0x1]
          %v2652 = vld [vmem:[%s2650 + $0x4] sm:$0x1]
          %v2653 = vld [vmem:[%s2650 + $0x8] sm:$0x1]
          %v2654 = vld [vmem:[%s2650 + $0xc] sm:$0x1]
          %v2655 = vsub.f32 %v2651, %v2645
          %v2656 = vsub.f32 %v2652, %v2646
          %v2657 = vsub.f32 %v2653, %v2647
          %v2658 = vsub.f32 %v2654, %v2648
          %v2659 = vmul.f32 %v2655, 0.6666667
          %v2660 = vmul.f32 %v2656, 0.6666667
          %v2661 = vmul.f32 %v2657, 0.6666667
          %v2662 = vmul.f32 %v2658, 0.6666667
          %v2663 = vadd.f32 %v2645, %v2659
          %v2664 = vadd.f32 %v2646, %v2660
          %v2665 = vadd.f32 %v2647, %v2661
          %v2666 = vadd.f32 %v2648, %v2662
          %vm2667 = vcmp.ge.f32.partialorder %v2663, 1.0
          %vm2668 = vcmp.ge.f32.partialorder %v2664, 1.0
          %vm2669 = vcmp.ge.f32.partialorder %v2665, 1.0
          %vm2670 = vcmp.ge.f32.partialorder %v2666, 1.0
          %v2671 = vsel %vm2667, 1.0, 0.0
          %v2672 = vsel %vm2668, 1.0, 0.0
          %v2673 = vsel %vm2669, 1.0, 0.0
          %v2674 = vsel %vm2670, 1.0, 0.0
          %v2675 = vadd.f32 %v2641, %v2671
          %v2676 = vadd.f32 %v2642, %v2672
          %v2677 = vadd.f32 %v2643, %v2673
          %v2678 = vadd.f32 %v2644, %v2674
          %v2679 = vsel %vm2667, 0.0, %v2663
          %v2680 = vsel %vm2668, 0.0, %v2664
          %v2681 = vsel %vm2669, 0.0, %v2665
          %v2682 = vsel %vm2670, 0.0, %v2666
          %s2683 = sadd.s32 %s2491, 192
          %s2684 = scalar_lea.vmem %s1251, %s2683 [#allocation2]
          %v2685 = vld [vmem:[%s2684] sm:$0x1]
          %v2686 = vld [vmem:[%s2684 + $0x4] sm:$0x1]
          %v2687 = vld [vmem:[%s2684 + $0x8] sm:$0x1]
          %v2688 = vld [vmem:[%s2684 + $0xc] sm:$0x1]
          %v2689 = vsub.f32 %v2685, %v2679
          %v2690 = vsub.f32 %v2686, %v2680
          %v2691 = vsub.f32 %v2687, %v2681
          %v2692 = vsub.f32 %v2688, %v2682
          %v2693 = vmul.f32 %v2689, 0.6666667
          %v2694 = vmul.f32 %v2690, 0.6666667
          %v2695 = vmul.f32 %v2691, 0.6666667
          %v2696 = vmul.f32 %v2692, 0.6666667
          %v2697 = vadd.f32 %v2679, %v2693
          %v2698 = vadd.f32 %v2680, %v2694
          %v2699 = vadd.f32 %v2681, %v2695
          %v2700 = vadd.f32 %v2682, %v2696
          %vm2701 = vcmp.ge.f32.partialorder %v2697, 1.0
          %vm2702 = vcmp.ge.f32.partialorder %v2698, 1.0
          %vm2703 = vcmp.ge.f32.partialorder %v2699, 1.0
          %vm2704 = vcmp.ge.f32.partialorder %v2700, 1.0
          %v2705 = vsel %vm2701, 1.0, 0.0
          %v2706 = vsel %vm2702, 1.0, 0.0
          %v2707 = vsel %vm2703, 1.0, 0.0
          %v2708 = vsel %vm2704, 1.0, 0.0
          %v2709 = vadd.f32 %v2675, %v2705
          %v2710 = vadd.f32 %v2676, %v2706
          %v2711 = vadd.f32 %v2677, %v2707
          %v2712 = vadd.f32 %v2678, %v2708
          %v2713 = vsel %vm2701, 0.0, %v2697
          %v2714 = vsel %vm2702, 0.0, %v2698
          %v2715 = vsel %vm2703, 0.0, %v2699
          %v2716 = vsel %vm2704, 0.0, %v2700
          %s2717 = sadd.s32 %s2491, 224
          %s2718 = scalar_lea.vmem %s1251, %s2717 [#allocation2]
          %v2719 = vld [vmem:[%s2718] sm:$0x1]
          %v2720 = vld [vmem:[%s2718 + $0x4] sm:$0x1]
          %v2721 = vld [vmem:[%s2718 + $0x8] sm:$0x1]
          %v2722 = vld [vmem:[%s2718 + $0xc] sm:$0x1]
          %v2723 = vsub.f32 %v2719, %v2713
          %v2724 = vsub.f32 %v2720, %v2714
          %v2725 = vsub.f32 %v2721, %v2715
          %v2726 = vsub.f32 %v2722, %v2716
          %v2727 = vmul.f32 %v2723, 0.6666667
          %v2728 = vmul.f32 %v2724, 0.6666667
          %v2729 = vmul.f32 %v2725, 0.6666667
          %v2730 = vmul.f32 %v2726, 0.6666667
          %v2731 = vadd.f32 %v2713, %v2727
          %v2732 = vadd.f32 %v2714, %v2728
          %v2733 = vadd.f32 %v2715, %v2729
          %v2734 = vadd.f32 %v2716, %v2730
          %vm2735 = vcmp.ge.f32.partialorder %v2731, 1.0
          %vm2736 = vcmp.ge.f32.partialorder %v2732, 1.0
          %vm2737 = vcmp.ge.f32.partialorder %v2733, 1.0
          %vm2738 = vcmp.ge.f32.partialorder %v2734, 1.0
          %v2739 = vsel %vm2735, 1.0, 0.0
          %v2740 = vsel %vm2736, 1.0, 0.0
          %v2741 = vsel %vm2737, 1.0, 0.0
          %v2742 = vsel %vm2738, 1.0, 0.0
          %v2743 = vadd.f32 %v2709, %v2739
          %v2744 = vadd.f32 %v2710, %v2740
          %v2745 = vadd.f32 %v2711, %v2741
          %v2746 = vadd.f32 %v2712, %v2742
          %v2747 = vpack.c.bf16 %v2743, %v2743
          %v2748 = vpack.c.bf16 %v2744, %v2744
          %v2749 = vpack.c.bf16 %v2745, %v2745
          %v2750 = vpack.c.bf16 %v2746, %v2746
          %v2755 = vunpack.c.l.b16 %v2747
          %v2756 = vunpack.c.l.b16 %v2748
          %v2757 = vunpack.c.l.b16 %v2749
          %v2758 = vunpack.c.l.b16 %v2750
          %v2759 = vrot.slane %v2756, 7
          %v2760 = vsel %vm1557, %v2759, %v2755
          %v2761 = vrot.slane %v2757, 6
          %v2762 = vsel %vm1560, %v2761, %v2760
          %v2763 = vrot.slane %v2758, 5
          %v2764 = vsel %vm1563, %v2763, %v2762
          %v2765 = vpack.c.b16 %v2764, %v2764
          %v2767 = vsel %vm1572, %v2765, 0
          %2769 = vmatprep.subr.bf16.mxu0 0
          %2770 = vmatpush1.bf16.msra.mxu0 %v1570
          %2771 = vmatprep.subr.bf16.mxu0 0
          %2772 = vmatpush1.bf16.msra.mxu0 0
          %2773 = vmatprep.subr.bf16.mxu0 0
          %2774 = vmatpush1.bf16.msra.mxu0 0
          %2775 = vmatprep.subr.bf16.mxu0 0
          %2776 = vmatpush1.bf16.msra.mxu0 0
          %2777 = vmatprep.subr.bf16.mxu0 0
          %2778 = vmatpush1.bf16.msra.mxu0 0
          %2779 = vmatprep.subr.bf16.mxu0 0
          %2780 = vmatpush1.bf16.msra.mxu0 0
          %2781 = vmatprep.subr.bf16.mxu0 0
          %2782 = vmatpush1.bf16.msra.mxu0 0
          %2783 = vmatprep.subr.bf16.mxu0 0
          %2784 = vmatpush1.bf16.msra.mxu0 0
          %2785 = vmatprep.subr.bf16.mxu0 0
          %2786 = vmatpush1.bf16.msra.mxu0 0
          %2787 = vmatprep.subr.bf16.mxu0 0
          %2788 = vmatpush1.bf16.msra.mxu0 0
          %2789 = vmatprep.subr.bf16.mxu0 0
          %2790 = vmatpush1.bf16.msra.mxu0 0
          %2791 = vmatprep.subr.bf16.mxu0 0
          %2792 = vmatpush1.bf16.msra.mxu0 0
          %2793 = vmatprep.subr.bf16.mxu0 0
          %2794 = vmatpush1.bf16.msra.mxu0 0
          %2795 = vmatprep.subr.bf16.mxu0 0
          %2796 = vmatpush1.bf16.msra.mxu0 0
          %2797 = vmatprep.subr.bf16.mxu0 0
          %2798 = vmatpush1.bf16.msra.mxu0 0
          %2799 = vmatprep.subr.bf16.mxu0 0
          %2800 = vmatpush1.bf16.msra.mxu0 0
          %2801 = vmatprep.mubr.bf16.mxu0 0
          %2802 = vmatmul.mubr.bf16.gmra.mrb[0].mxu0 %v2767
          %v2803 = vpop.f32.mrb[0].mxu0
          %v2804 = vadd.f32 0.0, %v2803
          %v2805 = vpop.f32.mrb[0].mxu0
          %v2806 = vpop.f32.mrb[0].mxu0
          %v2807 = vpop.f32.mrb[0].mxu0
          %2808 = vdwg.mxu0
          %v2810 = vsel %vm1625, %v2804, 0
          %2812 = vmatprep.subr.mxu0 0.0
          %2813 = vmatpush1.msra.mxu0 %v2810
          %2814 = vmatprep.subr.mxu0 0.0
          %2815 = vmatpush1.msra.mxu0 0.0
          %2816 = vmatprep.subr.mxu0 0.0
          %2817 = vmatpush1.msra.mxu0 0.0
          %2818 = vmatprep.subr.mxu0 0.0
          %2819 = vmatpush1.msra.mxu0 0.0
          %2820 = vmatprep.subr.mxu0 0.0
          %2821 = vmatpush1.msra.mxu0 0.0
          %2822 = vmatprep.subr.mxu0 0.0
          %2823 = vmatpush1.msra.mxu0 0.0
          %2824 = vmatprep.subr.mxu0 0.0
          %2825 = vmatpush1.msra.mxu0 0.0
          %2826 = vmatprep.subr.mxu0 0.0
          %2827 = vmatpush1.msra.mxu0 0.0
          %2828 = vmatprep.subr.mxu0 0.0
          %2829 = vmatpush1.msra.mxu0 0.0
          %2830 = vmatprep.subr.mxu0 0.0
          %2831 = vmatpush1.msra.mxu0 0.0
          %2832 = vmatprep.subr.mxu0 0.0
          %2833 = vmatpush1.msra.mxu0 0.0
          %2834 = vmatprep.subr.mxu0 0.0
          %2835 = vmatpush1.msra.mxu0 0.0
          %2836 = vmatprep.subr.mxu0 0.0
          %2837 = vmatpush1.msra.mxu0 0.0
          %2838 = vmatprep.subr.mxu0 0.0
          %2839 = vmatpush1.msra.mxu0 0.0
          %2840 = vmatprep.subr.mxu0 0.0
          %2841 = vmatpush1.msra.mxu0 0.0
          %2842 = vmatprep.subr.mxu0 0.0
          %2843 = vmatpush1.msra.mxu0 0.0
          %2844 = vmatprep.subr.mxu0 0.0
          %2845 = vmatpush1.msra.mxu0 0.0
          %2846 = vmatprep.subr.mxu0 0.0
          %2847 = vmatpush1.msra.mxu0 0.0
          %2848 = vmatprep.subr.mxu0 0.0
          %2849 = vmatpush1.msra.mxu0 0.0
          %2850 = vmatprep.subr.mxu0 0.0
          %2851 = vmatpush1.msra.mxu0 0.0
          %2852 = vmatprep.subr.mxu0 0.0
          %2853 = vmatpush1.msra.mxu0 0.0
          %2854 = vmatprep.subr.mxu0 0.0
          %2855 = vmatpush1.msra.mxu0 0.0
          %2856 = vmatprep.subr.mxu0 0.0
          %2857 = vmatpush1.msra.mxu0 0.0
          %2858 = vmatprep.subr.mxu0 0.0
          %2859 = vmatpush1.msra.mxu0 0.0
          %2860 = vmatprep.subr.mxu0 0.0
          %2861 = vmatpush1.msra.mxu0 0.0
          %2862 = vmatprep.subr.mxu0 0.0
          %2863 = vmatpush1.msra.mxu0 0.0
          %2864 = vmatprep.subr.mxu0 0.0
          %2865 = vmatpush1.msra.mxu0 0.0
          %2866 = vmatprep.subr.mxu0 0.0
          %2867 = vmatpush1.msra.mxu0 0.0
          %2868 = vmatprep.subr.mxu0 0.0
          %2869 = vmatpush1.msra.mxu0 0.0
          %2870 = vmatprep.subr.mxu0 0.0
          %2871 = vmatpush1.msra.mxu0 0.0
          %2872 = vmatprep.subr.mxu0 0.0
          %2873 = vmatpush1.msra.mxu0 0.0
          %2874 = vmatprep.subr.mxu0 0.0
          %2875 = vmatpush1.msra.mxu0 0.0
          %2876 = vmatprep.mubr.f32.mxu0 0.0
          %2877 = vmatmul.mubr.f32.gmra.mrb[0].mxu0 %v1623
          %v2878 = vpop.f32.mrb[0].mxu0
          %v2879 = vadd.f32 %v1619, %v2878
          %v2880 = vpop.f32.mrb[0].mxu0
          %2881 = vdwg.mxu0
          %s2882 = sadd.s32 24, %s1699
          %s2883 = scalar_lea.vmem %s1272, %s2882 [#allocation3]
          %2884 = vst.msk [vmem:[%s2883] sm:$0xff] %vm1701, %v2879
        $region82: #{downsample_module_forward.1} parent=72 // loop_footer
          %s1287 = sadd.s32 1, %s1283
        $region83: #{downsample_module_forward.1} parent=72 // loop_footer_branch
          %1282 = sbr.rel target = $region79
        $region84: #{downsample_module_forward.1} parent=72 // loop_exit
          _
        %s2885 = sand.u32 %s128, 1
        %s2886 = sand.u32 %s128, 1
        %s2887 = smul.addr %s2886, 64
        %s2888 = scalar_lea.vmem [#allocation3], %s2887
        // Predicated region
        $region85: #{downsample_module_forward.1} parent=72 // pred_check
          %p2889 = pneg %p138
        $region86: #{downsample_module_forward.1} parent=72 // pred_check_branch
          %2891 = sbr.rel (%p2889) target = $region88
        $region87: #{downsample_module_forward.1} parent=72 // pred_region
          %s2892 = smul.u32 2, %s19
          %s2893 = smul.u32 4, %s20
          %s2894 = smul.addr %s2892, 8
          %s2895 = sadd.s32 %s2893, %s2894
          %s2896 = smul.addr %s2895, 8
          %s2897 = scalar_lea.vmem %s4, %s2896
          // Predicated region
          $region89: #{downsample_module_forward.1} parent=87 // pred_check
            _
          $region90: #{downsample_module_forward.1} parent=87 // pred_check_branch
            %2899 = sbr.rel (0) target = $region92
          $region91: #{downsample_module_forward.1} parent=87 // pred_region
            // Predicated region
            $region93: #{downsample_module_forward.1} parent=91 // pred_check
              _
            $region94: #{downsample_module_forward.1} parent=91 // pred_check_branch
              %2901 = sbr.rel (0) target = $region96
            $region95: #{downsample_module_forward.1} parent=91 // pred_region
              // Predicated region
              $region108: #{downsample_module_forward.1} parent=95 // pred_check
                _
              $region109: #{downsample_module_forward.1} parent=95 // pred_check_branch
                %2930 = sbr.rel (0) target = $region111
              $region110: #{downsample_module_forward.1} parent=95 // pred_region
                loop: start=0, step=1, limit=1
                $region112: #{downsample_module_forward.1} parent=110 // loop_pre_header
                  _
                $region113: #{downsample_module_forward.1} parent=110 // loop_header
                  %s2932 = sphi 0, %s2936
                  %p2933 = scmp.ge.s32.totalorder %s2932, 1
                  %s2937 = sphi %s2888, %s2888
                  %s2938 = sphi %s2897, %s2897
                $region114: #{downsample_module_forward.1} parent=110 // loop_header_branch
                  %2935 = sbr.rel (%p2933) target = $region118
                $region115: #{downsample_module_forward.1} parent=110 // loop_body
                  %v2939 = vld [vmem:[%s2937] sm:$0xff]
                  %2940 = vst [vmem:[%s2938] sm:$0xff] %v2939
                  %v2941 = vld [vmem:[%s2937 + $0x8] sm:$0xff]
                  %2942 = vst [vmem:[%s2938 + $0x8] sm:$0xff] %v2941
                  %v2943 = vld [vmem:[%s2937 + $0x10] sm:$0xff]
                  %2944 = vst [vmem:[%s2938 + $0x10] sm:$0xff] %v2943
                  %v2945 = vld [vmem:[%s2937 + $0x18] sm:$0xff]
                  %2946 = vst [vmem:[%s2938 + $0x18] sm:$0xff] %v2945
                  %v2947 = vld [vmem:[%s2937 + $0x20] sm:$0xff]
                  %2948 = vst [vmem:[%s2938 + $0x40] sm:$0xff] %v2947
                  %v2949 = vld [vmem:[%s2937 + $0x28] sm:$0xff]
                  %2950 = vst [vmem:[%s2938 + $0x48] sm:$0xff] %v2949
                  %v2951 = vld [vmem:[%s2937 + $0x30] sm:$0xff]
                  %2952 = vst [vmem:[%s2938 + $0x50] sm:$0xff] %v2951
                  %v2953 = vld [vmem:[%s2937 + $0x38] sm:$0xff]
                  %2954 = vst [vmem:[%s2938 + $0x58] sm:$0xff] %v2953
                $region116: #{downsample_module_forward.1} parent=110 // loop_footer
                  %s2936 = sadd.s32 1, %s2932
                $region117: #{downsample_module_forward.1} parent=110 // loop_footer_branch
                  %2931 = sbr.rel target = $region113
                $region118: #{downsample_module_forward.1} parent=110 // loop_exit
                  _
              $region111: #{downsample_module_forward.1} parent=95 // pred_fallthru
                _
              // Predicated region
              $region119: #{downsample_module_forward.1} parent=95 // pred_check
                _
              $region120: #{downsample_module_forward.1} parent=95 // pred_check_branch
                %2956 = sbr.rel target = $region122
              $region121: #{downsample_module_forward.1} parent=95 // pred_region
                _
              $region122: #{downsample_module_forward.1} parent=95 // pred_fallthru
                _
            $region96: #{downsample_module_forward.1} parent=91 // pred_fallthru
              _
            // Predicated region
            $region97: #{downsample_module_forward.1} parent=91 // pred_check
              _
            $region98: #{downsample_module_forward.1} parent=91 // pred_check_branch
              %2903 = sbr.rel target = $region100
            $region99: #{downsample_module_forward.1} parent=91 // pred_region
              loop: start=0, step=1, limit=1
              $region101: #{downsample_module_forward.1} parent=99 // loop_pre_header
                _
              $region102: #{downsample_module_forward.1} parent=99 // loop_header
                %s2906 = sphi 0, %s2910
                %p2907 = scmp.ge.s32.totalorder %s2906, 1
                %s2911 = sphi %s2888, %s2888
                %s2912 = sphi %s2897, %s2897
              $region103: #{downsample_module_forward.1} parent=99 // loop_header_branch
                %2909 = sbr.rel (%p2907) target = $region107
              $region104: #{downsample_module_forward.1} parent=99 // loop_body
                %v2913 = vld [vmem:[%s2911] sm:$0xff]
                %2914 = vst [vmem:[%s2912] sm:$0xff] %v2913
                %v2915 = vld [vmem:[%s2911 + $0x8] sm:$0xff]
                %2916 = vst [vmem:[%s2912 + $0x8] sm:$0xff] %v2915
                %v2917 = vld [vmem:[%s2911 + $0x10] sm:$0xff]
                %2918 = vst [vmem:[%s2912 + $0x10] sm:$0xff] %v2917
                %v2919 = vld [vmem:[%s2911 + $0x18] sm:$0xff]
                %2920 = vst [vmem:[%s2912 + $0x18] sm:$0xff] %v2919
                %v2921 = vld [vmem:[%s2911 + $0x20] sm:$0xff]
                %2922 = vst [vmem:[%s2912 + $0x40] sm:$0xff] %v2921
                %v2923 = vld [vmem:[%s2911 + $0x28] sm:$0xff]
                %2924 = vst [vmem:[%s2912 + $0x48] sm:$0xff] %v2923
                %v2925 = vld [vmem:[%s2911 + $0x30] sm:$0xff]
                %2926 = vst [vmem:[%s2912 + $0x50] sm:$0xff] %v2925
                %v2927 = vld [vmem:[%s2911 + $0x38] sm:$0xff]
                %2928 = vst [vmem:[%s2912 + $0x58] sm:$0xff] %v2927
              $region105: #{downsample_module_forward.1} parent=99 // loop_footer
                %s2910 = sadd.s32 1, %s2906
              $region106: #{downsample_module_forward.1} parent=99 // loop_footer_branch
                %2905 = sbr.rel target = $region102
              $region107: #{downsample_module_forward.1} parent=99 // loop_exit
                _
            $region100: #{downsample_module_forward.1} parent=91 // pred_fallthru
              _
          $region92: #{downsample_module_forward.1} parent=87 // pred_fallthru
            _
          %2957 = vnop
        $region88: #{downsample_module_forward.1} parent=72 // pred_fallthru
          _
      $region73: #{downsample_module_forward.1} parent=5 // pred_fallthru
        _
      %p2958 = scmp.le.s32.totalorder 2, %s10
      // Predicated region
      $region123: #{downsample_module_forward.1} parent=5 // pred_check
        %p2959 = pneg %p2958
      $region124: #{downsample_module_forward.1} parent=5 // pred_check_branch
        %2961 = sbr.rel (%p2959) target = $region126
      $region125: #{downsample_module_forward.1} parent=5 // pred_region
        %s2962 = ssub.s32 %s10, 2
        // Predicated region
        $region127: #{downsample_module_forward.1} parent=125 // pred_check
          %p2963 = pneg %p144
        $region128: #{downsample_module_forward.1} parent=125 // pred_check_branch
          %2965 = sbr.rel (%p2963) target = $region130
        $region129: #{downsample_module_forward.1} parent=125 // pred_region
          %s2966 = sand.u32 %s129, 1
          %s2967 = sand.u32 %s129, 1
          %s2968 = smul.addr %s2967, 64
          %s2969 = scalar_lea.vmem [#allocation3], %s2968
        $region130: #{downsample_module_forward.1} parent=125 // pred_fallthru
          _
      $region126: #{downsample_module_forward.1} parent=5 // pred_fallthru
        _
    $region6: #{downsample_module_forward.1} parent=1 // loop_footer
      %s14 = sadd.s32 1, %s10
    $region7: #{downsample_module_forward.1} parent=1 // loop_footer_branch
      %9 = sbr.rel target = $region3
    $region8: #{downsample_module_forward.1} parent=1 // loop_exit
      _

</llo_original>
